<compile_context>
chip_gen: v5e
topology: v5e:2x2
jax: 0.10.0
libtpu: 0.0.40
codegen_flags: <defaults>
</compile_context>

<pallas_src>
import functools

import jax
import jax.numpy as jnp
from jax import lax
from jax.experimental import pallas as pl
from jax.experimental.pallas import tpu as pltpu

EPS = 1e-5
NEG_SLOPE = 0.2

_VMEM_LIMIT_BYTES = 64 * 1024 * 1024   # <= v7x physical VMEM, > v5e/v6e defaults
_COUT_TILE_MAX = 256                   # lane tile for Cout
_K_TILE_MAX = 2048                     # reduction tile over 4*Cin


def _round_up(x, m):
    return ((x + m - 1) // m) * m


def _split(dim, max_tile, align):
    """Largest tile <= max_tile that divides `dim` and is a multiple of `align`
    (falls back to the full dim, which is always a legal block extent)."""
    if dim <= max_tile:
        return dim
    t = (max_tile // align) * align
    while t >= align:
        if dim % t == 0:
            return t
        t -= align
    return dim


# ---------------------------------------------------------------------------
# Fused Conv2d(4, stride=2, pad=1) + InstanceNorm2d + LeakyReLU(0.2)
# ---------------------------------------------------------------------------
def _conv_in_lrelu_kernel(mask_ref, x_ref, w_ref, b_ref, o_ref, acc_ref, *,
                          s_out, row_stride, inv_count):
    """One (cout-tile j, sample i, cin-tile k) grid step.

    mask_ref: (s_out, 1)      f32   1.0 on valid flattened output rows
    x_ref:    (1, p_pad, ck)  bf16  space-to-depth'd + spatially flattened input
    w_ref:    (4, ck, ct)     bf16  one (ck, ct) weight slab per 2x2 shift
    b_ref:    (1, ct)         f32   conv bias
    o_ref:    (1, s_out, ct)  bf16  normalized + activated output rows
    acc_ref:  (s_out, ct)     f32   accumulator, carried across cin tiles
    """
    k = pl.program_id(2)

    @pl.when(k == 0)
    def _():
        acc_ref[...] = jnp.zeros_like(acc_ref)

    # 4x4/stride-2 conv == 2x2/stride-1 conv on the space-to-depth input:
    # one aligned bf16 load, four MXU matmuls, shifts applied on the f32
    # results (static sublane offsets {0, 1, row_stride, row_stride+1}).
    xw = x_ref[0]                                  # (p_pad, ck) bf16
    acc = acc_ref[...]
    for s in range(4):
        a, b = s // 2, s % 2
        off = a * row_stride + b
        ys = jnp.dot(xw, w_ref[s], preferred_element_type=jnp.float32)
        acc += ys[off:off + s_out, :]
    acc_ref[...] = acc

    @pl.when(k == pl.num_programs(2) - 1)
    def _():
        y = acc + b_ref[...]                       # (s_out, ct) f32
        m = mask_ref[...]                          # (s_out, 1)  f32
        # InstanceNorm2d (affine=False): biased mean/var per channel over the
        # valid spatial rows; garbage rows (flattened row stride padding) are
        # masked out here and sliced away by the wrapper.
        mean = jnp.sum(y * m, axis=0, keepdims=True) * inv_count
        yc = y - mean
        var = jnp.sum(yc * yc * m, axis=0, keepdims=True) * inv_count
        yn = yc * lax.rsqrt(var + EPS)
        o_ref[0] = jnp.where(yn >= 0.0, yn, NEG_SLOPE * yn).astype(o_ref.dtype)


# ---------------------------------------------------------------------------
# JAX-side layout prep (pure layout ops, fused by XLA; no k*k inflation)
# ---------------------------------------------------------------------------
def _space_to_depth_flat(x_nhwc, ho, wo):
    """pad=1, 2x2 pixel block -> channels, flatten spatial.

    (N, 2*ho, 2*wo, C) -> (N, P_pad, 4*C); row p = ph*(wo+1) + pw, channel
    index di*2*C + dj*C + ci holds x_pad[2*ph + di, 2*pw + dj, ci].
    Rows are zero-padded so all shifted windows stay in bounds.
    """
    n, h, w, c = x_nhwc.shape
    xp = jnp.pad(x_nhwc, ((0, 0), (1, 1), (1, 1), (0, 0)))
    xs = xp.reshape(n, ho + 1, 2, wo + 1, 2, c)
    xs = xs.transpose(0, 1, 3, 2, 4, 5).reshape(n, (ho + 1) * (wo + 1), 4 * c)
    p = (ho + 1) * (wo + 1)
    p_pad = _round_up(p + 1, 8)
    return jnp.pad(xs, ((0, 0), (0, p_pad - p), (0, 0)))


def _pack_weight(w_hwio):
    """(4, 4, Cin, Cout) -> (4, 4*Cin, Cout); slab s=2a+b holds w[2a+di, 2b+dj]."""
    _, _, cin, cout = w_hwio.shape
    w = w_hwio.reshape(2, 2, 2, 2, cin, cout)      # (a, di, b, dj, ci, co)
    w = w.transpose(0, 2, 1, 3, 4, 5)              # (a, b, di, dj, ci, co)
    return w.reshape(4, 4 * cin, cout)


def _conv_block(x_nhwc, w_hwio, b):
    """Conv2d(k=4, s=2, p=1) + InstanceNorm2d + LeakyReLU(0.2), fused in Pallas."""
    # TODO(synk): specialized to kernel_size=4 / even H,W (the module default).
    n, h, w, cin = x_nhwc.shape
    cout = w_hwio.shape[3]
    ho, wo = h // 2, w // 2
    s_out = ho * (wo + 1)          # flattened rows incl. one garbage col per row
    c4 = 4 * cin                   # contraction depth per shift slab

    x_flat = _space_to_depth_flat(x_nhwc.astype(jnp.bfloat16), ho, wo)
    p_pad = x_flat.shape[1]
    w3 = _pack_weight(w_hwio).astype(jnp.bfloat16)
    b2 = b.reshape(1, cout).astype(jnp.float32)
    rows = jnp.arange(s_out, dtype=jnp.int32)
    mask = ((rows % (wo + 1)) < wo).astype(jnp.float32).reshape(s_out, 1)

    ct = _split(cout, _COUT_TILE_MAX, 128)
    ck = _split(c4, _K_TILE_MAX, 128)
    num_ct, num_ck = cout // ct, c4 // ck
    # Reduction axis last; with num_ck == 1 the weight block index is constant
    # across the (inner) batch axis, so the weight tile stays VMEM-resident.
    grid = (num_ct, n, num_ck)

    kernel = functools.partial(
        _conv_in_lrelu_kernel,
        s_out=s_out, row_stride=wo + 1, inv_count=1.0 / float(ho * wo))

    flops = 8 * n * p_pad * c4 * cout                      # 4 shifts * 2 flop/MAC
    bytes_accessed = (2 * n * num_ct * p_pad * c4          # bf16 activations
                      + 2 * 4 * c4 * cout * (n if num_ck > 1 else 1)
                      + 2 * n * s_out * cout + 4 * cout)

    out = pl.pallas_call(
        kernel,
        out_shape=jax.ShapeDtypeStruct((n, s_out, cout), jnp.bfloat16),
        grid_spec=pltpu.PrefetchScalarGridSpec(
            num_scalar_prefetch=0,
            grid=grid,
            in_specs=[
                pl.BlockSpec((s_out, 1), lambda j, i, k: (0, 0)),
                pl.BlockSpec((1, p_pad, ck), lambda j, i, k: (i, 0, k)),
                pl.BlockSpec((4, ck, ct), lambda j, i, k: (0, k, j)),
                pl.BlockSpec((1, ct), lambda j, i, k: (0, j)),
            ],
            out_specs=pl.BlockSpec((1, s_out, ct), lambda j, i, k: (i, 0, j)),
            scratch_shapes=[pltpu.VMEM((s_out, ct), jnp.float32)],
        ),
        compiler_params=pltpu.CompilerParams(
            dimension_semantics=("parallel", "parallel", "arbitrary"),
            vmem_limit_bytes=_VMEM_LIMIT_BYTES),
        cost_estimate=pl.CostEstimate(flops=int(flops),
                                      transcendentals=int(n * cout),
                                      bytes_accessed=int(bytes_accessed)),
    )(mask, x_flat, w3, b2)

    # Drop the garbage column and restore NHWC (free reshape + cheap slice).
    return out.reshape(n, ho, wo + 1, cout)[:, :, :wo, :]


# ---------------------------------------------------------------------------
# Final Conv2d(k=4, s=1, p=0, out_channels=1) + Flatten(0)
# ---------------------------------------------------------------------------
def _head_kernel(p_ref, w_ref, b_ref, o_ref):
    # p_ref: (K, mt) bf16, w_ref: (1, K) bf16, b_ref: (1, 1) f32, o_ref: (1, mt) f32
    o_ref[...] = (jnp.dot(w_ref[...], p_ref[...],
                          preferred_element_type=jnp.float32) + b_ref[...])


def _im2col_stride1(x_nhwc, k):
    """Valid stride-1 im2col.  For the canonical Discriminator sizes the final
    feature map is exactly k x k, so this is just a reshape (no inflation)."""
    n, h, w, c = x_nhwc.shape
    ho, wo = h - k + 1, w - k + 1
    cols = [x_nhwc[:, i:i + ho, j:j + wo, :] for i in range(k) for j in range(k)]
    p = jnp.stack(cols, axis=3)                    # (n, ho, wo, k*k, c)
    return p.reshape(n, ho * wo, k * k * c), ho, wo


def _head(x_nhwc, w_out, b_out):
    k = w_out.shape[0]
    patches, ho, wo = _im2col_stride1(x_nhwc.astype(jnp.bfloat16), k)
    n, _, kk = patches.shape
    m = n * ho * wo
    p_t = patches.reshape(m, kk).T                 # (K, M): output along lanes
    w_row = w_out.reshape(1, kk).astype(jnp.bfloat16)
    b2 = b_out.reshape(1, 1).astype(jnp.float32)
    mt = _split(m, 1024, 128)

    out = pl.pallas_call(
        _head_kernel,
        out_shape=jax.ShapeDtypeStruct((1, m), jnp.float32),
        grid=(m // mt,),
        in_specs=[
            pl.BlockSpec((kk, mt), lambda i: (0, i)),
            pl.BlockSpec((1, kk), lambda i: (0, 0)),
            pl.BlockSpec((1, 1), lambda i: (0, 0)),
        ],
        out_specs=pl.BlockSpec((1, mt), lambda i: (0, i)),
        compiler_params=pltpu.CompilerParams(
            dimension_semantics=("parallel",),
            vmem_limit_bytes=_VMEM_LIMIT_BYTES),
    )(p_t, w_row, b2)
    return out.reshape(-1)                         # Flatten(0)


# ---------------------------------------------------------------------------
# Full forward pass
# ---------------------------------------------------------------------------
def discriminator_forward(x_nchw, params):
    """x_nchw is NCHW float32 (like PyTorch); returns a 1-D array (N*Ho*Wo,)."""
    conv_params, (w_out, b_out) = params
    x = jnp.transpose(x_nchw, (0, 2, 3, 1)).astype(jnp.float32)   # NCHW -> NHWC
    for w_hwio, b in conv_params:
        x = _conv_block(x, w_hwio, b)
    return _head(x, w_out, b_out)


# ---------------------------------------------------------------------------
# Pure-JAX reference with the same (bf16 matmul, f32 accumulate) numerics.
# ---------------------------------------------------------------------------
def reference_forward(x_nchw, params):
    conv_params, (w_out, b_out) = params
    x = x_nchw.astype(jnp.float32)
    for w_hwio, b in conv_params:
        w_oihw = jnp.transpose(w_hwio, (3, 2, 0, 1)).astype(jnp.bfloat16)
        y = lax.conv_general_dilated(
            x.astype(jnp.bfloat16), w_oihw, window_strides=(2, 2),
            padding=((1, 1), (1, 1)),
            dimension_numbers=("NCHW", "OIHW", "NCHW"),
            preferred_element_type=jnp.float32)
        y = y + b.reshape(1, -1, 1, 1)
        mean = jnp.mean(y, axis=(2, 3), keepdims=True)
        var = jnp.mean(jnp.square(y - mean), axis=(2, 3), keepdims=True)
        y = (y - mean) * lax.rsqrt(var + EPS)
        y = jnp.where(y >= 0.0, y, NEG_SLOPE * y)
        x = y.astype(jnp.bfloat16).astype(jnp.float32)   # layer outputs are bf16
    w_oihw = jnp.transpose(w_out, (3, 2, 0, 1)).astype(jnp.bfloat16)
    y = lax.conv_general_dilated(
        x.astype(jnp.bfloat16), w_oihw, window_strides=(1, 1),
        padding=((0, 0), (0, 0)), dimension_numbers=("NCHW", "OIHW", "NCHW"),
        preferred_element_type=jnp.float32)
    y = y + b_out.reshape(1, -1, 1, 1)
    return y.reshape(-1)


# ---------------------------------------------------------------------------
# Deterministic parameter construction
# ---------------------------------------------------------------------------
def init_params(key, channels, h_channels, kernel_size=4):
    conv_params = []
    cin = channels
    for cout in h_channels:
        key, kw, kb = jax.random.split(key, 3)
        w = 0.05 * jax.random.normal(kw, (kernel_size, kernel_size, cin, cout),
                                     dtype=jnp.float32)            # HWIO
        b = 0.01 * jax.random.normal(kb, (1, cout), dtype=jnp.float32)
        conv_params.append((w, b))
        cin = cout
    key, kw, kb = jax.random.split(key, 3)
    w_out = 0.05 * jax.random.normal(kw, (4, 4, cin, 1), dtype=jnp.float32)
    b_out = 0.01 * jax.random.normal(kb, (1, 1), dtype=jnp.float32)
    return conv_params, (w_out, b_out)


if __name__ == "__main__":
    # Small shapes: batch=2, channels=4, spatial=32 (32 -> 16 -> 8 -> 4 -> 1x1),
    # reduced hidden widths [8, 16, 32] instead of [256, 512, 1024].
    key = jax.random.PRNGKey(0)
    key, kx = jax.random.split(key)
    x = jax.random.normal(kx, (2, 4, 32, 32), dtype=jnp.float32)   # NCHW
    params = init_params(key, channels=4, h_channels=[8, 16, 32], kernel_size=4)

    fwd = jax.jit(discriminator_forward)
    out = jax.block_until_ready(fwd(x, params))
    ref = jax.block_until_ready(reference_forward(x, params))

    assert out.shape == ref.shape == (2,), (out.shape, ref.shape)
    assert jnp.allclose(out, ref, rtol=2e-2, atol=2e-2), (out, ref)
    print("KERNEL_OK")
</pallas_src>

<mosaic_0001>
module attributes {stable_mosaic.version = 11 : i64} {
  func.func @_conv_in_lrelu_kernel(%arg0: i32, %arg1: i32, %arg2: i32, %arg3: memref<272x1xf32, #tpu.memory_space<vmem>>, %arg4: memref<1x296x16xbf16, #tpu.memory_space<vmem>>, %arg5: memref<4x16x8xbf16, #tpu.memory_space<vmem>>, %arg6: memref<1x8xf32, #tpu.memory_space<vmem>>, %arg7: memref<1x272x8xbf16, #tpu.memory_space<vmem>>, %arg8: memref<272x8xf32, #tpu.memory_space<vmem>>) attributes {dimension_semantics = [#tpu.dimension_semantics<parallel>, #tpu.dimension_semantics<parallel>, #tpu.dimension_semantics<arbitrary>], iteration_bounds = array<i64: 1, 2, 1>, scalar_prefetch = 0 : i64, scratch_operands = 1 : i64, tpu.core_type = #tpu.core_type<tc>, window_params = [{pipeline_mode = #tpu.pipeline_mode<synchronous>, transform_indices = @transform_0, window_bounds = array<i64: 272, 1>}, {transform_indices = @transform_1, window_bounds = array<i64: 1, 296, 16>}, {transform_indices = @transform_2, window_bounds = array<i64: 4, 16, 8>}, {transform_indices = @transform_3, window_bounds = array<i64: 1, 8>}, {transform_indices = @transform_4, window_bounds = array<i64: 1, 272, 8>}]} {
    %c0_i32 = arith.constant 0 : i32
    %0 = arith.cmpi eq, %arg2, %c0_i32 : i32
    %1 = arith.extui %0 : i1 to i32
    %c0_i32_0 = arith.constant 0 : i32
    %2 = arith.cmpi ne, %1, %c0_i32_0 : i32
    scf.if %2 {
      %cst_21 = arith.constant 0.000000e+00 : f32
      %30 = vector.broadcast %cst_21 : f32 to vector<272x8xf32>
      %c0_22 = arith.constant 0 : index
      %c0_23 = arith.constant 0 : index
      %31 = vector.load %arg8[%c0_22, %c0_23] : memref<272x8xf32, #tpu.memory_space<vmem>>, vector<272x8xf32>
      tpu.vector_store %arg8[%c0_22, %c0_23], %30 {strides = array<i32>} : memref<272x8xf32, #tpu.memory_space<vmem>>, vector<272x8xf32>,
    } else {
    }
    %c0 = arith.constant 0 : index
    %c0_1 = arith.constant 0 : index
    %c0_2 = arith.constant 0 : index
    %3 = vector.load %arg4[%c0, %c0_1, %c0_2] : memref<1x296x16xbf16, #tpu.memory_space<vmem>>, vector<1x296x16xbf16>
    %4 = vector.shape_cast %3 : vector<1x296x16xbf16> to vector<296x16xbf16>
    %c0_3 = arith.constant 0 : index
    %c0_4 = arith.constant 0 : index
    %5 = vector.load %arg8[%c0_3, %c0_4] : memref<272x8xf32, #tpu.memory_space<vmem>>, vector<272x8xf32>
    %c0_5 = arith.constant 0 : index
    %c0_6 = arith.constant 0 : index
    %c0_7 = arith.constant 0 : index
    %6 = vector.load %arg5[%c0_5, %c0_6, %c0_7] : memref<4x16x8xbf16, #tpu.memory_space<vmem>>, vector<1x16x8xbf16>
    %7 = vector.shape_cast %6 : vector<1x16x8xbf16> to vector<16x8xbf16>
    %cst = arith.constant dense<0.000000e+00> : vector<296x8xf32>
    %8 = tpu.matmul %4, %7, %cst {dimension_numbers = #tpu.dot_dimension_numbers<[1], [0], [0], [1], [0, 0, 1, 1], [], []>} : vector<296x16xbf16>, vector<16x8xbf16>, vector<296x8xf32> -> vector<296x8xf32>
    %9 = vector.extract_strided_slice %8 {offsets = [0, 0], sizes = [272, 8], strides = [1, 1]} : vector<296x8xf32> to vector<272x8xf32>
    %10 = arith.addf %5, %9 : vector<272x8xf32>
    %c1 = arith.constant 1 : index
    %c0_8 = arith.constant 0 : index
    %c0_9 = arith.constant 0 : index
    %11 = vector.load %arg5[%c1, %c0_8, %c0_9] : memref<4x16x8xbf16, #tpu.memory_space<vmem>>, vector<1x16x8xbf16>
    %12 = vector.shape_cast %11 : vector<1x16x8xbf16> to vector<16x8xbf16>
    %cst_10 = arith.constant dense<0.000000e+00> : vector<296x8xf32>
    %13 = tpu.matmul %4, %12, %cst_10 {dimension_numbers = #tpu.dot_dimension_numbers<[1], [0], [0], [1], [0, 0, 1, 1], [], []>} : vector<296x16xbf16>, vector<16x8xbf16>, vector<296x8xf32> -> vector<296x8xf32>
    %14 = vector.extract_strided_slice %13 {offsets = [1, 0], sizes = [272, 8], strides = [1, 1]} : vector<296x8xf32> to vector<272x8xf32>
    %15 = arith.addf %10, %14 : vector<272x8xf32>
    %c2 = arith.constant 2 : index
    %c0_11 = arith.constant 0 : index
    %c0_12 = arith.constant 0 : index
    %16 = vector.load %arg5[%c2, %c0_11, %c0_12] : memref<4x16x8xbf16, #tpu.memory_space<vmem>>, vector<1x16x8xbf16>
    %17 = vector.shape_cast %16 : vector<1x16x8xbf16> to vector<16x8xbf16>
    %cst_13 = arith.constant dense<0.000000e+00> : vector<296x8xf32>
    %18 = tpu.matmul %4, %17, %cst_13 {dimension_numbers = #tpu.dot_dimension_numbers<[1], [0], [0], [1], [0, 0, 1, 1], [], []>} : vector<296x16xbf16>, vector<16x8xbf16>, vector<296x8xf32> -> vector<296x8xf32>
    %19 = vector.extract_strided_slice %18 {offsets = [17, 0], sizes = [272, 8], strides = [1, 1]} : vector<296x8xf32> to vector<272x8xf32>
    %20 = arith.addf %15, %19 : vector<272x8xf32>
    %c3 = arith.constant 3 : index
    %c0_14 = arith.constant 0 : index
    %c0_15 = arith.constant 0 : index
    %21 = vector.load %arg5[%c3, %c0_14, %c0_15] : memref<4x16x8xbf16, #tpu.memory_space<vmem>>, vector<1x16x8xbf16>
    %22 = vector.shape_cast %21 : vector<1x16x8xbf16> to vector<16x8xbf16>
    %cst_16 = arith.constant dense<0.000000e+00> : vector<296x8xf32>
    %23 = tpu.matmul %4, %22, %cst_16 {dimension_numbers = #tpu.dot_dimension_numbers<[1], [0], [0], [1], [0, 0, 1, 1], [], []>} : vector<296x16xbf16>, vector<16x8xbf16>, vector<296x8xf32> -> vector<296x8xf32>
    %24 = vector.extract_strided_slice %23 {offsets = [18, 0], sizes = [272, 8], strides = [1, 1]} : vector<296x8xf32> to vector<272x8xf32>
    %25 = arith.addf %20, %24 : vector<272x8xf32>
    %c0_17 = arith.constant 0 : index
    %c0_18 = arith.constant 0 : index
    %26 = vector.load %arg8[%c0_17, %c0_18] : memref<272x8xf32, #tpu.memory_space<vmem>>, vector<272x8xf32>
    tpu.vector_store %arg8[%c0_17, %c0_18], %25 {strides = array<i32>} : memref<272x8xf32, #tpu.memory_space<vmem>>, vector<272x8xf32>,
    %c0_i32_19 = arith.constant 0 : i32
    %27 = arith.cmpi eq, %arg2, %c0_i32_19 : i32
    %28 = arith.extui %27 : i1 to i32
    %c0_i32_20 = arith.constant 0 : i32
    %29 = arith.cmpi ne, %28, %c0_i32_20 : i32
    scf.if %29 {
      %c0_21 = arith.constant 0 : index
      %c0_22 = arith.constant 0 : index
      %30 = vector.load %arg6[%c0_21, %c0_22] : memref<1x8xf32, #tpu.memory_space<vmem>>, vector<1x8xf32>
      %31 = vector.broadcast %30 : vector<1x8xf32> to vector<272x8xf32>
      %32 = arith.addf %25, %31 : vector<272x8xf32>
      %c0_23 = arith.constant 0 : index
      %c0_24 = arith.constant 0 : index
      %33 = vector.load %arg3[%c0_23, %c0_24] : memref<272x1xf32, #tpu.memory_space<vmem>>, vector<272x1xf32>
      %34 = vector.broadcast %33 : vector<272x1xf32> to vector<272x8xf32>
      %35 = arith.mulf %32, %34 : vector<272x8xf32>
      %cst_25 = arith.constant dense<0.000000e+00> : vector<8xf32>
      %36 = vector.multi_reduction <add>, %35, %cst_25 [0] : vector<272x8xf32> to vector<8xf32>
      %37 = vector.shape_cast %36 : vector<8xf32> to vector<1x8xf32>
      %cst_26 = arith.constant 3.906250e-03 : f32
      %38 = vector.broadcast %cst_26 : f32 to vector<1x8xf32>
      %39 = arith.mulf %37, %38 : vector<1x8xf32>
      %40 = vector.broadcast %39 : vector<1x8xf32> to vector<272x8xf32>
      %41 = arith.subf %32, %40 : vector<272x8xf32>
      %42 = arith.mulf %41, %41 : vector<272x8xf32>
      %43 = vector.broadcast %33 : vector<272x1xf32> to vector<272x8xf32>
      %44 = arith.mulf %42, %43 : vector<272x8xf32>
      %cst_27 = arith.constant dense<0.000000e+00> : vector<8xf32>
      %45 = vector.multi_reduction <add>, %44, %cst_27 [0] : vector<272x8xf32> to vector<8xf32>
      %46 = vector.shape_cast %45 : vector<8xf32> to vector<1x8xf32>
      %cst_28 = arith.constant 3.906250e-03 : f32
      %47 = vector.broadcast %cst_28 : f32 to vector<1x8xf32>
      %48 = arith.mulf %46, %47 : vector<1x8xf32>
      %cst_29 = arith.constant 9.99999974E-6 : f32
      %49 = vector.broadcast %cst_29 : f32 to vector<1x8xf32>
      %50 = arith.addf %48, %49 : vector<1x8xf32>
      %51 = math.rsqrt %50 : vector<1x8xf32>
      %52 = vector.broadcast %51 : vector<1x8xf32> to vector<272x8xf32>
      %53 = arith.mulf %41, %52 : vector<272x8xf32>
      %cst_30 = arith.constant 0.000000e+00 : f32
      %54 = vector.broadcast %cst_30 : f32 to vector<272x8xf32>
      %55 = arith.cmpf oge, %53, %54 : vector<272x8xf32>
      %cst_31 = arith.constant 2.000000e-01 : f32
      %56 = vector.broadcast %cst_31 : f32 to vector<272x8xf32>
      %57 = arith.mulf %56, %53 : vector<272x8xf32>
      %58 = arith.select %55, %53, %57 : vector<272x8xi1>, vector<272x8xf32>
      %59 = arith.truncf %58 : vector<272x8xf32> to vector<272x8xbf16>
      %c0_32 = arith.constant 0 : index
      %c0_33 = arith.constant 0 : index
      %c0_34 = arith.constant 0 : index
      %60 = vector.load %arg7[%c0_32, %c0_33, %c0_34] : memref<1x272x8xbf16, #tpu.memory_space<vmem>>, vector<1x272x8xbf16>
      %61 = vector.shape_cast %60 : vector<1x272x8xbf16> to vector<272x8xbf16>
      %62 = vector.shape_cast %59 : vector<272x8xbf16> to vector<1x272x8xbf16>
      tpu.vector_store %arg7[%c0_32, %c0_33, %c0_34], %62 {strides = array<i32>} : memref<1x272x8xbf16, #tpu.memory_space<vmem>>, vector<1x272x8xbf16>,
    } else {
    }
    return
  }
  func.func @transform_0(%arg0: i32, %arg1: i32, %arg2: i32) -> (i32, i32) {
    %c0_i32 = arith.constant 0 : i32
    %c0_i32_0 = arith.constant 0 : i32
    %c0_i32_1 = arith.constant 0 : i32
    return %c0_i32, %c0_i32_0 : i32, i32
  }
  func.func @transform_1(%arg0: i32, %arg1: i32, %arg2: i32) -> (i32, i32, i32) {
    %c0_i32 = arith.constant 0 : i32
    %c0_i32_0 = arith.constant 0 : i32
    return %arg1, %c0_i32, %arg2 : i32, i32, i32
  }
  func.func @transform_2(%arg0: i32, %arg1: i32, %arg2: i32) -> (i32, i32, i32) {
    %c0_i32 = arith.constant 0 : i32
    %c0_i32_0 = arith.constant 0 : i32
    return %c0_i32, %arg2, %arg0 : i32, i32, i32
  }
  func.func @transform_3(%arg0: i32, %arg1: i32, %arg2: i32) -> (i32, i32) {
    %c0_i32 = arith.constant 0 : i32
    %c0_i32_0 = arith.constant 0 : i32
    return %c0_i32, %arg0 : i32, i32
  }
  func.func @transform_4(%arg0: i32, %arg1: i32, %arg2: i32) -> (i32, i32, i32) {
    %c0_i32 = arith.constant 0 : i32
    %c0_i32_0 = arith.constant 0 : i32
    return %arg1, %c0_i32, %arg0 : i32, i32, i32
  }
}

module attributes {stable_mosaic.version = 11 : i64} {
  func.func @_conv_in_lrelu_kernel(%arg0: i32, %arg1: i32, %arg2: i32, %arg3: memref<72x1xf32, #tpu.memory_space<vmem>>, %arg4: memref<1x88x32xbf16, #tpu.memory_space<vmem>>, %arg5: memref<4x32x16xbf16, #tpu.memory_space<vmem>>, %arg6: memref<1x16xf32, #tpu.memory_space<vmem>>, %arg7: memref<1x72x16xbf16, #tpu.memory_space<vmem>>, %arg8: memref<72x16xf32, #tpu.memory_space<vmem>>) attributes {dimension_semantics = [#tpu.dimension_semantics<parallel>, #tpu.dimension_semantics<parallel>, #tpu.dimension_semantics<arbitrary>], iteration_bounds = array<i64: 1, 2, 1>, scalar_prefetch = 0 : i64, scratch_operands = 1 : i64, tpu.core_type = #tpu.core_type<tc>, window_params = [{pipeline_mode = #tpu.pipeline_mode<synchronous>, transform_indices = @transform_0, window_bounds = array<i64: 72, 1>}, {transform_indices = @transform_1, window_bounds = array<i64: 1, 88, 32>}, {transform_indices = @transform_2, window_bounds = array<i64: 4, 32, 16>}, {transform_indices = @transform_3, window_bounds = array<i64: 1, 16>}, {transform_indices = @transform_4, window_bounds = array<i64: 1, 72, 16>}]} {
    %c0_i32 = arith.constant 0 : i32
    %0 = arith.cmpi eq, %arg2, %c0_i32 : i32
    %1 = arith.extui %0 : i1 to i32
    %c0_i32_0 = arith.constant 0 : i32
    %2 = arith.cmpi ne, %1, %c0_i32_0 : i32
    scf.if %2 {
      %cst_21 = arith.constant 0.000000e+00 : f32
      %30 = vector.broadcast %cst_21 : f32 to vector<72x16xf32>
      %c0_22 = arith.constant 0 : index
      %c0_23 = arith.constant 0 : index
      %31 = vector.load %arg8[%c0_22, %c0_23] : memref<72x16xf32, #tpu.memory_space<vmem>>, vector<72x16xf32>
      tpu.vector_store %arg8[%c0_22, %c0_23], %30 {strides = array<i32>} : memref<72x16xf32, #tpu.memory_space<vmem>>, vector<72x16xf32>,
    } else {
    }
    %c0 = arith.constant 0 : index
    %c0_1 = arith.constant 0 : index
    %c0_2 = arith.constant 0 : index
    %3 = vector.load %arg4[%c0, %c0_1, %c0_2] : memref<1x88x32xbf16, #tpu.memory_space<vmem>>, vector<1x88x32xbf16>
    %4 = vector.shape_cast %3 : vector<1x88x32xbf16> to vector<88x32xbf16>
    %c0_3 = arith.constant 0 : index
    %c0_4 = arith.constant 0 : index
    %5 = vector.load %arg8[%c0_3, %c0_4] : memref<72x16xf32, #tpu.memory_space<vmem>>, vector<72x16xf32>
    %c0_5 = arith.constant 0 : index
    %c0_6 = arith.constant 0 : index
    %c0_7 = arith.constant 0 : index
    %6 = vector.load %arg5[%c0_5, %c0_6, %c0_7] : memref<4x32x16xbf16, #tpu.memory_space<vmem>>, vector<1x32x16xbf16>
    %7 = vector.shape_cast %6 : vector<1x32x16xbf16> to vector<32x16xbf16>
    %cst = arith.constant dense<0.000000e+00> : vector<88x16xf32>
    %8 = tpu.matmul %4, %7, %cst {dimension_numbers = #tpu.dot_dimension_numbers<[1], [0], [0], [1], [0, 0, 1, 1], [], []>} : vector<88x32xbf16>, vector<32x16xbf16>, vector<88x16xf32> -> vector<88x16xf32>
    %9 = vector.extract_strided_slice %8 {offsets = [0, 0], sizes = [72, 16], strides = [1, 1]} : vector<88x16xf32> to vector<72x16xf32>
    %10 = arith.addf %5, %9 : vector<72x16xf32>
    %c1 = arith.constant 1 : index
    %c0_8 = arith.constant 0 : index
    %c0_9 = arith.constant 0 : index
    %11 = vector.load %arg5[%c1, %c0_8, %c0_9] : memref<4x32x16xbf16, #tpu.memory_space<vmem>>, vector<1x32x16xbf16>
    %12 = vector.shape_cast %11 : vector<1x32x16xbf16> to vector<32x16xbf16>
    %cst_10 = arith.constant dense<0.000000e+00> : vector<88x16xf32>
    %13 = tpu.matmul %4, %12, %cst_10 {dimension_numbers = #tpu.dot_dimension_numbers<[1], [0], [0], [1], [0, 0, 1, 1], [], []>} : vector<88x32xbf16>, vector<32x16xbf16>, vector<88x16xf32> -> vector<88x16xf32>
    %14 = vector.extract_strided_slice %13 {offsets = [1, 0], sizes = [72, 16], strides = [1, 1]} : vector<88x16xf32> to vector<72x16xf32>
    %15 = arith.addf %10, %14 : vector<72x16xf32>
    %c2 = arith.constant 2 : index
    %c0_11 = arith.constant 0 : index
    %c0_12 = arith.constant 0 : index
    %16 = vector.load %arg5[%c2, %c0_11, %c0_12] : memref<4x32x16xbf16, #tpu.memory_space<vmem>>, vector<1x32x16xbf16>
    %17 = vector.shape_cast %16 : vector<1x32x16xbf16> to vector<32x16xbf16>
    %cst_13 = arith.constant dense<0.000000e+00> : vector<88x16xf32>
    %18 = tpu.matmul %4, %17, %cst_13 {dimension_numbers = #tpu.dot_dimension_numbers<[1], [0], [0], [1], [0, 0, 1, 1], [], []>} : vector<88x32xbf16>, vector<32x16xbf16>, vector<88x16xf32> -> vector<88x16xf32>
    %19 = vector.extract_strided_slice %18 {offsets = [9, 0], sizes = [72, 16], strides = [1, 1]} : vector<88x16xf32> to vector<72x16xf32>
    %20 = arith.addf %15, %19 : vector<72x16xf32>
    %c3 = arith.constant 3 : index
    %c0_14 = arith.constant 0 : index
    %c0_15 = arith.constant 0 : index
    %21 = vector.load %arg5[%c3, %c0_14, %c0_15] : memref<4x32x16xbf16, #tpu.memory_space<vmem>>, vector<1x32x16xbf16>
    %22 = vector.shape_cast %21 : vector<1x32x16xbf16> to vector<32x16xbf16>
    %cst_16 = arith.constant dense<0.000000e+00> : vector<88x16xf32>
    %23 = tpu.matmul %4, %22, %cst_16 {dimension_numbers = #tpu.dot_dimension_numbers<[1], [0], [0], [1], [0, 0, 1, 1], [], []>} : vector<88x32xbf16>, vector<32x16xbf16>, vector<88x16xf32> -> vector<88x16xf32>
    %24 = vector.extract_strided_slice %23 {offsets = [10, 0], sizes = [72, 16], strides = [1, 1]} : vector<88x16xf32> to vector<72x16xf32>
    %25 = arith.addf %20, %24 : vector<72x16xf32>
    %c0_17 = arith.constant 0 : index
    %c0_18 = arith.constant 0 : index
    %26 = vector.load %arg8[%c0_17, %c0_18] : memref<72x16xf32, #tpu.memory_space<vmem>>, vector<72x16xf32>
    tpu.vector_store %arg8[%c0_17, %c0_18], %25 {strides = array<i32>} : memref<72x16xf32, #tpu.memory_space<vmem>>, vector<72x16xf32>,
    %c0_i32_19 = arith.constant 0 : i32
    %27 = arith.cmpi eq, %arg2, %c0_i32_19 : i32
    %28 = arith.extui %27 : i1 to i32
    %c0_i32_20 = arith.constant 0 : i32
    %29 = arith.cmpi ne, %28, %c0_i32_20 : i32
    scf.if %29 {
      %c0_21 = arith.constant 0 : index
      %c0_22 = arith.constant 0 : index
      %30 = vector.load %arg6[%c0_21, %c0_22] : memref<1x16xf32, #tpu.memory_space<vmem>>, vector<1x16xf32>
      %31 = vector.broadcast %30 : vector<1x16xf32> to vector<72x16xf32>
      %32 = arith.addf %25, %31 : vector<72x16xf32>
      %c0_23 = arith.constant 0 : index
      %c0_24 = arith.constant 0 : index
      %33 = vector.load %arg3[%c0_23, %c0_24] : memref<72x1xf32, #tpu.memory_space<vmem>>, vector<72x1xf32>
      %34 = vector.broadcast %33 : vector<72x1xf32> to vector<72x16xf32>
      %35 = arith.mulf %32, %34 : vector<72x16xf32>
      %cst_25 = arith.constant dense<0.000000e+00> : vector<16xf32>
      %36 = vector.multi_reduction <add>, %35, %cst_25 [0] : vector<72x16xf32> to vector<16xf32>
      %37 = vector.shape_cast %36 : vector<16xf32> to vector<1x16xf32>
      %cst_26 = arith.constant 1.562500e-02 : f32
      %38 = vector.broadcast %cst_26 : f32 to vector<1x16xf32>
      %39 = arith.mulf %37, %38 : vector<1x16xf32>
      %40 = vector.broadcast %39 : vector<1x16xf32> to vector<72x16xf32>
      %41 = arith.subf %32, %40 : vector<72x16xf32>
      %42 = arith.mulf %41, %41 : vector<72x16xf32>
      %43 = vector.broadcast %33 : vector<72x1xf32> to vector<72x16xf32>
      %44 = arith.mulf %42, %43 : vector<72x16xf32>
      %cst_27 = arith.constant dense<0.000000e+00> : vector<16xf32>
      %45 = vector.multi_reduction <add>, %44, %cst_27 [0] : vector<72x16xf32> to vector<16xf32>
      %46 = vector.shape_cast %45 : vector<16xf32> to vector<1x16xf32>
      %cst_28 = arith.constant 1.562500e-02 : f32
      %47 = vector.broadcast %cst_28 : f32 to vector<1x16xf32>
      %48 = arith.mulf %46, %47 : vector<1x16xf32>
      %cst_29 = arith.constant 9.99999974E-6 : f32
      %49 = vector.broadcast %cst_29 : f32 to vector<1x16xf32>
      %50 = arith.addf %48, %49 : vector<1x16xf32>
      %51 = math.rsqrt %50 : vector<1x16xf32>
      %52 = vector.broadcast %51 : vector<1x16xf32> to vector<72x16xf32>
      %53 = arith.mulf %41, %52 : vector<72x16xf32>
      %cst_30 = arith.constant 0.000000e+00 : f32
      %54 = vector.broadcast %cst_30 : f32 to vector<72x16xf32>
      %55 = arith.cmpf oge, %53, %54 : vector<72x16xf32>
      %cst_31 = arith.constant 2.000000e-01 : f32
      %56 = vector.broadcast %cst_31 : f32 to vector<72x16xf32>
      %57 = arith.mulf %56, %53 : vector<72x16xf32>
      %58 = arith.select %55, %53, %57 : vector<72x16xi1>, vector<72x16xf32>
      %59 = arith.truncf %58 : vector<72x16xf32> to vector<72x16xbf16>
      %c0_32 = arith.constant 0 : index
      %c0_33 = arith.constant 0 : index
      %c0_34 = arith.constant 0 : index
      %60 = vector.load %arg7[%c0_32, %c0_33, %c0_34] : memref<1x72x16xbf16, #tpu.memory_space<vmem>>, vector<1x72x16xbf16>
      %61 = vector.shape_cast %60 : vector<1x72x16xbf16> to vector<72x16xbf16>
      %62 = vector.shape_cast %59 : vector<72x16xbf16> to vector<1x72x16xbf16>
      tpu.vector_store %arg7[%c0_32, %c0_33, %c0_34], %62 {strides = array<i32>} : memref<1x72x16xbf16, #tpu.memory_space<vmem>>, vector<1x72x16xbf16>,
    } else {
    }
    return
  }
  func.func @transform_0(%arg0: i32, %arg1: i32, %arg2: i32) -> (i32, i32) {
    %c0_i32 = arith.constant 0 : i32
    %c0_i32_0 = arith.constant 0 : i32
    %c0_i32_1 = arith.constant 0 : i32
    return %c0_i32, %c0_i32_0 : i32, i32
  }
  func.func @transform_1(%arg0: i32, %arg1: i32, %arg2: i32) -> (i32, i32, i32) {
    %c0_i32 = arith.constant 0 : i32
    %c0_i32_0 = arith.constant 0 : i32
    return %arg1, %c0_i32, %arg2 : i32, i32, i32
  }
  func.func @transform_2(%arg0: i32, %arg1: i32, %arg2: i32) -> (i32, i32, i32) {
    %c0_i32 = arith.constant 0 : i32
    %c0_i32_0 = arith.constant 0 : i32
    return %c0_i32, %arg2, %arg0 : i32, i32, i32
  }
  func.func @transform_3(%arg0: i32, %arg1: i32, %arg2: i32) -> (i32, i32) {
    %c0_i32 = arith.constant 0 : i32
    %c0_i32_0 = arith.constant 0 : i32
    return %c0_i32, %arg0 : i32, i32
  }
  func.func @transform_4(%arg0: i32, %arg1: i32, %arg2: i32) -> (i32, i32, i32) {
    %c0_i32 = arith.constant 0 : i32
    %c0_i32_0 = arith.constant 0 : i32
    return %arg1, %c0_i32, %arg0 : i32, i32, i32
  }
}

module attributes {stable_mosaic.version = 11 : i64} {
  func.func @_conv_in_lrelu_kernel(%arg0: i32, %arg1: i32, %arg2: i32, %arg3: memref<20x1xf32, #tpu.memory_space<vmem>>, %arg4: memref<1x32x64xbf16, #tpu.memory_space<vmem>>, %arg5: memref<4x64x32xbf16, #tpu.memory_space<vmem>>, %arg6: memref<1x32xf32, #tpu.memory_space<vmem>>, %arg7: memref<1x20x32xbf16, #tpu.memory_space<vmem>>, %arg8: memref<20x32xf32, #tpu.memory_space<vmem>>) attributes {dimension_semantics = [#tpu.dimension_semantics<parallel>, #tpu.dimension_semantics<parallel>, #tpu.dimension_semantics<arbitrary>], iteration_bounds = array<i64: 1, 2, 1>, scalar_prefetch = 0 : i64, scratch_operands = 1 : i64, tpu.core_type = #tpu.core_type<tc>, window_params = [{pipeline_mode = #tpu.pipeline_mode<synchronous>, transform_indices = @transform_0, window_bounds = array<i64: 20, 1>}, {transform_indices = @transform_1, window_bounds = array<i64: 1, 32, 64>}, {transform_indices = @transform_2, window_bounds = array<i64: 4, 64, 32>}, {transform_indices = @transform_3, window_bounds = array<i64: 1, 32>}, {transform_indices = @transform_4, window_bounds = array<i64: 1, 20, 32>}]} {
    %c0_i32 = arith.constant 0 : i32
    %0 = arith.cmpi eq, %arg2, %c0_i32 : i32
    %1 = arith.extui %0 : i1 to i32
    %c0_i32_0 = arith.constant 0 : i32
    %2 = arith.cmpi ne, %1, %c0_i32_0 : i32
    scf.if %2 {
      %cst_21 = arith.constant 0.000000e+00 : f32
      %30 = vector.broadcast %cst_21 : f32 to vector<20x32xf32>
      %c0_22 = arith.constant 0 : index
      %c0_23 = arith.constant 0 : index
      %31 = vector.load %arg8[%c0_22, %c0_23] : memref<20x32xf32, #tpu.memory_space<vmem>>, vector<20x32xf32>
      tpu.vector_store %arg8[%c0_22, %c0_23], %30 {strides = array<i32>} : memref<20x32xf32, #tpu.memory_space<vmem>>, vector<20x32xf32>,
    } else {
    }
    %c0 = arith.constant 0 : index
    %c0_1 = arith.constant 0 : index
    %c0_2 = arith.constant 0 : index
    %3 = vector.load %arg4[%c0, %c0_1, %c0_2] : memref<1x32x64xbf16, #tpu.memory_space<vmem>>, vector<1x32x64xbf16>
    %4 = vector.shape_cast %3 : vector<1x32x64xbf16> to vector<32x64xbf16>
    %c0_3 = arith.constant 0 : index
    %c0_4 = arith.constant 0 : index
    %5 = vector.load %arg8[%c0_3, %c0_4] : memref<20x32xf32, #tpu.memory_space<vmem>>, vector<20x32xf32>
    %c0_5 = arith.constant 0 : index
    %c0_6 = arith.constant 0 : index
    %c0_7 = arith.constant 0 : index
    %6 = vector.load %arg5[%c0_5, %c0_6, %c0_7] : memref<4x64x32xbf16, #tpu.memory_space<vmem>>, vector<1x64x32xbf16>
    %7 = vector.shape_cast %6 : vector<1x64x32xbf16> to vector<64x32xbf16>
    %cst = arith.constant dense<0.000000e+00> : vector<32x32xf32>
    %8 = tpu.matmul %4, %7, %cst {dimension_numbers = #tpu.dot_dimension_numbers<[1], [0], [0], [1], [0, 0, 1, 1], [], []>} : vector<32x64xbf16>, vector<64x32xbf16>, vector<32x32xf32> -> vector<32x32xf32>
    %9 = vector.extract_strided_slice %8 {offsets = [0, 0], sizes = [20, 32], strides = [1, 1]} : vector<32x32xf32> to vector<20x32xf32>
    %10 = arith.addf %5, %9 : vector<20x32xf32>
    %c1 = arith.constant 1 : index
    %c0_8 = arith.constant 0 : index
    %c0_9 = arith.constant 0 : index
    %11 = vector.load %arg5[%c1, %c0_8, %c0_9] : memref<4x64x32xbf16, #tpu.memory_space<vmem>>, vector<1x64x32xbf16>
    %12 = vector.shape_cast %11 : vector<1x64x32xbf16> to vector<64x32xbf16>
    %cst_10 = arith.constant dense<0.000000e+00> : vector<32x32xf32>
    %13 = tpu.matmul %4, %12, %cst_10 {dimension_numbers = #tpu.dot_dimension_numbers<[1], [0], [0], [1], [0, 0, 1, 1], [], []>} : vector<32x64xbf16>, vector<64x32xbf16>, vector<32x32xf32> -> vector<32x32xf32>
    %14 = vector.extract_strided_slice %13 {offsets = [1, 0], sizes = [20, 32], strides = [1, 1]} : vector<32x32xf32> to vector<20x32xf32>
    %15 = arith.addf %10, %14 : vector<20x32xf32>
    %c2 = arith.constant 2 : index
    %c0_11 = arith.constant 0 : index
    %c0_12 = arith.constant 0 : index
    %16 = vector.load %arg5[%c2, %c0_11, %c0_12] : memref<4x64x32xbf16, #tpu.memory_space<vmem>>, vector<1x64x32xbf16>
    %17 = vector.shape_cast %16 : vector<1x64x32xbf16> to vector<64x32xbf16>
    %cst_13 = arith.constant dense<0.000000e+00> : vector<32x32xf32>
    %18 = tpu.matmul %4, %17, %cst_13 {dimension_numbers = #tpu.dot_dimension_numbers<[1], [0], [0], [1], [0, 0, 1, 1], [], []>} : vector<32x64xbf16>, vector<64x32xbf16>, vector<32x32xf32> -> vector<32x32xf32>
    %19 = vector.extract_strided_slice %18 {offsets = [5, 0], sizes = [20, 32], strides = [1, 1]} : vector<32x32xf32> to vector<20x32xf32>
    %20 = arith.addf %15, %19 : vector<20x32xf32>
    %c3 = arith.constant 3 : index
    %c0_14 = arith.constant 0 : index
    %c0_15 = arith.constant 0 : index
    %21 = vector.load %arg5[%c3, %c0_14, %c0_15] : memref<4x64x32xbf16, #tpu.memory_space<vmem>>, vector<1x64x32xbf16>
    %22 = vector.shape_cast %21 : vector<1x64x32xbf16> to vector<64x32xbf16>
    %cst_16 = arith.constant dense<0.000000e+00> : vector<32x32xf32>
    %23 = tpu.matmul %4, %22, %cst_16 {dimension_numbers = #tpu.dot_dimension_numbers<[1], [0], [0], [1], [0, 0, 1, 1], [], []>} : vector<32x64xbf16>, vector<64x32xbf16>, vector<32x32xf32> -> vector<32x32xf32>
    %24 = vector.extract_strided_slice %23 {offsets = [6, 0], sizes = [20, 32], strides = [1, 1]} : vector<32x32xf32> to vector<20x32xf32>
    %25 = arith.addf %20, %24 : vector<20x32xf32>
    %c0_17 = arith.constant 0 : index
    %c0_18 = arith.constant 0 : index
    %26 = vector.load %arg8[%c0_17, %c0_18] : memref<20x32xf32, #tpu.memory_space<vmem>>, vector<20x32xf32>
    tpu.vector_store %arg8[%c0_17, %c0_18], %25 {strides = array<i32>} : memref<20x32xf32, #tpu.memory_space<vmem>>, vector<20x32xf32>,
    %c0_i32_19 = arith.constant 0 : i32
    %27 = arith.cmpi eq, %arg2, %c0_i32_19 : i32
    %28 = arith.extui %27 : i1 to i32
    %c0_i32_20 = arith.constant 0 : i32
    %29 = arith.cmpi ne, %28, %c0_i32_20 : i32
    scf.if %29 {
      %c0_21 = arith.constant 0 : index
      %c0_22 = arith.constant 0 : index
      %30 = vector.load %arg6[%c0_21, %c0_22] : memref<1x32xf32, #tpu.memory_space<vmem>>, vector<1x32xf32>
      %31 = vector.broadcast %30 : vector<1x32xf32> to vector<20x32xf32>
      %32 = arith.addf %25, %31 : vector<20x32xf32>
      %c0_23 = arith.constant 0 : index
      %c0_24 = arith.constant 0 : index
      %33 = vector.load %arg3[%c0_23, %c0_24] : memref<20x1xf32, #tpu.memory_space<vmem>>, vector<20x1xf32>
      %34 = vector.broadcast %33 : vector<20x1xf32> to vector<20x32xf32>
      %35 = arith.mulf %32, %34 : vector<20x32xf32>
      %cst_25 = arith.constant dense<0.000000e+00> : vector<32xf32>
      %36 = vector.multi_reduction <add>, %35, %cst_25 [0] : vector<20x32xf32> to vector<32xf32>
      %37 = vector.shape_cast %36 : vector<32xf32> to vector<1x32xf32>
      %cst_26 = arith.constant 6.250000e-02 : f32
      %38 = vector.broadcast %cst_26 : f32 to vector<1x32xf32>
      %39 = arith.mulf %37, %38 : vector<1x32xf32>
      %40 = vector.broadcast %39 : vector<1x32xf32> to vector<20x32xf32>
      %41 = arith.subf %32, %40 : vector<20x32xf32>
      %42 = arith.mulf %41, %41 : vector<20x32xf32>
      %43 = vector.broadcast %33 : vector<20x1xf32> to vector<20x32xf32>
      %44 = arith.mulf %42, %43 : vector<20x32xf32>
      %cst_27 = arith.constant dense<0.000000e+00> : vector<32xf32>
      %45 = vector.multi_reduction <add>, %44, %cst_27 [0] : vector<20x32xf32> to vector<32xf32>
      %46 = vector.shape_cast %45 : vector<32xf32> to vector<1x32xf32>
      %cst_28 = arith.constant 6.250000e-02 : f32
      %47 = vector.broadcast %cst_28 : f32 to vector<1x32xf32>
      %48 = arith.mulf %46, %47 : vector<1x32xf32>
      %cst_29 = arith.constant 9.99999974E-6 : f32
      %49 = vector.broadcast %cst_29 : f32 to vector<1x32xf32>
      %50 = arith.addf %48, %49 : vector<1x32xf32>
      %51 = math.rsqrt %50 : vector<1x32xf32>
      %52 = vector.broadcast %51 : vector<1x32xf32> to vector<20x32xf32>
      %53 = arith.mulf %41, %52 : vector<20x32xf32>
      %cst_30 = arith.constant 0.000000e+00 : f32
      %54 = vector.broadcast %cst_30 : f32 to vector<20x32xf32>
      %55 = arith.cmpf oge, %53, %54 : vector<20x32xf32>
      %cst_31 = arith.constant 2.000000e-01 : f32
      %56 = vector.broadcast %cst_31 : f32 to vector<20x32xf32>
      %57 = arith.mulf %56, %53 : vector<20x32xf32>
      %58 = arith.select %55, %53, %57 : vector<20x32xi1>, vector<20x32xf32>
      %59 = arith.truncf %58 : vector<20x32xf32> to vector<20x32xbf16>
      %c0_32 = arith.constant 0 : index
      %c0_33 = arith.constant 0 : index
      %c0_34 = arith.constant 0 : index
      %60 = vector.load %arg7[%c0_32, %c0_33, %c0_34] : memref<1x20x32xbf16, #tpu.memory_space<vmem>>, vector<1x20x32xbf16>
      %61 = vector.shape_cast %60 : vector<1x20x32xbf16> to vector<20x32xbf16>
      %62 = vector.shape_cast %59 : vector<20x32xbf16> to vector<1x20x32xbf16>
      tpu.vector_store %arg7[%c0_32, %c0_33, %c0_34], %62 {strides = array<i32>} : memref<1x20x32xbf16, #tpu.memory_space<vmem>>, vector<1x20x32xbf16>,
    } else {
    }
    return
  }
  func.func @transform_0(%arg0: i32, %arg1: i32, %arg2: i32) -> (i32, i32) {
    %c0_i32 = arith.constant 0 : i32
    %c0_i32_0 = arith.constant 0 : i32
    %c0_i32_1 = arith.constant 0 : i32
    return %c0_i32, %c0_i32_0 : i32, i32
  }
  func.func @transform_1(%arg0: i32, %arg1: i32, %arg2: i32) -> (i32, i32, i32) {
    %c0_i32 = arith.constant 0 : i32
    %c0_i32_0 = arith.constant 0 : i32
    return %arg1, %c0_i32, %arg2 : i32, i32, i32
  }
  func.func @transform_2(%arg0: i32, %arg1: i32, %arg2: i32) -> (i32, i32, i32) {
    %c0_i32 = arith.constant 0 : i32
    %c0_i32_0 = arith.constant 0 : i32
    return %c0_i32, %arg2, %arg0 : i32, i32, i32
  }
  func.func @transform_3(%arg0: i32, %arg1: i32, %arg2: i32) -> (i32, i32) {
    %c0_i32 = arith.constant 0 : i32
    %c0_i32_0 = arith.constant 0 : i32
    return %c0_i32, %arg0 : i32, i32
  }
  func.func @transform_4(%arg0: i32, %arg1: i32, %arg2: i32) -> (i32, i32, i32) {
    %c0_i32 = arith.constant 0 : i32
    %c0_i32_0 = arith.constant 0 : i32
    return %arg1, %c0_i32, %arg0 : i32, i32, i32
  }
}

module attributes {stable_mosaic.version = 11 : i64} {
  func.func @_head_kernel(%arg0: i32, %arg1: memref<512x2xbf16, #tpu.memory_space<vmem>>, %arg2: memref<1x512xbf16, #tpu.memory_space<vmem>>, %arg3: memref<1x1xf32, #tpu.memory_space<vmem>>, %arg4: memref<1x2xf32, #tpu.memory_space<vmem>>) attributes {dimension_semantics = [#tpu.dimension_semantics<parallel>], iteration_bounds = array<i64: 1>, scalar_prefetch = 0 : i64, scratch_operands = 0 : i64, tpu.core_type = #tpu.core_type<tc>, window_params = [{transform_indices = @transform_0, window_bounds = array<i64: 512, 2>}, {pipeline_mode = #tpu.pipeline_mode<synchronous>, transform_indices = @transform_1, window_bounds = array<i64: 1, 512>}, {pipeline_mode = #tpu.pipeline_mode<synchronous>, transform_indices = @transform_2, window_bounds = array<i64: 1, 1>}, {transform_indices = @transform_3, window_bounds = array<i64: 1, 2>}]} {
    %c0 = arith.constant 0 : index
    %c0_0 = arith.constant 0 : index
    %0 = vector.load %arg2[%c0, %c0_0] : memref<1x512xbf16, #tpu.memory_space<vmem>>, vector<1x512xbf16>
    %c0_1 = arith.constant 0 : index
    %c0_2 = arith.constant 0 : index
    %1 = vector.load %arg1[%c0_1, %c0_2] : memref<512x2xbf16, #tpu.memory_space<vmem>>, vector<512x2xbf16>
    %cst = arith.constant dense<0.000000e+00> : vector<1x2xf32>
    %2 = tpu.matmul %0, %1, %cst {dimension_numbers = #tpu.dot_dimension_numbers<[1], [0], [0], [1], [0, 0, 1, 1], [], []>} : vector<1x512xbf16>, vector<512x2xbf16>, vector<1x2xf32> -> vector<1x2xf32>
    %c0_3 = arith.constant 0 : index
    %c0_4 = arith.constant 0 : index
    %3 = vector.load %arg3[%c0_3, %c0_4] : memref<1x1xf32, #tpu.memory_space<vmem>>, vector<1x1xf32>
    %4 = vector.broadcast %3 : vector<1x1xf32> to vector<1x2xf32>
    %5 = arith.addf %2, %4 : vector<1x2xf32>
    %c0_5 = arith.constant 0 : index
    %c0_6 = arith.constant 0 : index
    %6 = vector.load %arg4[%c0_5, %c0_6] : memref<1x2xf32, #tpu.memory_space<vmem>>, vector<1x2xf32>
    tpu.vector_store %arg4[%c0_5, %c0_6], %5 {strides = array<i32>} : memref<1x2xf32, #tpu.memory_space<vmem>>, vector<1x2xf32>,
    return
  }
  func.func @transform_0(%arg0: i32) -> (i32, i32) {
    %c0_i32 = arith.constant 0 : i32
    %c0_i32_0 = arith.constant 0 : i32
    return %c0_i32, %arg0 : i32, i32
  }
  func.func @transform_1(%arg0: i32) -> (i32, i32) {
    %c0_i32 = arith.constant 0 : i32
    %c0_i32_0 = arith.constant 0 : i32
    %c0_i32_1 = arith.constant 0 : i32
    return %c0_i32, %c0_i32_0 : i32, i32
  }
  func.func @transform_2(%arg0: i32) -> (i32, i32) {
    %c0_i32 = arith.constant 0 : i32
    %c0_i32_0 = arith.constant 0 : i32
    %c0_i32_1 = arith.constant 0 : i32
    return %c0_i32, %c0_i32_0 : i32, i32
  }
  func.func @transform_3(%arg0: i32) -> (i32, i32) {
    %c0_i32 = arith.constant 0 : i32
    %c0_i32_0 = arith.constant 0 : i32
    return %c0_i32, %arg0 : i32, i32
  }
}

</mosaic_0001>

<llo_original>
// kernel: discriminator_forward.4
$region0: #{discriminator_forward.4}
  #allocation0 [shape = 'u32[]', space=smem, size = 0x4, offset = 0x4, fixed_abs, tag = 'smem constant byte address 0x4 - core index']
  #allocation1 [shape = 'u32[72,128]{1,0:T(1,128)}', space=vmem, size = 0x9000, scoped, tag = 'internal scratch']
  #allocation2 [shape = 'f32[272,8]{1,0:T(8,128)}', space=vmem, size = 0x22000, scoped, tag = 'scratch operand']
  %s0 = inlined_call_operand.vmem [shape: f32[272,1], index: 0, kind: input, shape index: {}]
  %s1 = inlined_call_operand.vmem [shape: bf16[2,296,16], index: 1, kind: input, shape index: {}]
  %s2 = inlined_call_operand.vmem [shape: bf16[4,16,8], index: 2, kind: input, shape index: {}]
  %s3 = inlined_call_operand.vmem [shape: f32[1,8], index: 3, kind: input, shape index: {}]
  %s4 = inlined_call_operand.vmem [shape: bf16[2,272,8], index: 4, kind: output, shape index: {}]
  %s5 = sld [smem:[#allocation0]]
  $region57: #{discriminator_forward.4} parent=0
    _
  %s7 = ssub.s32 1, %s5
  %s8 = scalar_select 0, %s7, %s5
  loop: start=0, step=1, limit=4
  $region2: #{discriminator_forward.4} parent=0 // loop_pre_header
    _
  $region3: #{discriminator_forward.4} parent=0 // loop_header
    %s10 = sphi 0, %s14
    %p11 = scmp.ge.s32.totalorder %s10, 4
    %s17 = sphi 0, %s36
    %s18 = sphi 0, %s32
    %s19 = sphi 0, %s28
    %s20 = sphi 0, %s17
    %s21 = sphi 0, %s18
    %s22 = sphi 0, %s19
    %s23 = sphi 0, %s20
    %s24 = sphi 0, %s21
    %s25 = sphi 0, %s22
    %s37 = sphi 0, %s37
    %s39 = sphi 0, %s37
    %s40 = sphi 0, %s39
    %s54 = sphi 0, %s40
    %s62 = sphi 0, %s64
    %s65 = sphi 0, %s62
    %s66 = sphi 0, %s65
    %s82 = sphi 0, %s66
    %s90 = sphi 0, %s92
    %s93 = sphi 0, %s90
    %s94 = sphi 0, %s93
    %s110 = sphi 0, %s94
    %s116 = sphi 0, %s118
    %s119 = sphi 0, %s116
    %s120 = sphi 0, %s119
    %s136 = sphi 0, %s120
    %s144 = sphi 0, %s146
    %s147 = sphi 0, %s144
    %s148 = sphi 0, %s147
    %s164 = sphi 0, %s148
  $region4: #{discriminator_forward.4} parent=0 // loop_header_branch
    %13 = sbr.rel (%p11) target = $region8
  $region5: #{discriminator_forward.4} parent=0 // loop_body
    %s15 = ssub.s32 %s10, 1
    %s16 = ssub.s32 %s10, 2
    %s26 = sadd.s32 1, %s19
    %p27 = scmp.ge.s32.totalorder %s26, 1
    %s28 = scalar_select %p27, 0, %s26
    %s29 = sadd.s32 1, %s18
    %s30 = scalar_select %p27, %s29, %s18
    %p31 = scmp.ge.s32.totalorder %s30, 2
    %s32 = scalar_select %p31, 0, %s30
    %s33 = sadd.s32 1, %s17
    %s34 = scalar_select %p31, %s33, %s17
    %p35 = scmp.ge.s32.totalorder %s34, 1
    %s36 = scalar_select %p35, 0, %s34
    %s38 = sadd.s32 %s37, 1
    %p41 = scmp.eq.s32.totalorder %s10, 1
    %p42 = scmp.ne.s32.totalorder %s37, %s39
    %p43 = scmp.eq.s32.totalorder %s10, 0
    %p44 = por %p42, %p43
    %p45 = scmp.ne.s32.totalorder %s37, %s39
    %p46 = scmp.eq.s32.totalorder %s15, 1
    %p47 = por %p45, %p46
    %p48 = scmp.ne.s32.totalorder %s39, %s40
    %p49 = scmp.eq.s32.totalorder %s15, 0
    %p50 = por %p48, %p49
    %p51 = scmp.ne.s32.totalorder %s39, %s40
    %p52 = scmp.eq.s32.totalorder %s16, 1
    %p53 = por %p51, %p52
    %p55 = scmp.ne.s32.totalorder %s40, %s54
    %p56 = scmp.eq.s32.totalorder %s16, 0
    %p57 = por %p55, %p56
    %s58 = ssub.s32 %s18, %s32
    %s59 = ssub.s32 %s19, %s28
    %s60 = sor.u32 %s58, %s59
    %p61 = scmp.eq.s32.totalorder %s60, 0
    %s63 = sadd.s32 %s62, 1
    %s64 = scalar_select %p61, %s62, %s63
    %p67 = pneg %p61
    %p68 = scmp.eq.s32.totalorder %s10, 1
    %p69 = por %p67, %p68
    %p70 = scmp.ne.s32.totalorder %s62, %s65
    %p71 = scmp.eq.s32.totalorder %s10, 0
    %p72 = por %p70, %p71
    %p73 = scmp.ne.s32.totalorder %s62, %s65
    %p74 = scmp.eq.s32.totalorder %s15, 1
    %p75 = por %p73, %p74
    %p76 = scmp.ne.s32.totalorder %s65, %s66
    %p77 = scmp.eq.s32.totalorder %s15, 0
    %p78 = por %p76, %p77
    %p79 = scmp.ne.s32.totalorder %s65, %s66
    %p80 = scmp.eq.s32.totalorder %s16, 1
    %p81 = por %p79, %p80
    %p83 = scmp.ne.s32.totalorder %s66, %s82
    %p84 = scmp.eq.s32.totalorder %s16, 0
    %p85 = por %p83, %p84
    %s86 = ssub.s32 %s19, %s28
    %s87 = ssub.s32 %s17, %s36
    %s88 = sor.u32 %s86, %s87
    %p89 = scmp.eq.s32.totalorder %s88, 0
    %s91 = sadd.s32 %s90, 1
    %s92 = scalar_select %p89, %s90, %s91
    %p95 = pneg %p89
    %p96 = scmp.eq.s32.totalorder %s10, 1
    %p97 = por %p95, %p96
    %p98 = scmp.ne.s32.totalorder %s90, %s93
    %p99 = scmp.eq.s32.totalorder %s10, 0
    %p100 = por %p98, %p99
    %p101 = scmp.ne.s32.totalorder %s90, %s93
    %p102 = scmp.eq.s32.totalorder %s15, 1
    %p103 = por %p101, %p102
    %p104 = scmp.ne.s32.totalorder %s93, %s94
    %p105 = scmp.eq.s32.totalorder %s15, 0
    %p106 = por %p104, %p105
    %p107 = scmp.ne.s32.totalorder %s93, %s94
    %p108 = scmp.eq.s32.totalorder %s16, 1
    %p109 = por %p107, %p108
    %p111 = scmp.ne.s32.totalorder %s94, %s110
    %p112 = scmp.eq.s32.totalorder %s16, 0
    %p113 = por %p111, %p112
    %s114 = ssub.s32 %s17, %s36
    %p115 = scmp.eq.s32.totalorder %s114, 0
    %s117 = sadd.s32 %s116, 1
    %s118 = scalar_select %p115, %s116, %s117
    %p121 = pneg %p115
    %p122 = scmp.eq.s32.totalorder %s10, 1
    %p123 = por %p121, %p122
    %p124 = scmp.ne.s32.totalorder %s116, %s119
    %p125 = scmp.eq.s32.totalorder %s10, 0
    %p126 = por %p124, %p125
    %p127 = scmp.ne.s32.totalorder %s116, %s119
    %p128 = scmp.eq.s32.totalorder %s15, 1
    %p129 = por %p127, %p128
    %p130 = scmp.ne.s32.totalorder %s119, %s120
    %p131 = scmp.eq.s32.totalorder %s15, 0
    %p132 = por %p130, %p131
    %p133 = scmp.ne.s32.totalorder %s119, %s120
    %p134 = scmp.eq.s32.totalorder %s16, 1
    %p135 = por %p133, %p134
    %p137 = scmp.ne.s32.totalorder %s120, %s136
    %p138 = scmp.eq.s32.totalorder %s16, 0
    %p139 = por %p137, %p138
    %s140 = ssub.s32 %s18, %s32
    %s141 = ssub.s32 %s17, %s36
    %s142 = sor.u32 %s140, %s141
    %p143 = scmp.eq.s32.totalorder %s142, 0
    %s145 = sadd.s32 %s144, 1
    %s146 = scalar_select %p143, %s144, %s145
    %p149 = pneg %p143
    %p150 = scmp.eq.s32.totalorder %s10, 1
    %p151 = por %p149, %p150
    %p152 = scmp.ne.s32.totalorder %s144, %s147
    %p153 = scmp.eq.s32.totalorder %s10, 0
    %p154 = por %p152, %p153
    %p155 = scmp.ne.s32.totalorder %s144, %s147
    %p156 = scmp.eq.s32.totalorder %s15, 1
    %p157 = por %p155, %p156
    %p158 = scmp.ne.s32.totalorder %s147, %s148
    %p159 = scmp.eq.s32.totalorder %s15, 0
    %p160 = por %p158, %p159
    %p161 = scmp.ne.s32.totalorder %s147, %s148
    %p162 = scmp.eq.s32.totalorder %s16, 1
    %p163 = por %p161, %p162
    %p165 = scmp.ne.s32.totalorder %s148, %s164
    %p166 = scmp.eq.s32.totalorder %s16, 0
    %p167 = por %p165, %p166
    %p168 = scmp.le.s32.totalorder 1, %s10
    %p169 = scmp.lt.s32.totalorder %s10, 3
    %p170 = pnand %p168, %p169
    %p171 = pneg %p170
    // Predicated region
    $region9: #{discriminator_forward.4} parent=5 // pred_check
      _
    $region10: #{discriminator_forward.4} parent=5 // pred_check_branch
      %173 = sbr.rel (%p170) target = $region12
    $region11: #{discriminator_forward.4} parent=5 // pred_region
      %s174 = ssub.s32 %s10, 1
      // Predicated region
      $region13: #{discriminator_forward.4} parent=11 // pred_check
        %p175 = pneg %p50
      $region14: #{discriminator_forward.4} parent=11 // pred_check_branch
        %177 = sbr.rel (%p175) target = $region16
      $region15: #{discriminator_forward.4} parent=11 // pred_region
        _
      $region16: #{discriminator_forward.4} parent=11 // pred_fallthru
        _
      // Predicated region
      $region17: #{discriminator_forward.4} parent=11 // pred_check
        %p178 = pneg %p106
      $region18: #{discriminator_forward.4} parent=11 // pred_check_branch
        %180 = sbr.rel (%p178) target = $region20
      $region19: #{discriminator_forward.4} parent=11 // pred_region
        %s181 = smul.u32 2, %s22
        %p182 = scmp.lt.s32.totalorder %s181, 1
        %s183 = scalar_select %p182, %s181, 1
        %p184 = scmp.lt.s32.totalorder %s20, 0
        %s185 = scalar_select %p184, %s20, 0
        %s186 = sadd.s32 %s185, %s183
        %s187 = smul.addr %s186, 4
        %s188 = scalar_lea.vmem %s2, %s187
        %s189 = smul.u32 2, %s22
      $region20: #{discriminator_forward.4} parent=11 // pred_fallthru
        _
      // Predicated region
      $region21: #{discriminator_forward.4} parent=11 // pred_check
        %p190 = pneg %p132
      $region22: #{discriminator_forward.4} parent=11 // pred_check_branch
        %192 = sbr.rel (%p190) target = $region24
      $region23: #{discriminator_forward.4} parent=11 // pred_region
        %p193 = scmp.lt.s32.totalorder %s20, 0
        %s194 = scalar_select %p193, %s20, 0
        %s195 = scalar_lea.vmem %s3, %s194
      $region24: #{discriminator_forward.4} parent=11 // pred_fallthru
        _
    $region12: #{discriminator_forward.4} parent=5 // pred_fallthru
      _
    %p196 = scmp.lt.s32.totalorder %s10, 2
    // Predicated region
    $region25: #{discriminator_forward.4} parent=5 // pred_check
      %p197 = pneg %p196
    $region26: #{discriminator_forward.4} parent=5 // pred_check_branch
      %199 = sbr.rel (%p197) target = $region28
    $region27: #{discriminator_forward.4} parent=5 // pred_region
      // Predicated region
      $region29: #{discriminator_forward.4} parent=27 // pred_check
        %p200 = pneg %p72
      $region30: #{discriminator_forward.4} parent=27 // pred_check_branch
        %202 = sbr.rel (%p200) target = $region32
      $region31: #{discriminator_forward.4} parent=27 // pred_region
        %p203 = scmp.lt.s32.totalorder %s18, 1
        %s204 = scalar_select %p203, %s18, 1
        %p205 = scmp.lt.s32.totalorder %s19, 0
        %s206 = scalar_select %p205, %s19, 0
        %s207 = smul.addr %s204, 37
        %s208 = sadd.s32 %s206, %s207
        %s209 = smul.addr %s208, 4
        %s210 = scalar_lea.vmem %s1, %s209
      $region32: #{discriminator_forward.4} parent=27 // pred_fallthru
        _
    $region28: #{discriminator_forward.4} parent=5 // pred_fallthru
      _
    %p211 = scmp.le.s32.totalorder 1, %s10
    %p212 = scmp.lt.s32.totalorder %s10, 3
    %p213 = pnand %p211, %p212
    %p214 = pneg %p213
    // Predicated region
    $region33: #{discriminator_forward.4} parent=5 // pred_check
      _
    $region34: #{discriminator_forward.4} parent=5 // pred_check_branch
      %216 = sbr.rel (%p213) target = $region36
    $region35: #{discriminator_forward.4} parent=5 // pred_region
      %s217 = ssub.s32 %s10, 1
      %p218 = pneg %p50
      %p219 = pneg %p47
      %p220 = scmp.lt.s32.totalorder %s21, 1
      %s221 = scalar_select %p220, %s21, 1
      %p222 = scmp.lt.s32.totalorder %s22, 0
      %s223 = scalar_select %p222, %s22, 0
      %s224 = smul.addr %s221, 37
      %s225 = sadd.s32 %s223, %s224
      %s226 = smul.addr %s225, 4
      %s227 = scalar_lea.vmem %s1, %s226
      %p228 = pneg %p78
      %p229 = pneg %p75
      %s230 = smul.u32 2, %s22
      %p231 = scmp.lt.s32.totalorder %s230, 1
      %s232 = scalar_select %p231, %s230, 1
      %p233 = scmp.lt.s32.totalorder %s20, 0
      %s234 = scalar_select %p233, %s20, 0
      %s235 = sadd.s32 %s234, %s232
      %s236 = smul.addr %s235, 4
      %s237 = scalar_lea.vmem %s2, %s236
      %p238 = pneg %p106
      %p239 = pneg %p103
      %p240 = scmp.lt.s32.totalorder %s20, 0
      %s241 = scalar_select %p240, %s20, 0
      %s242 = scalar_lea.vmem %s3, %s241
      %p243 = pneg %p132
      %p244 = pneg %p129
      %p245 = pneg %p160
      %p246 = pneg %p157
      %p247 = scmp.lt.s32.totalorder %s21, 1
      %s248 = scalar_select %p247, %s21, 1
      %p249 = scmp.lt.s32.totalorder %s20, 0
      %s250 = scalar_select %p249, %s20, 0
      %s251 = smul.addr %s248, 34
      %s252 = sadd.s32 %s250, %s251
      %s253 = smul.addr %s252, 4
      %s254 = scalar_lea.vmem %s4, %s253
      %p255 = scmp.lt.s32.totalorder %s21, 1
      %s256 = scalar_select %p255, %s21, 1
      %p257 = scmp.lt.s32.totalorder %s22, 0
      %s258 = scalar_select %p257, %s22, 0
      %s259 = smul.addr %s256, 37
      %s260 = sadd.s32 %s258, %s259
      %s261 = smul.addr %s260, 4
      %s262 = scalar_lea.vmem %s1, %s261
      %s263 = smul.u32 2, %s22
      %p264 = scmp.lt.s32.totalorder %s263, 1
      %s265 = scalar_select %p264, %s263, 1
      %p266 = scmp.lt.s32.totalorder %s20, 0
      %s267 = scalar_select %p266, %s20, 0
      %s268 = sadd.s32 %s267, %s265
      %s269 = smul.addr %s268, 4
      %s270 = scalar_lea.vmem %s2, %s269
      %s271 = smul.u32 2, %s22
      %p272 = scmp.lt.s32.totalorder %s20, 0
      %s273 = scalar_select %p272, %s20, 0
      %s274 = scalar_lea.vmem %s3, %s273
      %p275 = scmp.lt.s32.totalorder %s21, 1
      %s276 = scalar_select %p275, %s21, 1
      %p277 = scmp.lt.s32.totalorder %s20, 0
      %s278 = scalar_select %p277, %s20, 0
      %s279 = smul.addr %s276, 34
      %s280 = sadd.s32 %s278, %s279
      %s281 = smul.addr %s280, 4
      %s282 = scalar_lea.vmem %s4, %s281
      %p284 = scmp.eq.s32.totalorder %s22, 0
      // Predicated region
      $region37: #{discriminator_forward.4} parent=35 // pred_check
        %p285 = pneg %p284
      $region38: #{discriminator_forward.4} parent=35 // pred_check_branch
        %287 = sbr.rel (%p285) target = $region40
      $region39: #{discriminator_forward.4} parent=35 // pred_region
        %vm288 = vcmask 64512
        %289 = vst.msk [vmem:[#allocation2] sm:$0xff] %vm288, 0.0
        %290 = vst.msk [vmem:[#allocation2 + $0x8] sm:$0xff] %vm288, 0.0
        %291 = vst.msk [vmem:[#allocation2 + $0x10] sm:$0xff] %vm288, 0.0
        %292 = vst.msk [vmem:[#allocation2 + $0x18] sm:$0xff] %vm288, 0.0
        %293 = vst.msk [vmem:[#allocation2 + $0x20] sm:$0xff] %vm288, 0.0
        %294 = vst.msk [vmem:[#allocation2 + $0x28] sm:$0xff] %vm288, 0.0
        %295 = vst.msk [vmem:[#allocation2 + $0x30] sm:$0xff] %vm288, 0.0
        %296 = vst.msk [vmem:[#allocation2 + $0x38] sm:$0xff] %vm288, 0.0
        %297 = vst.msk [vmem:[#allocation2 + $0x40] sm:$0xff] %vm288, 0.0
        %298 = vst.msk [vmem:[#allocation2 + $0x48] sm:$0xff] %vm288, 0.0
        %299 = vst.msk [vmem:[#allocation2 + $0x50] sm:$0xff] %vm288, 0.0
        %300 = vst.msk [vmem:[#allocation2 + $0x58] sm:$0xff] %vm288, 0.0
        %301 = vst.msk [vmem:[#allocation2 + $0x60] sm:$0xff] %vm288, 0.0
        %302 = vst.msk [vmem:[#allocation2 + $0x68] sm:$0xff] %vm288, 0.0
        %303 = vst.msk [vmem:[#allocation2 + $0x70] sm:$0xff] %vm288, 0.0
        %304 = vst.msk [vmem:[#allocation2 + $0x78] sm:$0xff] %vm288, 0.0
        %305 = vst.msk [vmem:[#allocation2 + $0x80] sm:$0xff] %vm288, 0.0
        %306 = vst.msk [vmem:[#allocation2 + $0x88] sm:$0xff] %vm288, 0.0
        %307 = vst.msk [vmem:[#allocation2 + $0x90] sm:$0xff] %vm288, 0.0
        %308 = vst.msk [vmem:[#allocation2 + $0x98] sm:$0xff] %vm288, 0.0
        %309 = vst.msk [vmem:[#allocation2 + $0xa0] sm:$0xff] %vm288, 0.0
        %310 = vst.msk [vmem:[#allocation2 + $0xa8] sm:$0xff] %vm288, 0.0
        %311 = vst.msk [vmem:[#allocation2 + $0xb0] sm:$0xff] %vm288, 0.0
        %312 = vst.msk [vmem:[#allocation2 + $0xb8] sm:$0xff] %vm288, 0.0
        %313 = vst.msk [vmem:[#allocation2 + $0xc0] sm:$0xff] %vm288, 0.0
        %314 = vst.msk [vmem:[#allocation2 + $0xc8] sm:$0xff] %vm288, 0.0
        %315 = vst.msk [vmem:[#allocation2 + $0xd0] sm:$0xff] %vm288, 0.0
        %316 = vst.msk [vmem:[#allocation2 + $0xd8] sm:$0xff] %vm288, 0.0
        %317 = vst.msk [vmem:[#allocation2 + $0xe0] sm:$0xff] %vm288, 0.0
        %318 = vst.msk [vmem:[#allocation2 + $0xe8] sm:$0xff] %vm288, 0.0
        %319 = vst.msk [vmem:[#allocation2 + $0xf0] sm:$0xff] %vm288, 0.0
        %320 = vst.msk [vmem:[#allocation2 + $0xf8] sm:$0xff] %vm288, 0.0
        %321 = vst.msk [vmem:[#allocation2 + $0x100] sm:$0xff] %vm288, 0.0
        %322 = vst.msk [vmem:[#allocation2 + $0x108] sm:$0xff] %vm288, 0.0
      $region40: #{discriminator_forward.4} parent=35 // pred_fallthru
        _
      %v323 = vld [vmem:[%s262] sm:$0xf]
      %v324 = vld [vmem:[%s262 + $0x4] sm:$0xf]
      %v325 = vld [vmem:[%s262 + $0x8] sm:$0xf]
      %v326 = vld [vmem:[%s262 + $0xc] sm:$0xf]
      %v327 = vld [vmem:[%s262 + $0x10] sm:$0xf]
      %v328 = vld [vmem:[%s262 + $0x14] sm:$0xf]
      %v329 = vld [vmem:[%s262 + $0x18] sm:$0xf]
      %v330 = vld [vmem:[%s262 + $0x1c] sm:$0xf]
      %v331 = vld [vmem:[%s262 + $0x20] sm:$0xf]
      %v332 = vld [vmem:[%s262 + $0x24] sm:$0xf]
      %v333 = vld [vmem:[%s262 + $0x28] sm:$0xf]
      %v334 = vld [vmem:[%s262 + $0x2c] sm:$0xf]
      %v335 = vld [vmem:[%s262 + $0x30] sm:$0xf]
      %v336 = vld [vmem:[%s262 + $0x34] sm:$0xf]
      %v337 = vld [vmem:[%s262 + $0x38] sm:$0xf]
      %v338 = vld [vmem:[%s262 + $0x3c] sm:$0xf]
      %v339 = vld [vmem:[%s262 + $0x40] sm:$0xf]
      %v340 = vld [vmem:[%s262 + $0x44] sm:$0xf]
      %v341 = vld [vmem:[%s262 + $0x48] sm:$0xf]
      %v342 = vld [vmem:[%s262 + $0x4c] sm:$0xf]
      %v343 = vld [vmem:[%s262 + $0x50] sm:$0xf]
      %v344 = vld [vmem:[%s262 + $0x54] sm:$0xf]
      %v345 = vld [vmem:[%s262 + $0x58] sm:$0xf]
      %v346 = vld [vmem:[%s262 + $0x5c] sm:$0xf]
      %v347 = vld [vmem:[%s262 + $0x60] sm:$0xf]
      %v348 = vld [vmem:[%s262 + $0x64] sm:$0xf]
      %v349 = vld [vmem:[%s262 + $0x68] sm:$0xf]
      %v350 = vld [vmem:[%s262 + $0x6c] sm:$0xf]
      %v351 = vld [vmem:[%s262 + $0x70] sm:$0xf]
      %v352 = vld [vmem:[%s262 + $0x74] sm:$0xf]
      %v353 = vld [vmem:[%s262 + $0x78] sm:$0xf]
      %v354 = vld [vmem:[%s262 + $0x7c] sm:$0xf]
      %v355 = vld [vmem:[%s262 + $0x80] sm:$0xf]
      %v356 = vld [vmem:[%s262 + $0x84] sm:$0xf]
      %v357 = vld [vmem:[%s262 + $0x88] sm:$0xf]
      %v358 = vld [vmem:[%s262 + $0x8c] sm:$0xf]
      %v359 = vld [vmem:[%s262 + $0x90] sm:$0xf]
      %v360 = vld [vmem:[#allocation2] sm:$0xff]
      %v361 = vld [vmem:[#allocation2 + $0x8] sm:$0xff]
      %v362 = vld [vmem:[#allocation2 + $0x10] sm:$0xff]
      %v363 = vld [vmem:[#allocation2 + $0x18] sm:$0xff]
      %v364 = vld [vmem:[#allocation2 + $0x20] sm:$0xff]
      %v365 = vld [vmem:[#allocation2 + $0x28] sm:$0xff]
      %v366 = vld [vmem:[#allocation2 + $0x30] sm:$0xff]
      %v367 = vld [vmem:[#allocation2 + $0x38] sm:$0xff]
      %v368 = vld [vmem:[#allocation2 + $0x40] sm:$0xff]
      %v369 = vld [vmem:[#allocation2 + $0x48] sm:$0xff]
      %v370 = vld [vmem:[#allocation2 + $0x50] sm:$0xff]
      %v371 = vld [vmem:[#allocation2 + $0x58] sm:$0xff]
      %v372 = vld [vmem:[#allocation2 + $0x60] sm:$0xff]
      %v373 = vld [vmem:[#allocation2 + $0x68] sm:$0xff]
      %v374 = vld [vmem:[#allocation2 + $0x70] sm:$0xff]
      %v375 = vld [vmem:[#allocation2 + $0x78] sm:$0xff]
      %v376 = vld [vmem:[#allocation2 + $0x80] sm:$0xff]
      %v377 = vld [vmem:[#allocation2 + $0x88] sm:$0xff]
      %v378 = vld [vmem:[#allocation2 + $0x90] sm:$0xff]
      %v379 = vld [vmem:[#allocation2 + $0x98] sm:$0xff]
      %v380 = vld [vmem:[#allocation2 + $0xa0] sm:$0xff]
      %v381 = vld [vmem:[#allocation2 + $0xa8] sm:$0xff]
      %v382 = vld [vmem:[#allocation2 + $0xb0] sm:$0xff]
      %v383 = vld [vmem:[#allocation2 + $0xb8] sm:$0xff]
      %v384 = vld [vmem:[#allocation2 + $0xc0] sm:$0xff]
      %v385 = vld [vmem:[#allocation2 + $0xc8] sm:$0xff]
      %v386 = vld [vmem:[#allocation2 + $0xd0] sm:$0xff]
      %v387 = vld [vmem:[#allocation2 + $0xd8] sm:$0xff]
      %v388 = vld [vmem:[#allocation2 + $0xe0] sm:$0xff]
      %v389 = vld [vmem:[#allocation2 + $0xe8] sm:$0xff]
      %v390 = vld [vmem:[#allocation2 + $0xf0] sm:$0xff]
      %v391 = vld [vmem:[#allocation2 + $0xf8] sm:$0xff]
      %v392 = vld [vmem:[#allocation2 + $0x100] sm:$0xff]
      %v393 = vld [vmem:[#allocation2 + $0x108] sm:$0xff]
      %v394 = vld [vmem:[%s270] sm:$0xf]
      %v395 = vld [vmem:[%s270 + $0x4] sm:$0xf]
      %v433 = vunpack.c.l.b16 %v323
      %v434 = vunpack.c.l.b16 %v324
      %v435 = vunpack.c.l.b16 %v325
      %v436 = vunpack.c.l.b16 %v326
      %v437 = vunpack.c.l.b16 %v327
      %v438 = vunpack.c.l.b16 %v328
      %v439 = vunpack.c.l.b16 %v329
      %v440 = vunpack.c.l.b16 %v330
      %v441 = vunpack.c.l.b16 %v331
      %v442 = vunpack.c.l.b16 %v332
      %v443 = vunpack.c.l.b16 %v333
      %v444 = vunpack.c.l.b16 %v334
      %v445 = vunpack.c.l.b16 %v335
      %v446 = vunpack.c.l.b16 %v336
      %v447 = vunpack.c.l.b16 %v337
      %v448 = vunpack.c.l.b16 %v338
      %v449 = vunpack.c.l.b16 %v339
      %v450 = vunpack.c.l.b16 %v340
      %v451 = vunpack.c.l.b16 %v341
      %v452 = vunpack.c.l.b16 %v342
      %v453 = vunpack.c.l.b16 %v343
      %v454 = vunpack.c.l.b16 %v344
      %v455 = vunpack.c.l.b16 %v345
      %v456 = vunpack.c.l.b16 %v346
      %v457 = vunpack.c.l.b16 %v347
      %v458 = vunpack.c.l.b16 %v348
      %v459 = vunpack.c.l.b16 %v349
      %v460 = vunpack.c.l.b16 %v350
      %v461 = vunpack.c.l.b16 %v351
      %v462 = vunpack.c.l.b16 %v352
      %v463 = vunpack.c.l.b16 %v353
      %v464 = vunpack.c.l.b16 %v354
      %v465 = vunpack.c.l.b16 %v355
      %v466 = vunpack.c.l.b16 %v356
      %v467 = vunpack.c.l.b16 %v357
      %v468 = vunpack.c.l.b16 %v358
      %v469 = vunpack.c.l.b16 %v359
      %v470 = vpack.c.b16 %v434, %v433
      %v471 = vpack.c.b16 %v436, %v435
      %v472 = vpack.c.b16 %v438, %v437
      %v473 = vpack.c.b16 %v440, %v439
      %v474 = vpack.c.b16 %v442, %v441
      %v475 = vpack.c.b16 %v444, %v443
      %v476 = vpack.c.b16 %v446, %v445
      %v477 = vpack.c.b16 %v448, %v447
      %v478 = vpack.c.b16 %v450, %v449
      %v479 = vpack.c.b16 %v452, %v451
      %v480 = vpack.c.b16 %v454, %v453
      %v481 = vpack.c.b16 %v456, %v455
      %v482 = vpack.c.b16 %v458, %v457
      %v483 = vpack.c.b16 %v460, %v459
      %v484 = vpack.c.b16 %v462, %v461
      %v485 = vpack.c.b16 %v464, %v463
      %v486 = vpack.c.b16 %v466, %v465
      %v487 = vpack.c.b16 %v468, %v467
      %v488 = vpack.c.b16 %v469, %v469
      %v491 = vunpack.c.l.b16 %v394
      %v492 = vunpack.c.l.b16 %v395
      %v493 = vpack.c.b16 %v492, %v491
      %vm495 = vcmask 130048
      %v497 = vsel %vm495, %v470, 0
      %v500 = vsel %vm495, %v471, 0
      %v503 = vsel %vm495, %v472, 0
      %v506 = vsel %vm495, %v473, 0
      %v509 = vsel %vm495, %v474, 0
      %v512 = vsel %vm495, %v475, 0
      %v515 = vsel %vm495, %v476, 0
      %v518 = vsel %vm495, %v477, 0
      %v521 = vsel %vm495, %v478, 0
      %v524 = vsel %vm495, %v479, 0
      %v527 = vsel %vm495, %v480, 0
      %v530 = vsel %vm495, %v481, 0
      %v533 = vsel %vm495, %v482, 0
      %v536 = vsel %vm495, %v483, 0
      %v539 = vsel %vm495, %v484, 0
      %v542 = vsel %vm495, %v485, 0
      %v545 = vsel %vm495, %v486, 0
      %v548 = vsel %vm495, %v487, 0
      %v551 = vsel %vm495, %v488, 0
      %553 = vmatpush.bf16.msra.mxu0 0
      %554 = vmatpush.bf16.msra.mxu0 0
      %555 = vmatpush.bf16.msra.mxu0 0
      %556 = vmatpush.bf16.msra.mxu0 0
      %557 = vmatpush.bf16.msra.mxu0 0
      %558 = vmatpush.bf16.msra.mxu0 0
      %559 = vmatpush.bf16.msra.mxu0 0
      %560 = vmatpush.bf16.msra.mxu0 %v493
      %561 = vmatmul.bf16.gmra.mxu0 %v497
      %v562 = vpop.f32.mrf.mxu0
      %v563 = vadd.f32 0.0, %v562
      %v564 = vpop.f32.mrf.mxu0
      %v565 = vadd.f32 0.0, %v564
      %566 = vmatmul.bf16.gmra.mxu0 %v500
      %v567 = vpop.f32.mrf.mxu0
      %v568 = vadd.f32 0.0, %v567
      %v569 = vpop.f32.mrf.mxu0
      %v570 = vadd.f32 0.0, %v569
      %571 = vmatmul.bf16.gmra.mxu0 %v503
      %v572 = vpop.f32.mrf.mxu0
      %v573 = vadd.f32 0.0, %v572
      %v574 = vpop.f32.mrf.mxu0
      %v575 = vadd.f32 0.0, %v574
      %576 = vmatmul.bf16.gmra.mxu0 %v506
      %v577 = vpop.f32.mrf.mxu0
      %v578 = vadd.f32 0.0, %v577
      %v579 = vpop.f32.mrf.mxu0
      %v580 = vadd.f32 0.0, %v579
      %581 = vmatmul.bf16.gmra.mxu0 %v509
      %v582 = vpop.f32.mrf.mxu0
      %v583 = vadd.f32 0.0, %v582
      %v584 = vpop.f32.mrf.mxu0
      %v585 = vadd.f32 0.0, %v584
      %586 = vmatmul.bf16.gmra.mxu0 %v512
      %v587 = vpop.f32.mrf.mxu0
      %v588 = vadd.f32 0.0, %v587
      %v589 = vpop.f32.mrf.mxu0
      %v590 = vadd.f32 0.0, %v589
      %591 = vmatmul.bf16.gmra.mxu0 %v515
      %v592 = vpop.f32.mrf.mxu0
      %v593 = vadd.f32 0.0, %v592
      %v594 = vpop.f32.mrf.mxu0
      %v595 = vadd.f32 0.0, %v594
      %596 = vmatmul.bf16.gmra.mxu0 %v518
      %v597 = vpop.f32.mrf.mxu0
      %v598 = vadd.f32 0.0, %v597
      %v599 = vpop.f32.mrf.mxu0
      %v600 = vadd.f32 0.0, %v599
      %601 = vmatmul.bf16.gmra.mxu0 %v521
      %v602 = vpop.f32.mrf.mxu0
      %v603 = vadd.f32 0.0, %v602
      %v604 = vpop.f32.mrf.mxu0
      %v605 = vadd.f32 0.0, %v604
      %606 = vmatmul.bf16.gmra.mxu0 %v524
      %v607 = vpop.f32.mrf.mxu0
      %v608 = vadd.f32 0.0, %v607
      %v609 = vpop.f32.mrf.mxu0
      %v610 = vadd.f32 0.0, %v609
      %611 = vmatmul.bf16.gmra.mxu0 %v527
      %v612 = vpop.f32.mrf.mxu0
      %v613 = vadd.f32 0.0, %v612
      %v614 = vpop.f32.mrf.mxu0
      %v615 = vadd.f32 0.0, %v614
      %616 = vmatmul.bf16.gmra.mxu0 %v530
      %v617 = vpop.f32.mrf.mxu0
      %v618 = vadd.f32 0.0, %v617
      %v619 = vpop.f32.mrf.mxu0
      %v620 = vadd.f32 0.0, %v619
      %621 = vmatmul.bf16.gmra.mxu0 %v533
      %v622 = vpop.f32.mrf.mxu0
      %v623 = vadd.f32 0.0, %v622
      %v624 = vpop.f32.mrf.mxu0
      %v625 = vadd.f32 0.0, %v624
      %626 = vmatmul.bf16.gmra.mxu0 %v536
      %v627 = vpop.f32.mrf.mxu0
      %v628 = vadd.f32 0.0, %v627
      %v629 = vpop.f32.mrf.mxu0
      %v630 = vadd.f32 0.0, %v629
      %631 = vmatmul.bf16.gmra.mxu0 %v539
      %v632 = vpop.f32.mrf.mxu0
      %v633 = vadd.f32 0.0, %v632
      %v634 = vpop.f32.mrf.mxu0
      %v635 = vadd.f32 0.0, %v634
      %636 = vmatmul.bf16.gmra.mxu0 %v542
      %v637 = vpop.f32.mrf.mxu0
      %v638 = vadd.f32 0.0, %v637
      %v639 = vpop.f32.mrf.mxu0
      %v640 = vadd.f32 0.0, %v639
      %641 = vmatmul.bf16.gmra.mxu0 %v545
      %v642 = vpop.f32.mrf.mxu0
      %v643 = vadd.f32 0.0, %v642
      %v644 = vpop.f32.mrf.mxu0
      %v645 = vadd.f32 0.0, %v644
      %646 = vmatmul.bf16.gmra.mxu0 %v548
      %v647 = vpop.f32.mrf.mxu0
      %v648 = vpop.f32.mrf.mxu0
      %649 = vmatmul.bf16.gmra.mxu0 %v551
      %v650 = vpop.f32.mrf.mxu0
      %v651 = vpop.f32.mrf.mxu0
      %652 = vdwg.mxu0
      %v653 = vadd.f32 %v360, %v563
      %v654 = vadd.f32 %v361, %v565
      %v655 = vadd.f32 %v362, %v568
      %v656 = vadd.f32 %v363, %v570
      %v657 = vadd.f32 %v364, %v573
      %v658 = vadd.f32 %v365, %v575
      %v659 = vadd.f32 %v366, %v578
      %v660 = vadd.f32 %v367, %v580
      %v661 = vadd.f32 %v368, %v583
      %v662 = vadd.f32 %v369, %v585
      %v663 = vadd.f32 %v370, %v588
      %v664 = vadd.f32 %v371, %v590
      %v665 = vadd.f32 %v372, %v593
      %v666 = vadd.f32 %v373, %v595
      %v667 = vadd.f32 %v374, %v598
      %v668 = vadd.f32 %v375, %v600
      %v669 = vadd.f32 %v376, %v603
      %v670 = vadd.f32 %v377, %v605
      %v671 = vadd.f32 %v378, %v608
      %v672 = vadd.f32 %v379, %v610
      %v673 = vadd.f32 %v380, %v613
      %v674 = vadd.f32 %v381, %v615
      %v675 = vadd.f32 %v382, %v618
      %v676 = vadd.f32 %v383, %v620
      %v677 = vadd.f32 %v384, %v623
      %v678 = vadd.f32 %v385, %v625
      %v679 = vadd.f32 %v386, %v628
      %v680 = vadd.f32 %v387, %v630
      %v681 = vadd.f32 %v388, %v633
      %v682 = vadd.f32 %v389, %v635
      %v683 = vadd.f32 %v390, %v638
      %v684 = vadd.f32 %v391, %v640
      %v685 = vadd.f32 %v392, %v643
      %v686 = vadd.f32 %v393, %v645
      %s687 = scalar_lea.vmem %s270, 8
      %v688 = vld [vmem:[%s687] sm:$0xf]
      %v689 = vld [vmem:[%s687 + $0x4] sm:$0xf]
      %v692 = vunpack.c.l.b16 %v688
      %v693 = vunpack.c.l.b16 %v689
      %v694 = vpack.c.b16 %v693, %v692
      %696 = vmatpush.bf16.msra.mxu0 0
      %697 = vmatpush.bf16.msra.mxu0 0
      %698 = vmatpush.bf16.msra.mxu0 0
      %699 = vmatpush.bf16.msra.mxu0 0
      %700 = vmatpush.bf16.msra.mxu0 0
      %701 = vmatpush.bf16.msra.mxu0 0
      %702 = vmatpush.bf16.msra.mxu0 0
      %703 = vmatpush.bf16.msra.mxu0 %v694
      %704 = vmatmul.bf16.gmra.mxu0 %v497
      %v705 = vpop.f32.mrf.mxu0
      %v706 = vadd.f32 0.0, %v705
      %v707 = vpop.f32.mrf.mxu0
      %v708 = vadd.f32 0.0, %v707
      %709 = vmatmul.bf16.gmra.mxu0 %v500
      %v710 = vpop.f32.mrf.mxu0
      %v711 = vadd.f32 0.0, %v710
      %v712 = vpop.f32.mrf.mxu0
      %v713 = vadd.f32 0.0, %v712
      %714 = vmatmul.bf16.gmra.mxu0 %v503
      %v715 = vpop.f32.mrf.mxu0
      %v716 = vadd.f32 0.0, %v715
      %v717 = vpop.f32.mrf.mxu0
      %v718 = vadd.f32 0.0, %v717
      %719 = vmatmul.bf16.gmra.mxu0 %v506
      %v720 = vpop.f32.mrf.mxu0
      %v721 = vadd.f32 0.0, %v720
      %v722 = vpop.f32.mrf.mxu0
      %v723 = vadd.f32 0.0, %v722
      %724 = vmatmul.bf16.gmra.mxu0 %v509
      %v725 = vpop.f32.mrf.mxu0
      %v726 = vadd.f32 0.0, %v725
      %v727 = vpop.f32.mrf.mxu0
      %v728 = vadd.f32 0.0, %v727
      %729 = vmatmul.bf16.gmra.mxu0 %v512
      %v730 = vpop.f32.mrf.mxu0
      %v731 = vadd.f32 0.0, %v730
      %v732 = vpop.f32.mrf.mxu0
      %v733 = vadd.f32 0.0, %v732
      %734 = vmatmul.bf16.gmra.mxu0 %v515
      %v735 = vpop.f32.mrf.mxu0
      %v736 = vadd.f32 0.0, %v735
      %v737 = vpop.f32.mrf.mxu0
      %v738 = vadd.f32 0.0, %v737
      %739 = vmatmul.bf16.gmra.mxu0 %v518
      %v740 = vpop.f32.mrf.mxu0
      %v741 = vadd.f32 0.0, %v740
      %v742 = vpop.f32.mrf.mxu0
      %v743 = vadd.f32 0.0, %v742
      %744 = vmatmul.bf16.gmra.mxu0 %v521
      %v745 = vpop.f32.mrf.mxu0
      %v746 = vadd.f32 0.0, %v745
      %v747 = vpop.f32.mrf.mxu0
      %v748 = vadd.f32 0.0, %v747
      %749 = vmatmul.bf16.gmra.mxu0 %v524
      %v750 = vpop.f32.mrf.mxu0
      %v751 = vadd.f32 0.0, %v750
      %v752 = vpop.f32.mrf.mxu0
      %v753 = vadd.f32 0.0, %v752
      %754 = vmatmul.bf16.gmra.mxu0 %v527
      %v755 = vpop.f32.mrf.mxu0
      %v756 = vadd.f32 0.0, %v755
      %v757 = vpop.f32.mrf.mxu0
      %v758 = vadd.f32 0.0, %v757
      %759 = vmatmul.bf16.gmra.mxu0 %v530
      %v760 = vpop.f32.mrf.mxu0
      %v761 = vadd.f32 0.0, %v760
      %v762 = vpop.f32.mrf.mxu0
      %v763 = vadd.f32 0.0, %v762
      %764 = vmatmul.bf16.gmra.mxu0 %v533
      %v765 = vpop.f32.mrf.mxu0
      %v766 = vadd.f32 0.0, %v765
      %v767 = vpop.f32.mrf.mxu0
      %v768 = vadd.f32 0.0, %v767
      %769 = vmatmul.bf16.gmra.mxu0 %v536
      %v770 = vpop.f32.mrf.mxu0
      %v771 = vadd.f32 0.0, %v770
      %v772 = vpop.f32.mrf.mxu0
      %v773 = vadd.f32 0.0, %v772
      %774 = vmatmul.bf16.gmra.mxu0 %v539
      %v775 = vpop.f32.mrf.mxu0
      %v776 = vadd.f32 0.0, %v775
      %v777 = vpop.f32.mrf.mxu0
      %v778 = vadd.f32 0.0, %v777
      %779 = vmatmul.bf16.gmra.mxu0 %v542
      %v780 = vpop.f32.mrf.mxu0
      %v781 = vadd.f32 0.0, %v780
      %v782 = vpop.f32.mrf.mxu0
      %v783 = vadd.f32 0.0, %v782
      %784 = vmatmul.bf16.gmra.mxu0 %v545
      %v785 = vpop.f32.mrf.mxu0
      %v786 = vadd.f32 0.0, %v785
      %v787 = vpop.f32.mrf.mxu0
      %v788 = vadd.f32 0.0, %v787
      %789 = vmatmul.bf16.gmra.mxu0 %v548
      %v790 = vpop.f32.mrf.mxu0
      %v791 = vadd.f32 0.0, %v790
      %v792 = vpop.f32.mrf.mxu0
      %793 = vmatmul.bf16.gmra.mxu0 %v551
      %v794 = vpop.f32.mrf.mxu0
      %v795 = vpop.f32.mrf.mxu0
      %796 = vdwg.mxu0
      %vm832 = vcmask 1046528
      %v833 = vrot.slane %v706, 1
      %v834 = vrot.slane %v708, 1
      %v835 = vsel %vm832, %v833, %v834
      %v836 = vrot.slane %v711, 1
      %v837 = vsel %vm832, %v834, %v836
      %v838 = vrot.slane %v713, 1
      %v839 = vsel %vm832, %v836, %v838
      %v840 = vrot.slane %v716, 1
      %v841 = vsel %vm832, %v838, %v840
      %v842 = vrot.slane %v718, 1
      %v843 = vsel %vm832, %v840, %v842
      %v844 = vrot.slane %v721, 1
      %v845 = vsel %vm832, %v842, %v844
      %v846 = vrot.slane %v723, 1
      %v847 = vsel %vm832, %v844, %v846
      %v848 = vrot.slane %v726, 1
      %v849 = vsel %vm832, %v846, %v848
      %v850 = vrot.slane %v728, 1
      %v851 = vsel %vm832, %v848, %v850
      %v852 = vrot.slane %v731, 1
      %v853 = vsel %vm832, %v850, %v852
      %v854 = vrot.slane %v733, 1
      %v855 = vsel %vm832, %v852, %v854
      %v856 = vrot.slane %v736, 1
      %v857 = vsel %vm832, %v854, %v856
      %v858 = vrot.slane %v738, 1
      %v859 = vsel %vm832, %v856, %v858
      %v860 = vrot.slane %v741, 1
      %v861 = vsel %vm832, %v858, %v860
      %v862 = vrot.slane %v743, 1
      %v863 = vsel %vm832, %v860, %v862
      %v864 = vrot.slane %v746, 1
      %v865 = vsel %vm832, %v862, %v864
      %v866 = vrot.slane %v748, 1
      %v867 = vsel %vm832, %v864, %v866
      %v868 = vrot.slane %v751, 1
      %v869 = vsel %vm832, %v866, %v868
      %v870 = vrot.slane %v753, 1
      %v871 = vsel %vm832, %v868, %v870
      %v872 = vrot.slane %v756, 1
      %v873 = vsel %vm832, %v870, %v872
      %v874 = vrot.slane %v758, 1
      %v875 = vsel %vm832, %v872, %v874
      %v876 = vrot.slane %v761, 1
      %v877 = vsel %vm832, %v874, %v876
      %v878 = vrot.slane %v763, 1
      %v879 = vsel %vm832, %v876, %v878
      %v880 = vrot.slane %v766, 1
      %v881 = vsel %vm832, %v878, %v880
      %v882 = vrot.slane %v768, 1
      %v883 = vsel %vm832, %v880, %v882
      %v884 = vrot.slane %v771, 1
      %v885 = vsel %vm832, %v882, %v884
      %v886 = vrot.slane %v773, 1
      %v887 = vsel %vm832, %v884, %v886
      %v888 = vrot.slane %v776, 1
      %v889 = vsel %vm832, %v886, %v888
      %v890 = vrot.slane %v778, 1
      %v891 = vsel %vm832, %v888, %v890
      %v892 = vrot.slane %v781, 1
      %v893 = vsel %vm832, %v890, %v892
      %v894 = vrot.slane %v783, 1
      %v895 = vsel %vm832, %v892, %v894
      %v896 = vrot.slane %v786, 1
      %v897 = vsel %vm832, %v894, %v896
      %v898 = vrot.slane %v788, 1
      %v899 = vsel %vm832, %v896, %v898
      %v900 = vrot.slane %v791, 1
      %v901 = vsel %vm832, %v898, %v900
      %v936 = vadd.f32 %v653, %v835
      %v937 = vadd.f32 %v654, %v837
      %v938 = vadd.f32 %v655, %v839
      %v939 = vadd.f32 %v656, %v841
      %v940 = vadd.f32 %v657, %v843
      %v941 = vadd.f32 %v658, %v845
      %v942 = vadd.f32 %v659, %v847
      %v943 = vadd.f32 %v660, %v849
      %v944 = vadd.f32 %v661, %v851
      %v945 = vadd.f32 %v662, %v853
      %v946 = vadd.f32 %v663, %v855
      %v947 = vadd.f32 %v664, %v857
      %v948 = vadd.f32 %v665, %v859
      %v949 = vadd.f32 %v666, %v861
      %v950 = vadd.f32 %v667, %v863
      %v951 = vadd.f32 %v668, %v865
      %v952 = vadd.f32 %v669, %v867
      %v953 = vadd.f32 %v670, %v869
      %v954 = vadd.f32 %v671, %v871
      %v955 = vadd.f32 %v672, %v873
      %v956 = vadd.f32 %v673, %v875
      %v957 = vadd.f32 %v674, %v877
      %v958 = vadd.f32 %v675, %v879
      %v959 = vadd.f32 %v676, %v881
      %v960 = vadd.f32 %v677, %v883
      %v961 = vadd.f32 %v678, %v885
      %v962 = vadd.f32 %v679, %v887
      %v963 = vadd.f32 %v680, %v889
      %v964 = vadd.f32 %v681, %v891
      %v965 = vadd.f32 %v682, %v893
      %v966 = vadd.f32 %v683, %v895
      %v967 = vadd.f32 %v684, %v897
      %v968 = vadd.f32 %v685, %v899
      %v969 = vadd.f32 %v686, %v901
      %s970 = scalar_lea.vmem %s270, 16
      %v971 = vld [vmem:[%s970] sm:$0xf]
      %v972 = vld [vmem:[%s970 + $0x4] sm:$0xf]
      %v975 = vunpack.c.l.b16 %v971
      %v976 = vunpack.c.l.b16 %v972
      %v977 = vpack.c.b16 %v976, %v975
      %979 = vmatpush.bf16.msra.mxu0 0
      %980 = vmatpush.bf16.msra.mxu0 0
      %981 = vmatpush.bf16.msra.mxu0 0
      %982 = vmatpush.bf16.msra.mxu0 0
      %983 = vmatpush.bf16.msra.mxu0 0
      %984 = vmatpush.bf16.msra.mxu0 0
      %985 = vmatpush.bf16.msra.mxu0 0
      %986 = vmatpush.bf16.msra.mxu0 %v977
      %987 = vmatmul.bf16.gmra.mxu0 %v497
      %v988 = vpop.f32.mrf.mxu0
      %v989 = vpop.f32.mrf.mxu0
      %990 = vmatmul.bf16.gmra.mxu0 %v500
      %v991 = vpop.f32.mrf.mxu0
      %v992 = vadd.f32 0.0, %v991
      %v993 = vpop.f32.mrf.mxu0
      %v994 = vadd.f32 0.0, %v993
      %995 = vmatmul.bf16.gmra.mxu0 %v503
      %v996 = vpop.f32.mrf.mxu0
      %v997 = vadd.f32 0.0, %v996
      %v998 = vpop.f32.mrf.mxu0
      %v999 = vadd.f32 0.0, %v998
      %1000 = vmatmul.bf16.gmra.mxu0 %v506
      %v1001 = vpop.f32.mrf.mxu0
      %v1002 = vadd.f32 0.0, %v1001
      %v1003 = vpop.f32.mrf.mxu0
      %v1004 = vadd.f32 0.0, %v1003
      %1005 = vmatmul.bf16.gmra.mxu0 %v509
      %v1006 = vpop.f32.mrf.mxu0
      %v1007 = vadd.f32 0.0, %v1006
      %v1008 = vpop.f32.mrf.mxu0
      %v1009 = vadd.f32 0.0, %v1008
      %1010 = vmatmul.bf16.gmra.mxu0 %v512
      %v1011 = vpop.f32.mrf.mxu0
      %v1012 = vadd.f32 0.0, %v1011
      %v1013 = vpop.f32.mrf.mxu0
      %v1014 = vadd.f32 0.0, %v1013
      %1015 = vmatmul.bf16.gmra.mxu0 %v515
      %v1016 = vpop.f32.mrf.mxu0
      %v1017 = vadd.f32 0.0, %v1016
      %v1018 = vpop.f32.mrf.mxu0
      %v1019 = vadd.f32 0.0, %v1018
      %1020 = vmatmul.bf16.gmra.mxu0 %v518
      %v1021 = vpop.f32.mrf.mxu0
      %v1022 = vadd.f32 0.0, %v1021
      %v1023 = vpop.f32.mrf.mxu0
      %v1024 = vadd.f32 0.0, %v1023
      %1025 = vmatmul.bf16.gmra.mxu0 %v521
      %v1026 = vpop.f32.mrf.mxu0
      %v1027 = vadd.f32 0.0, %v1026
      %v1028 = vpop.f32.mrf.mxu0
      %v1029 = vadd.f32 0.0, %v1028
      %1030 = vmatmul.bf16.gmra.mxu0 %v524
      %v1031 = vpop.f32.mrf.mxu0
      %v1032 = vadd.f32 0.0, %v1031
      %v1033 = vpop.f32.mrf.mxu0
      %v1034 = vadd.f32 0.0, %v1033
      %1035 = vmatmul.bf16.gmra.mxu0 %v527
      %v1036 = vpop.f32.mrf.mxu0
      %v1037 = vadd.f32 0.0, %v1036
      %v1038 = vpop.f32.mrf.mxu0
      %v1039 = vadd.f32 0.0, %v1038
      %1040 = vmatmul.bf16.gmra.mxu0 %v530
      %v1041 = vpop.f32.mrf.mxu0
      %v1042 = vadd.f32 0.0, %v1041
      %v1043 = vpop.f32.mrf.mxu0
      %v1044 = vadd.f32 0.0, %v1043
      %1045 = vmatmul.bf16.gmra.mxu0 %v533
      %v1046 = vpop.f32.mrf.mxu0
      %v1047 = vadd.f32 0.0, %v1046
      %v1048 = vpop.f32.mrf.mxu0
      %v1049 = vadd.f32 0.0, %v1048
      %1050 = vmatmul.bf16.gmra.mxu0 %v536
      %v1051 = vpop.f32.mrf.mxu0
      %v1052 = vadd.f32 0.0, %v1051
      %v1053 = vpop.f32.mrf.mxu0
      %v1054 = vadd.f32 0.0, %v1053
      %1055 = vmatmul.bf16.gmra.mxu0 %v539
      %v1056 = vpop.f32.mrf.mxu0
      %v1057 = vadd.f32 0.0, %v1056
      %v1058 = vpop.f32.mrf.mxu0
      %v1059 = vadd.f32 0.0, %v1058
      %1060 = vmatmul.bf16.gmra.mxu0 %v542
      %v1061 = vpop.f32.mrf.mxu0
      %v1062 = vadd.f32 0.0, %v1061
      %v1063 = vpop.f32.mrf.mxu0
      %v1064 = vadd.f32 0.0, %v1063
      %1065 = vmatmul.bf16.gmra.mxu0 %v545
      %v1066 = vpop.f32.mrf.mxu0
      %v1067 = vadd.f32 0.0, %v1066
      %v1068 = vpop.f32.mrf.mxu0
      %v1069 = vadd.f32 0.0, %v1068
      %1070 = vmatmul.bf16.gmra.mxu0 %v548
      %v1071 = vpop.f32.mrf.mxu0
      %v1072 = vadd.f32 0.0, %v1071
      %v1073 = vpop.f32.mrf.mxu0
      %v1074 = vadd.f32 0.0, %v1073
      %1075 = vmatmul.bf16.gmra.mxu0 %v551
      %v1076 = vpop.f32.mrf.mxu0
      %v1077 = vadd.f32 0.0, %v1076
      %v1078 = vpop.f32.mrf.mxu0
      %1079 = vdwg.mxu0
      %v1115 = vrot.slane %v992, 1
      %v1116 = vrot.slane %v994, 1
      %v1117 = vsel %vm832, %v1115, %v1116
      %v1118 = vrot.slane %v997, 1
      %v1119 = vsel %vm832, %v1116, %v1118
      %v1120 = vrot.slane %v999, 1
      %v1121 = vsel %vm832, %v1118, %v1120
      %v1122 = vrot.slane %v1002, 1
      %v1123 = vsel %vm832, %v1120, %v1122
      %v1124 = vrot.slane %v1004, 1
      %v1125 = vsel %vm832, %v1122, %v1124
      %v1126 = vrot.slane %v1007, 1
      %v1127 = vsel %vm832, %v1124, %v1126
      %v1128 = vrot.slane %v1009, 1
      %v1129 = vsel %vm832, %v1126, %v1128
      %v1130 = vrot.slane %v1012, 1
      %v1131 = vsel %vm832, %v1128, %v1130
      %v1132 = vrot.slane %v1014, 1
      %v1133 = vsel %vm832, %v1130, %v1132
      %v1134 = vrot.slane %v1017, 1
      %v1135 = vsel %vm832, %v1132, %v1134
      %v1136 = vrot.slane %v1019, 1
      %v1137 = vsel %vm832, %v1134, %v1136
      %v1138 = vrot.slane %v1022, 1
      %v1139 = vsel %vm832, %v1136, %v1138
      %v1140 = vrot.slane %v1024, 1
      %v1141 = vsel %vm832, %v1138, %v1140
      %v1142 = vrot.slane %v1027, 1
      %v1143 = vsel %vm832, %v1140, %v1142
      %v1144 = vrot.slane %v1029, 1
      %v1145 = vsel %vm832, %v1142, %v1144
      %v1146 = vrot.slane %v1032, 1
      %v1147 = vsel %vm832, %v1144, %v1146
      %v1148 = vrot.slane %v1034, 1
      %v1149 = vsel %vm832, %v1146, %v1148
      %v1150 = vrot.slane %v1037, 1
      %v1151 = vsel %vm832, %v1148, %v1150
      %v1152 = vrot.slane %v1039, 1
      %v1153 = vsel %vm832, %v1150, %v1152
      %v1154 = vrot.slane %v1042, 1
      %v1155 = vsel %vm832, %v1152, %v1154
      %v1156 = vrot.slane %v1044, 1
      %v1157 = vsel %vm832, %v1154, %v1156
      %v1158 = vrot.slane %v1047, 1
      %v1159 = vsel %vm832, %v1156, %v1158
      %v1160 = vrot.slane %v1049, 1
      %v1161 = vsel %vm832, %v1158, %v1160
      %v1162 = vrot.slane %v1052, 1
      %v1163 = vsel %vm832, %v1160, %v1162
      %v1164 = vrot.slane %v1054, 1
      %v1165 = vsel %vm832, %v1162, %v1164
      %v1166 = vrot.slane %v1057, 1
      %v1167 = vsel %vm832, %v1164, %v1166
      %v1168 = vrot.slane %v1059, 1
      %v1169 = vsel %vm832, %v1166, %v1168
      %v1170 = vrot.slane %v1062, 1
      %v1171 = vsel %vm832, %v1168, %v1170
      %v1172 = vrot.slane %v1064, 1
      %v1173 = vsel %vm832, %v1170, %v1172
      %v1174 = vrot.slane %v1067, 1
      %v1175 = vsel %vm832, %v1172, %v1174
      %v1176 = vrot.slane %v1069, 1
      %v1177 = vsel %vm832, %v1174, %v1176
      %v1178 = vrot.slane %v1072, 1
      %v1179 = vsel %vm832, %v1176, %v1178
      %v1180 = vrot.slane %v1074, 1
      %v1181 = vsel %vm832, %v1178, %v1180
      %v1182 = vrot.slane %v1077, 1
      %v1183 = vsel %vm832, %v1180, %v1182
      %v1218 = vadd.f32 %v936, %v1117
      %v1219 = vadd.f32 %v937, %v1119
      %v1220 = vadd.f32 %v938, %v1121
      %v1221 = vadd.f32 %v939, %v1123
      %v1222 = vadd.f32 %v940, %v1125
      %v1223 = vadd.f32 %v941, %v1127
      %v1224 = vadd.f32 %v942, %v1129
      %v1225 = vadd.f32 %v943, %v1131
      %v1226 = vadd.f32 %v944, %v1133
      %v1227 = vadd.f32 %v945, %v1135
      %v1228 = vadd.f32 %v946, %v1137
      %v1229 = vadd.f32 %v947, %v1139
      %v1230 = vadd.f32 %v948, %v1141
      %v1231 = vadd.f32 %v949, %v1143
      %v1232 = vadd.f32 %v950, %v1145
      %v1233 = vadd.f32 %v951, %v1147
      %v1234 = vadd.f32 %v952, %v1149
      %v1235 = vadd.f32 %v953, %v1151
      %v1236 = vadd.f32 %v954, %v1153
      %v1237 = vadd.f32 %v955, %v1155
      %v1238 = vadd.f32 %v956, %v1157
      %v1239 = vadd.f32 %v957, %v1159
      %v1240 = vadd.f32 %v958, %v1161
      %v1241 = vadd.f32 %v959, %v1163
      %v1242 = vadd.f32 %v960, %v1165
      %v1243 = vadd.f32 %v961, %v1167
      %v1244 = vadd.f32 %v962, %v1169
      %v1245 = vadd.f32 %v963, %v1171
      %v1246 = vadd.f32 %v964, %v1173
      %v1247 = vadd.f32 %v965, %v1175
      %v1248 = vadd.f32 %v966, %v1177
      %v1249 = vadd.f32 %v967, %v1179
      %v1250 = vadd.f32 %v968, %v1181
      %v1251 = vadd.f32 %v969, %v1183
      %s1252 = scalar_lea.vmem %s270, 24
      %v1253 = vld [vmem:[%s1252] sm:$0xf]
      %v1254 = vld [vmem:[%s1252 + $0x4] sm:$0xf]
      %v1257 = vunpack.c.l.b16 %v1253
      %v1258 = vunpack.c.l.b16 %v1254
      %v1259 = vpack.c.b16 %v1258, %v1257
      %1261 = vmatpush.bf16.msra.mxu0 0
      %1262 = vmatpush.bf16.msra.mxu0 0
      %1263 = vmatpush.bf16.msra.mxu0 0
      %1264 = vmatpush.bf16.msra.mxu0 0
      %1265 = vmatpush.bf16.msra.mxu0 0
      %1266 = vmatpush.bf16.msra.mxu0 0
      %1267 = vmatpush.bf16.msra.mxu0 0
      %1268 = vmatpush.bf16.msra.mxu0 %v1259
      %1269 = vmatmul.bf16.gmra.mxu0 %v497
      %v1270 = vpop.f32.mrf.mxu0
      %v1271 = vpop.f32.mrf.mxu0
      %1272 = vmatmul.bf16.gmra.mxu0 %v500
      %v1273 = vpop.f32.mrf.mxu0
      %v1274 = vadd.f32 0.0, %v1273
      %v1275 = vpop.f32.mrf.mxu0
      %v1276 = vadd.f32 0.0, %v1275
      %1277 = vmatmul.bf16.gmra.mxu0 %v503
      %v1278 = vpop.f32.mrf.mxu0
      %v1279 = vadd.f32 0.0, %v1278
      %v1280 = vpop.f32.mrf.mxu0
      %v1281 = vadd.f32 0.0, %v1280
      %1282 = vmatmul.bf16.gmra.mxu0 %v506
      %v1283 = vpop.f32.mrf.mxu0
      %v1284 = vadd.f32 0.0, %v1283
      %v1285 = vpop.f32.mrf.mxu0
      %v1286 = vadd.f32 0.0, %v1285
      %1287 = vmatmul.bf16.gmra.mxu0 %v509
      %v1288 = vpop.f32.mrf.mxu0
      %v1289 = vadd.f32 0.0, %v1288
      %v1290 = vpop.f32.mrf.mxu0
      %v1291 = vadd.f32 0.0, %v1290
      %1292 = vmatmul.bf16.gmra.mxu0 %v512
      %v1293 = vpop.f32.mrf.mxu0
      %v1294 = vadd.f32 0.0, %v1293
      %v1295 = vpop.f32.mrf.mxu0
      %v1296 = vadd.f32 0.0, %v1295
      %1297 = vmatmul.bf16.gmra.mxu0 %v515
      %v1298 = vpop.f32.mrf.mxu0
      %v1299 = vadd.f32 0.0, %v1298
      %v1300 = vpop.f32.mrf.mxu0
      %v1301 = vadd.f32 0.0, %v1300
      %1302 = vmatmul.bf16.gmra.mxu0 %v518
      %v1303 = vpop.f32.mrf.mxu0
      %v1304 = vadd.f32 0.0, %v1303
      %v1305 = vpop.f32.mrf.mxu0
      %v1306 = vadd.f32 0.0, %v1305
      %1307 = vmatmul.bf16.gmra.mxu0 %v521
      %v1308 = vpop.f32.mrf.mxu0
      %v1309 = vadd.f32 0.0, %v1308
      %v1310 = vpop.f32.mrf.mxu0
      %v1311 = vadd.f32 0.0, %v1310
      %1312 = vmatmul.bf16.gmra.mxu0 %v524
      %v1313 = vpop.f32.mrf.mxu0
      %v1314 = vadd.f32 0.0, %v1313
      %v1315 = vpop.f32.mrf.mxu0
      %v1316 = vadd.f32 0.0, %v1315
      %1317 = vmatmul.bf16.gmra.mxu0 %v527
      %v1318 = vpop.f32.mrf.mxu0
      %v1319 = vadd.f32 0.0, %v1318
      %v1320 = vpop.f32.mrf.mxu0
      %v1321 = vadd.f32 0.0, %v1320
      %1322 = vmatmul.bf16.gmra.mxu0 %v530
      %v1323 = vpop.f32.mrf.mxu0
      %v1324 = vadd.f32 0.0, %v1323
      %v1325 = vpop.f32.mrf.mxu0
      %v1326 = vadd.f32 0.0, %v1325
      %1327 = vmatmul.bf16.gmra.mxu0 %v533
      %v1328 = vpop.f32.mrf.mxu0
      %v1329 = vadd.f32 0.0, %v1328
      %v1330 = vpop.f32.mrf.mxu0
      %v1331 = vadd.f32 0.0, %v1330
      %1332 = vmatmul.bf16.gmra.mxu0 %v536
      %v1333 = vpop.f32.mrf.mxu0
      %v1334 = vadd.f32 0.0, %v1333
      %v1335 = vpop.f32.mrf.mxu0
      %v1336 = vadd.f32 0.0, %v1335
      %1337 = vmatmul.bf16.gmra.mxu0 %v539
      %v1338 = vpop.f32.mrf.mxu0
      %v1339 = vadd.f32 0.0, %v1338
      %v1340 = vpop.f32.mrf.mxu0
      %v1341 = vadd.f32 0.0, %v1340
      %1342 = vmatmul.bf16.gmra.mxu0 %v542
      %v1343 = vpop.f32.mrf.mxu0
      %v1344 = vadd.f32 0.0, %v1343
      %v1345 = vpop.f32.mrf.mxu0
      %v1346 = vadd.f32 0.0, %v1345
      %1347 = vmatmul.bf16.gmra.mxu0 %v545
      %v1348 = vpop.f32.mrf.mxu0
      %v1349 = vadd.f32 0.0, %v1348
      %v1350 = vpop.f32.mrf.mxu0
      %v1351 = vadd.f32 0.0, %v1350
      %1352 = vmatmul.bf16.gmra.mxu0 %v548
      %v1353 = vpop.f32.mrf.mxu0
      %v1354 = vadd.f32 0.0, %v1353
      %v1355 = vpop.f32.mrf.mxu0
      %v1356 = vadd.f32 0.0, %v1355
      %1357 = vmatmul.bf16.gmra.mxu0 %v551
      %v1358 = vpop.f32.mrf.mxu0
      %v1359 = vadd.f32 0.0, %v1358
      %v1360 = vpop.f32.mrf.mxu0
      %1361 = vdwg.mxu0
      %vm1397 = vcmask 1045504
      %v1398 = vrot.slane %v1274, 2
      %v1399 = vrot.slane %v1276, 2
      %v1400 = vsel %vm1397, %v1398, %v1399
      %v1401 = vrot.slane %v1279, 2
      %v1402 = vsel %vm1397, %v1399, %v1401
      %v1403 = vrot.slane %v1281, 2
      %v1404 = vsel %vm1397, %v1401, %v1403
      %v1405 = vrot.slane %v1284, 2
      %v1406 = vsel %vm1397, %v1403, %v1405
      %v1407 = vrot.slane %v1286, 2
      %v1408 = vsel %vm1397, %v1405, %v1407
      %v1409 = vrot.slane %v1289, 2
      %v1410 = vsel %vm1397, %v1407, %v1409
      %v1411 = vrot.slane %v1291, 2
      %v1412 = vsel %vm1397, %v1409, %v1411
      %v1413 = vrot.slane %v1294, 2
      %v1414 = vsel %vm1397, %v1411, %v1413
      %v1415 = vrot.slane %v1296, 2
      %v1416 = vsel %vm1397, %v1413, %v1415
      %v1417 = vrot.slane %v1299, 2
      %v1418 = vsel %vm1397, %v1415, %v1417
      %v1419 = vrot.slane %v1301, 2
      %v1420 = vsel %vm1397, %v1417, %v1419
      %v1421 = vrot.slane %v1304, 2
      %v1422 = vsel %vm1397, %v1419, %v1421
      %v1423 = vrot.slane %v1306, 2
      %v1424 = vsel %vm1397, %v1421, %v1423
      %v1425 = vrot.slane %v1309, 2
      %v1426 = vsel %vm1397, %v1423, %v1425
      %v1427 = vrot.slane %v1311, 2
      %v1428 = vsel %vm1397, %v1425, %v1427
      %v1429 = vrot.slane %v1314, 2
      %v1430 = vsel %vm1397, %v1427, %v1429
      %v1431 = vrot.slane %v1316, 2
      %v1432 = vsel %vm1397, %v1429, %v1431
      %v1433 = vrot.slane %v1319, 2
      %v1434 = vsel %vm1397, %v1431, %v1433
      %v1435 = vrot.slane %v1321, 2
      %v1436 = vsel %vm1397, %v1433, %v1435
      %v1437 = vrot.slane %v1324, 2
      %v1438 = vsel %vm1397, %v1435, %v1437
      %v1439 = vrot.slane %v1326, 2
      %v1440 = vsel %vm1397, %v1437, %v1439
      %v1441 = vrot.slane %v1329, 2
      %v1442 = vsel %vm1397, %v1439, %v1441
      %v1443 = vrot.slane %v1331, 2
      %v1444 = vsel %vm1397, %v1441, %v1443
      %v1445 = vrot.slane %v1334, 2
      %v1446 = vsel %vm1397, %v1443, %v1445
      %v1447 = vrot.slane %v1336, 2
      %v1448 = vsel %vm1397, %v1445, %v1447
      %v1449 = vrot.slane %v1339, 2
      %v1450 = vsel %vm1397, %v1447, %v1449
      %v1451 = vrot.slane %v1341, 2
      %v1452 = vsel %vm1397, %v1449, %v1451
      %v1453 = vrot.slane %v1344, 2
      %v1454 = vsel %vm1397, %v1451, %v1453
      %v1455 = vrot.slane %v1346, 2
      %v1456 = vsel %vm1397, %v1453, %v1455
      %v1457 = vrot.slane %v1349, 2
      %v1458 = vsel %vm1397, %v1455, %v1457
      %v1459 = vrot.slane %v1351, 2
      %v1460 = vsel %vm1397, %v1457, %v1459
      %v1461 = vrot.slane %v1354, 2
      %v1462 = vsel %vm1397, %v1459, %v1461
      %v1463 = vrot.slane %v1356, 2
      %v1464 = vsel %vm1397, %v1461, %v1463
      %v1465 = vrot.slane %v1359, 2
      %v1466 = vsel %vm1397, %v1463, %v1465
      %v1501 = vadd.f32 %v1218, %v1400
      %v1502 = vadd.f32 %v1219, %v1402
      %v1503 = vadd.f32 %v1220, %v1404
      %v1504 = vadd.f32 %v1221, %v1406
      %v1505 = vadd.f32 %v1222, %v1408
      %v1506 = vadd.f32 %v1223, %v1410
      %v1507 = vadd.f32 %v1224, %v1412
      %v1508 = vadd.f32 %v1225, %v1414
      %v1509 = vadd.f32 %v1226, %v1416
      %v1510 = vadd.f32 %v1227, %v1418
      %v1511 = vadd.f32 %v1228, %v1420
      %v1512 = vadd.f32 %v1229, %v1422
      %v1513 = vadd.f32 %v1230, %v1424
      %v1514 = vadd.f32 %v1231, %v1426
      %v1515 = vadd.f32 %v1232, %v1428
      %v1516 = vadd.f32 %v1233, %v1430
      %v1517 = vadd.f32 %v1234, %v1432
      %v1518 = vadd.f32 %v1235, %v1434
      %v1519 = vadd.f32 %v1236, %v1436
      %v1520 = vadd.f32 %v1237, %v1438
      %v1521 = vadd.f32 %v1238, %v1440
      %v1522 = vadd.f32 %v1239, %v1442
      %v1523 = vadd.f32 %v1240, %v1444
      %v1524 = vadd.f32 %v1241, %v1446
      %v1525 = vadd.f32 %v1242, %v1448
      %v1526 = vadd.f32 %v1243, %v1450
      %v1527 = vadd.f32 %v1244, %v1452
      %v1528 = vadd.f32 %v1245, %v1454
      %v1529 = vadd.f32 %v1246, %v1456
      %v1530 = vadd.f32 %v1247, %v1458
      %v1531 = vadd.f32 %v1248, %v1460
      %v1532 = vadd.f32 %v1249, %v1462
      %v1533 = vadd.f32 %v1250, %v1464
      %v1534 = vadd.f32 %v1251, %v1466
      %vm1535 = vcmask 64512
      %1536 = vst.msk [vmem:[#allocation2] sm:$0xff] %vm1535, %v1501
      %1537 = vst.msk [vmem:[#allocation2 + $0x8] sm:$0xff] %vm1535, %v1502
      %1538 = vst.msk [vmem:[#allocation2 + $0x10] sm:$0xff] %vm1535, %v1503
      %1539 = vst.msk [vmem:[#allocation2 + $0x18] sm:$0xff] %vm1535, %v1504
      %1540 = vst.msk [vmem:[#allocation2 + $0x20] sm:$0xff] %vm1535, %v1505
      %1541 = vst.msk [vmem:[#allocation2 + $0x28] sm:$0xff] %vm1535, %v1506
      %1542 = vst.msk [vmem:[#allocation2 + $0x30] sm:$0xff] %vm1535, %v1507
      %1543 = vst.msk [vmem:[#allocation2 + $0x38] sm:$0xff] %vm1535, %v1508
      %1544 = vst.msk [vmem:[#allocation2 + $0x40] sm:$0xff] %vm1535, %v1509
      %1545 = vst.msk [vmem:[#allocation2 + $0x48] sm:$0xff] %vm1535, %v1510
      %1546 = vst.msk [vmem:[#allocation2 + $0x50] sm:$0xff] %vm1535, %v1511
      %1547 = vst.msk [vmem:[#allocation2 + $0x58] sm:$0xff] %vm1535, %v1512
      %1548 = vst.msk [vmem:[#allocation2 + $0x60] sm:$0xff] %vm1535, %v1513
      %1549 = vst.msk [vmem:[#allocation2 + $0x68] sm:$0xff] %vm1535, %v1514
      %1550 = vst.msk [vmem:[#allocation2 + $0x70] sm:$0xff] %vm1535, %v1515
      %1551 = vst.msk [vmem:[#allocation2 + $0x78] sm:$0xff] %vm1535, %v1516
      %1552 = vst.msk [vmem:[#allocation2 + $0x80] sm:$0xff] %vm1535, %v1517
      %1553 = vst.msk [vmem:[#allocation2 + $0x88] sm:$0xff] %vm1535, %v1518
      %1554 = vst.msk [vmem:[#allocation2 + $0x90] sm:$0xff] %vm1535, %v1519
      %1555 = vst.msk [vmem:[#allocation2 + $0x98] sm:$0xff] %vm1535, %v1520
      %1556 = vst.msk [vmem:[#allocation2 + $0xa0] sm:$0xff] %vm1535, %v1521
      %1557 = vst.msk [vmem:[#allocation2 + $0xa8] sm:$0xff] %vm1535, %v1522
      %1558 = vst.msk [vmem:[#allocation2 + $0xb0] sm:$0xff] %vm1535, %v1523
      %1559 = vst.msk [vmem:[#allocation2 + $0xb8] sm:$0xff] %vm1535, %v1524
      %1560 = vst.msk [vmem:[#allocation2 + $0xc0] sm:$0xff] %vm1535, %v1525
      %1561 = vst.msk [vmem:[#allocation2 + $0xc8] sm:$0xff] %vm1535, %v1526
      %1562 = vst.msk [vmem:[#allocation2 + $0xd0] sm:$0xff] %vm1535, %v1527
      %1563 = vst.msk [vmem:[#allocation2 + $0xd8] sm:$0xff] %vm1535, %v1528
      %1564 = vst.msk [vmem:[#allocation2 + $0xe0] sm:$0xff] %vm1535, %v1529
      %1565 = vst.msk [vmem:[#allocation2 + $0xe8] sm:$0xff] %vm1535, %v1530
      %1566 = vst.msk [vmem:[#allocation2 + $0xf0] sm:$0xff] %vm1535, %v1531
      %1567 = vst.msk [vmem:[#allocation2 + $0xf8] sm:$0xff] %vm1535, %v1532
      %1568 = vst.msk [vmem:[#allocation2 + $0x100] sm:$0xff] %vm1535, %v1533
      %1569 = vst.msk [vmem:[#allocation2 + $0x108] sm:$0xff] %vm1535, %v1534
      // Predicated region
      $region41: #{discriminator_forward.4} parent=35 // pred_check
        %p1570 = pneg %p284
      $region42: #{discriminator_forward.4} parent=35 // pred_check_branch
        %1572 = sbr.rel (%p1570) target = $region44
      $region43: #{discriminator_forward.4} parent=35 // pred_region
        %v1573 = vld [vmem:[%s274] sm:$0x1]
        %v1575 = vperm.slane %v1573, 0
        %v1577 = vadd.f32 %v1501, %v1575
        %v1578 = vadd.f32 %v1502, %v1575
        %v1579 = vadd.f32 %v1503, %v1575
        %v1580 = vadd.f32 %v1504, %v1575
        %v1581 = vadd.f32 %v1505, %v1575
        %v1582 = vadd.f32 %v1506, %v1575
        %v1583 = vadd.f32 %v1507, %v1575
        %v1584 = vadd.f32 %v1508, %v1575
        %v1585 = vadd.f32 %v1509, %v1575
        %v1586 = vadd.f32 %v1510, %v1575
        %v1587 = vadd.f32 %v1511, %v1575
        %v1588 = vadd.f32 %v1512, %v1575
        %v1589 = vadd.f32 %v1513, %v1575
        %v1590 = vadd.f32 %v1514, %v1575
        %v1591 = vadd.f32 %v1515, %v1575
        %v1592 = vadd.f32 %v1516, %v1575
        %v1593 = vadd.f32 %v1517, %v1575
        %v1594 = vadd.f32 %v1518, %v1575
        %v1595 = vadd.f32 %v1519, %v1575
        %v1596 = vadd.f32 %v1520, %v1575
        %v1597 = vadd.f32 %v1521, %v1575
        %v1598 = vadd.f32 %v1522, %v1575
        %v1599 = vadd.f32 %v1523, %v1575
        %v1600 = vadd.f32 %v1524, %v1575
        %v1601 = vadd.f32 %v1525, %v1575
        %v1602 = vadd.f32 %v1526, %v1575
        %v1603 = vadd.f32 %v1527, %v1575
        %v1604 = vadd.f32 %v1528, %v1575
        %v1605 = vadd.f32 %v1529, %v1575
        %v1606 = vadd.f32 %v1530, %v1575
        %v1607 = vadd.f32 %v1531, %v1575
        %v1608 = vadd.f32 %v1532, %v1575
        %v1609 = vadd.f32 %v1533, %v1575
        %v1610 = vadd.f32 %v1534, %v1575
        %v1611 = vld [vmem:[%s0] sm:$0xff]
        %v1612 = vld [vmem:[%s0 + $0x8] sm:$0xff]
        %v1613 = vld [vmem:[%s0 + $0x10] sm:$0xff]
        %v1614 = vld [vmem:[%s0 + $0x18] sm:$0xff]
        %v1615 = vld [vmem:[%s0 + $0x20] sm:$0xff]
        %v1616 = vld [vmem:[%s0 + $0x28] sm:$0xff]
        %v1617 = vld [vmem:[%s0 + $0x30] sm:$0xff]
        %v1618 = vld [vmem:[%s0 + $0x38] sm:$0xff]
        %v1619 = vld [vmem:[%s0 + $0x40] sm:$0xff]
        %v1620 = vld [vmem:[%s0 + $0x48] sm:$0xff]
        %v1621 = vld [vmem:[%s0 + $0x50] sm:$0xff]
        %v1622 = vld [vmem:[%s0 + $0x58] sm:$0xff]
        %v1623 = vld [vmem:[%s0 + $0x60] sm:$0xff]
        %v1624 = vld [vmem:[%s0 + $0x68] sm:$0xff]
        %v1625 = vld [vmem:[%s0 + $0x70] sm:$0xff]
        %v1626 = vld [vmem:[%s0 + $0x78] sm:$0xff]
        %v1627 = vld [vmem:[%s0 + $0x80] sm:$0xff]
        %v1628 = vld [vmem:[%s0 + $0x88] sm:$0xff]
        %v1629 = vld [vmem:[%s0 + $0x90] sm:$0xff]
        %v1630 = vld [vmem:[%s0 + $0x98] sm:$0xff]
        %v1631 = vld [vmem:[%s0 + $0xa0] sm:$0xff]
        %v1632 = vld [vmem:[%s0 + $0xa8] sm:$0xff]
        %v1633 = vld [vmem:[%s0 + $0xb0] sm:$0xff]
        %v1634 = vld [vmem:[%s0 + $0xb8] sm:$0xff]
        %v1635 = vld [vmem:[%s0 + $0xc0] sm:$0xff]
        %v1636 = vld [vmem:[%s0 + $0xc8] sm:$0xff]
        %v1637 = vld [vmem:[%s0 + $0xd0] sm:$0xff]
        %v1638 = vld [vmem:[%s0 + $0xd8] sm:$0xff]
        %v1639 = vld [vmem:[%s0 + $0xe0] sm:$0xff]
        %v1640 = vld [vmem:[%s0 + $0xe8] sm:$0xff]
        %v1641 = vld [vmem:[%s0 + $0xf0] sm:$0xff]
        %v1642 = vld [vmem:[%s0 + $0xf8] sm:$0xff]
        %v1643 = vld [vmem:[%s0 + $0x100] sm:$0xff]
        %v1644 = vld [vmem:[%s0 + $0x108] sm:$0xff]
        %1646 = vset.pattern.permute.xlu0 0
        %1647 = vperm.xlu0 %1646, %v1611
        %v1648 = vpop.permute.xlu0 %1647
        %1651 = vset.pattern.permute.xlu0 0
        %1652 = vperm.xlu0 %1651, %v1612
        %v1653 = vpop.permute.xlu0 %1652
        %1656 = vset.pattern.permute.xlu0 0
        %1657 = vperm.xlu0 %1656, %v1613
        %v1658 = vpop.permute.xlu0 %1657
        %1661 = vset.pattern.permute.xlu0 0
        %1662 = vperm.xlu0 %1661, %v1614
        %v1663 = vpop.permute.xlu0 %1662
        %1666 = vset.pattern.permute.xlu0 0
        %1667 = vperm.xlu0 %1666, %v1615
        %v1668 = vpop.permute.xlu0 %1667
        %1671 = vset.pattern.permute.xlu0 0
        %1672 = vperm.xlu0 %1671, %v1616
        %v1673 = vpop.permute.xlu0 %1672
        %1676 = vset.pattern.permute.xlu0 0
        %1677 = vperm.xlu0 %1676, %v1617
        %v1678 = vpop.permute.xlu0 %1677
        %1681 = vset.pattern.permute.xlu0 0
        %1682 = vperm.xlu0 %1681, %v1618
        %v1683 = vpop.permute.xlu0 %1682
        %1686 = vset.pattern.permute.xlu0 0
        %1687 = vperm.xlu0 %1686, %v1619
        %v1688 = vpop.permute.xlu0 %1687
        %1691 = vset.pattern.permute.xlu0 0
        %1692 = vperm.xlu0 %1691, %v1620
        %v1693 = vpop.permute.xlu0 %1692
        %1696 = vset.pattern.permute.xlu0 0
        %1697 = vperm.xlu0 %1696, %v1621
        %v1698 = vpop.permute.xlu0 %1697
        %1701 = vset.pattern.permute.xlu0 0
        %1702 = vperm.xlu0 %1701, %v1622
        %v1703 = vpop.permute.xlu0 %1702
        %1706 = vset.pattern.permute.xlu0 0
        %1707 = vperm.xlu0 %1706, %v1623
        %v1708 = vpop.permute.xlu0 %1707
        %1711 = vset.pattern.permute.xlu0 0
        %1712 = vperm.xlu0 %1711, %v1624
        %v1713 = vpop.permute.xlu0 %1712
        %1716 = vset.pattern.permute.xlu0 0
        %1717 = vperm.xlu0 %1716, %v1625
        %v1718 = vpop.permute.xlu0 %1717
        %1721 = vset.pattern.permute.xlu0 0
        %1722 = vperm.xlu0 %1721, %v1626
        %v1723 = vpop.permute.xlu0 %1722
        %1726 = vset.pattern.permute.xlu0 0
        %1727 = vperm.xlu0 %1726, %v1627
        %v1728 = vpop.permute.xlu0 %1727
        %1731 = vset.pattern.permute.xlu0 0
        %1732 = vperm.xlu0 %1731, %v1628
        %v1733 = vpop.permute.xlu0 %1732
        %1736 = vset.pattern.permute.xlu0 0
        %1737 = vperm.xlu0 %1736, %v1629
        %v1738 = vpop.permute.xlu0 %1737
        %1741 = vset.pattern.permute.xlu0 0
        %1742 = vperm.xlu0 %1741, %v1630
        %v1743 = vpop.permute.xlu0 %1742
        %1746 = vset.pattern.permute.xlu0 0
        %1747 = vperm.xlu0 %1746, %v1631
        %v1748 = vpop.permute.xlu0 %1747
        %1751 = vset.pattern.permute.xlu0 0
        %1752 = vperm.xlu0 %1751, %v1632
        %v1753 = vpop.permute.xlu0 %1752
        %1756 = vset.pattern.permute.xlu0 0
        %1757 = vperm.xlu0 %1756, %v1633
        %v1758 = vpop.permute.xlu0 %1757
        %1761 = vset.pattern.permute.xlu0 0
        %1762 = vperm.xlu0 %1761, %v1634
        %v1763 = vpop.permute.xlu0 %1762
        %1766 = vset.pattern.permute.xlu0 0
        %1767 = vperm.xlu0 %1766, %v1635
        %v1768 = vpop.permute.xlu0 %1767
        %1771 = vset.pattern.permute.xlu0 0
        %1772 = vperm.xlu0 %1771, %v1636
        %v1773 = vpop.permute.xlu0 %1772
        %1776 = vset.pattern.permute.xlu0 0
        %1777 = vperm.xlu0 %1776, %v1637
        %v1778 = vpop.permute.xlu0 %1777
        %1781 = vset.pattern.permute.xlu0 0
        %1782 = vperm.xlu0 %1781, %v1638
        %v1783 = vpop.permute.xlu0 %1782
        %1786 = vset.pattern.permute.xlu0 0
        %1787 = vperm.xlu0 %1786, %v1639
        %v1788 = vpop.permute.xlu0 %1787
        %1791 = vset.pattern.permute.xlu0 0
        %1792 = vperm.xlu0 %1791, %v1640
        %v1793 = vpop.permute.xlu0 %1792
        %1796 = vset.pattern.permute.xlu0 0
        %1797 = vperm.xlu0 %1796, %v1641
        %v1798 = vpop.permute.xlu0 %1797
        %1801 = vset.pattern.permute.xlu0 0
        %1802 = vperm.xlu0 %1801, %v1642
        %v1803 = vpop.permute.xlu0 %1802
        %1806 = vset.pattern.permute.xlu0 0
        %1807 = vperm.xlu0 %1806, %v1643
        %v1808 = vpop.permute.xlu0 %1807
        %1811 = vset.pattern.permute.xlu0 0
        %1812 = vperm.xlu0 %1811, %v1644
        %v1813 = vpop.permute.xlu0 %1812
        %v1815 = vmul.f32 %v1577, %v1648
        %v1816 = vmul.f32 %v1578, %v1653
        %v1817 = vmul.f32 %v1579, %v1658
        %v1818 = vmul.f32 %v1580, %v1663
        %v1819 = vmul.f32 %v1581, %v1668
        %v1820 = vmul.f32 %v1582, %v1673
        %v1821 = vmul.f32 %v1583, %v1678
        %v1822 = vmul.f32 %v1584, %v1683
        %v1823 = vmul.f32 %v1585, %v1688
        %v1824 = vmul.f32 %v1586, %v1693
        %v1825 = vmul.f32 %v1587, %v1698
        %v1826 = vmul.f32 %v1588, %v1703
        %v1827 = vmul.f32 %v1589, %v1708
        %v1828 = vmul.f32 %v1590, %v1713
        %v1829 = vmul.f32 %v1591, %v1718
        %v1830 = vmul.f32 %v1592, %v1723
        %v1831 = vmul.f32 %v1593, %v1728
        %v1832 = vmul.f32 %v1594, %v1733
        %v1833 = vmul.f32 %v1595, %v1738
        %v1834 = vmul.f32 %v1596, %v1743
        %v1835 = vmul.f32 %v1597, %v1748
        %v1836 = vmul.f32 %v1598, %v1753
        %v1837 = vmul.f32 %v1599, %v1758
        %v1838 = vmul.f32 %v1600, %v1763
        %v1839 = vmul.f32 %v1601, %v1768
        %v1840 = vmul.f32 %v1602, %v1773
        %v1841 = vmul.f32 %v1603, %v1778
        %v1842 = vmul.f32 %v1604, %v1783
        %v1843 = vmul.f32 %v1605, %v1788
        %v1844 = vmul.f32 %v1606, %v1793
        %v1845 = vmul.f32 %v1607, %v1798
        %v1846 = vmul.f32 %v1608, %v1803
        %v1847 = vmul.f32 %v1609, %v1808
        %v1848 = vmul.f32 %v1610, %v1813
        %v1849 = vsel %vm1535, %v1815, 0.0
        %v1850 = vsel %vm1535, %v1816, 0.0
        %v1851 = vadd.f32 %v1849, %v1850
        %v1852 = vsel %vm1535, %v1817, 0.0
        %v1853 = vadd.f32 %v1851, %v1852
        %v1854 = vsel %vm1535, %v1818, 0.0
        %v1855 = vadd.f32 %v1853, %v1854
        %v1856 = vsel %vm1535, %v1819, 0.0
        %v1857 = vadd.f32 %v1855, %v1856
        %v1858 = vsel %vm1535, %v1820, 0.0
        %v1859 = vadd.f32 %v1857, %v1858
        %v1860 = vsel %vm1535, %v1821, 0.0
        %v1861 = vadd.f32 %v1859, %v1860
        %v1862 = vsel %vm1535, %v1822, 0.0
        %v1863 = vadd.f32 %v1861, %v1862
        %v1864 = vsel %vm1535, %v1823, 0.0
        %v1865 = vadd.f32 %v1863, %v1864
        %v1866 = vsel %vm1535, %v1824, 0.0
        %v1867 = vadd.f32 %v1865, %v1866
        %v1868 = vsel %vm1535, %v1825, 0.0
        %v1869 = vadd.f32 %v1867, %v1868
        %v1870 = vsel %vm1535, %v1826, 0.0
        %v1871 = vadd.f32 %v1869, %v1870
        %v1872 = vsel %vm1535, %v1827, 0.0
        %v1873 = vadd.f32 %v1871, %v1872
        %v1874 = vsel %vm1535, %v1828, 0.0
        %v1875 = vadd.f32 %v1873, %v1874
        %v1876 = vsel %vm1535, %v1829, 0.0
        %v1877 = vadd.f32 %v1875, %v1876
        %v1878 = vsel %vm1535, %v1830, 0.0
        %v1879 = vadd.f32 %v1877, %v1878
        %v1880 = vsel %vm1535, %v1831, 0.0
        %v1881 = vadd.f32 %v1879, %v1880
        %v1882 = vsel %vm1535, %v1832, 0.0
        %v1883 = vadd.f32 %v1881, %v1882
        %v1884 = vsel %vm1535, %v1833, 0.0
        %v1885 = vadd.f32 %v1883, %v1884
        %v1886 = vsel %vm1535, %v1834, 0.0
        %v1887 = vadd.f32 %v1885, %v1886
        %v1888 = vsel %vm1535, %v1835, 0.0
        %v1889 = vadd.f32 %v1887, %v1888
        %v1890 = vsel %vm1535, %v1836, 0.0
        %v1891 = vadd.f32 %v1889, %v1890
        %v1892 = vsel %vm1535, %v1837, 0.0
        %v1893 = vadd.f32 %v1891, %v1892
        %v1894 = vsel %vm1535, %v1838, 0.0
        %v1895 = vadd.f32 %v1893, %v1894
        %v1896 = vsel %vm1535, %v1839, 0.0
        %v1897 = vadd.f32 %v1895, %v1896
        %v1898 = vsel %vm1535, %v1840, 0.0
        %v1899 = vadd.f32 %v1897, %v1898
        %v1900 = vsel %vm1535, %v1841, 0.0
        %v1901 = vadd.f32 %v1899, %v1900
        %v1902 = vsel %vm1535, %v1842, 0.0
        %v1903 = vadd.f32 %v1901, %v1902
        %v1904 = vsel %vm1535, %v1843, 0.0
        %v1905 = vadd.f32 %v1903, %v1904
        %v1906 = vsel %vm1535, %v1844, 0.0
        %v1907 = vadd.f32 %v1905, %v1906
        %v1908 = vsel %vm1535, %v1845, 0.0
        %v1909 = vadd.f32 %v1907, %v1908
        %v1910 = vsel %vm1535, %v1846, 0.0
        %v1911 = vadd.f32 %v1909, %v1910
        %v1912 = vsel %vm1535, %v1847, 0.0
        %v1913 = vadd.f32 %v1911, %v1912
        %v1914 = vsel %vm1535, %v1848, 0.0
        %v1915 = vadd.f32 %v1913, %v1914
        %v1916 = vrot.slane %v1915, 4
        %v1917 = vadd.f32 %v1915, %v1916
        %v1918 = vrot.slane %v1917, 2
        %v1919 = vadd.f32 %v1917, %v1918
        %v1920 = vrot.slane %v1919, 1
        %v1921 = vadd.f32 %v1919, %v1920
        %v1922 = vmul.f32 %v1921, 0.00390625
        %v1923 = vsub.f32 %v1577, %v1922
        %v1924 = vsub.f32 %v1578, %v1922
        %v1925 = vsub.f32 %v1579, %v1922
        %v1926 = vsub.f32 %v1580, %v1922
        %v1927 = vsub.f32 %v1581, %v1922
        %v1928 = vsub.f32 %v1582, %v1922
        %v1929 = vsub.f32 %v1583, %v1922
        %v1930 = vsub.f32 %v1584, %v1922
        %v1931 = vsub.f32 %v1585, %v1922
        %v1932 = vsub.f32 %v1586, %v1922
        %v1933 = vsub.f32 %v1587, %v1922
        %v1934 = vsub.f32 %v1588, %v1922
        %v1935 = vsub.f32 %v1589, %v1922
        %v1936 = vsub.f32 %v1590, %v1922
        %v1937 = vsub.f32 %v1591, %v1922
        %v1938 = vsub.f32 %v1592, %v1922
        %v1939 = vsub.f32 %v1593, %v1922
        %v1940 = vsub.f32 %v1594, %v1922
        %v1941 = vsub.f32 %v1595, %v1922
        %v1942 = vsub.f32 %v1596, %v1922
        %v1943 = vsub.f32 %v1597, %v1922
        %v1944 = vsub.f32 %v1598, %v1922
        %v1945 = vsub.f32 %v1599, %v1922
        %v1946 = vsub.f32 %v1600, %v1922
        %v1947 = vsub.f32 %v1601, %v1922
        %v1948 = vsub.f32 %v1602, %v1922
        %v1949 = vsub.f32 %v1603, %v1922
        %v1950 = vsub.f32 %v1604, %v1922
        %v1951 = vsub.f32 %v1605, %v1922
        %v1952 = vsub.f32 %v1606, %v1922
        %v1953 = vsub.f32 %v1607, %v1922
        %v1954 = vsub.f32 %v1608, %v1922
        %v1955 = vsub.f32 %v1609, %v1922
        %v1956 = vsub.f32 %v1610, %v1922
        %v1957 = vmul.f32 %v1923, %v1923
        %v1958 = vmul.f32 %v1924, %v1924
        %v1959 = vmul.f32 %v1925, %v1925
        %v1960 = vmul.f32 %v1926, %v1926
        %v1961 = vmul.f32 %v1927, %v1927
        %v1962 = vmul.f32 %v1928, %v1928
        %v1963 = vmul.f32 %v1929, %v1929
        %v1964 = vmul.f32 %v1930, %v1930
        %v1965 = vmul.f32 %v1931, %v1931
        %v1966 = vmul.f32 %v1932, %v1932
        %v1967 = vmul.f32 %v1933, %v1933
        %v1968 = vmul.f32 %v1934, %v1934
        %v1969 = vmul.f32 %v1935, %v1935
        %v1970 = vmul.f32 %v1936, %v1936
        %v1971 = vmul.f32 %v1937, %v1937
        %v1972 = vmul.f32 %v1938, %v1938
        %v1973 = vmul.f32 %v1939, %v1939
        %v1974 = vmul.f32 %v1940, %v1940
        %v1975 = vmul.f32 %v1941, %v1941
        %v1976 = vmul.f32 %v1942, %v1942
        %v1977 = vmul.f32 %v1943, %v1943
        %v1978 = vmul.f32 %v1944, %v1944
        %v1979 = vmul.f32 %v1945, %v1945
        %v1980 = vmul.f32 %v1946, %v1946
        %v1981 = vmul.f32 %v1947, %v1947
        %v1982 = vmul.f32 %v1948, %v1948
        %v1983 = vmul.f32 %v1949, %v1949
        %v1984 = vmul.f32 %v1950, %v1950
        %v1985 = vmul.f32 %v1951, %v1951
        %v1986 = vmul.f32 %v1952, %v1952
        %v1987 = vmul.f32 %v1953, %v1953
        %v1988 = vmul.f32 %v1954, %v1954
        %v1989 = vmul.f32 %v1955, %v1955
        %v1990 = vmul.f32 %v1956, %v1956
        %v1991 = vmul.f32 %v1957, %v1648
        %v1992 = vmul.f32 %v1958, %v1653
        %v1993 = vmul.f32 %v1959, %v1658
        %v1994 = vmul.f32 %v1960, %v1663
        %v1995 = vmul.f32 %v1961, %v1668
        %v1996 = vmul.f32 %v1962, %v1673
        %v1997 = vmul.f32 %v1963, %v1678
        %v1998 = vmul.f32 %v1964, %v1683
        %v1999 = vmul.f32 %v1965, %v1688
        %v2000 = vmul.f32 %v1966, %v1693
        %v2001 = vmul.f32 %v1967, %v1698
        %v2002 = vmul.f32 %v1968, %v1703
        %v2003 = vmul.f32 %v1969, %v1708
        %v2004 = vmul.f32 %v1970, %v1713
        %v2005 = vmul.f32 %v1971, %v1718
        %v2006 = vmul.f32 %v1972, %v1723
        %v2007 = vmul.f32 %v1973, %v1728
        %v2008 = vmul.f32 %v1974, %v1733
        %v2009 = vmul.f32 %v1975, %v1738
        %v2010 = vmul.f32 %v1976, %v1743
        %v2011 = vmul.f32 %v1977, %v1748
        %v2012 = vmul.f32 %v1978, %v1753
        %v2013 = vmul.f32 %v1979, %v1758
        %v2014 = vmul.f32 %v1980, %v1763
        %v2015 = vmul.f32 %v1981, %v1768
        %v2016 = vmul.f32 %v1982, %v1773
        %v2017 = vmul.f32 %v1983, %v1778
        %v2018 = vmul.f32 %v1984, %v1783
        %v2019 = vmul.f32 %v1985, %v1788
        %v2020 = vmul.f32 %v1986, %v1793
        %v2021 = vmul.f32 %v1987, %v1798
        %v2022 = vmul.f32 %v1988, %v1803
        %v2023 = vmul.f32 %v1989, %v1808
        %v2024 = vmul.f32 %v1990, %v1813
        %v2025 = vsel %vm1535, %v1991, 0.0
        %v2026 = vsel %vm1535, %v1992, 0.0
        %v2027 = vadd.f32 %v2025, %v2026
        %v2028 = vsel %vm1535, %v1993, 0.0
        %v2029 = vadd.f32 %v2027, %v2028
        %v2030 = vsel %vm1535, %v1994, 0.0
        %v2031 = vadd.f32 %v2029, %v2030
        %v2032 = vsel %vm1535, %v1995, 0.0
        %v2033 = vadd.f32 %v2031, %v2032
        %v2034 = vsel %vm1535, %v1996, 0.0
        %v2035 = vadd.f32 %v2033, %v2034
        %v2036 = vsel %vm1535, %v1997, 0.0
        %v2037 = vadd.f32 %v2035, %v2036
        %v2038 = vsel %vm1535, %v1998, 0.0
        %v2039 = vadd.f32 %v2037, %v2038
        %v2040 = vsel %vm1535, %v1999, 0.0
        %v2041 = vadd.f32 %v2039, %v2040
        %v2042 = vsel %vm1535, %v2000, 0.0
        %v2043 = vadd.f32 %v2041, %v2042
        %v2044 = vsel %vm1535, %v2001, 0.0
        %v2045 = vadd.f32 %v2043, %v2044
        %v2046 = vsel %vm1535, %v2002, 0.0
        %v2047 = vadd.f32 %v2045, %v2046
        %v2048 = vsel %vm1535, %v2003, 0.0
        %v2049 = vadd.f32 %v2047, %v2048
        %v2050 = vsel %vm1535, %v2004, 0.0
        %v2051 = vadd.f32 %v2049, %v2050
        %v2052 = vsel %vm1535, %v2005, 0.0
        %v2053 = vadd.f32 %v2051, %v2052
        %v2054 = vsel %vm1535, %v2006, 0.0
        %v2055 = vadd.f32 %v2053, %v2054
        %v2056 = vsel %vm1535, %v2007, 0.0
        %v2057 = vadd.f32 %v2055, %v2056
        %v2058 = vsel %vm1535, %v2008, 0.0
        %v2059 = vadd.f32 %v2057, %v2058
        %v2060 = vsel %vm1535, %v2009, 0.0
        %v2061 = vadd.f32 %v2059, %v2060
        %v2062 = vsel %vm1535, %v2010, 0.0
        %v2063 = vadd.f32 %v2061, %v2062
        %v2064 = vsel %vm1535, %v2011, 0.0
        %v2065 = vadd.f32 %v2063, %v2064
        %v2066 = vsel %vm1535, %v2012, 0.0
        %v2067 = vadd.f32 %v2065, %v2066
        %v2068 = vsel %vm1535, %v2013, 0.0
        %v2069 = vadd.f32 %v2067, %v2068
        %v2070 = vsel %vm1535, %v2014, 0.0
        %v2071 = vadd.f32 %v2069, %v2070
        %v2072 = vsel %vm1535, %v2015, 0.0
        %v2073 = vadd.f32 %v2071, %v2072
        %v2074 = vsel %vm1535, %v2016, 0.0
        %v2075 = vadd.f32 %v2073, %v2074
        %v2076 = vsel %vm1535, %v2017, 0.0
        %v2077 = vadd.f32 %v2075, %v2076
        %v2078 = vsel %vm1535, %v2018, 0.0
        %v2079 = vadd.f32 %v2077, %v2078
        %v2080 = vsel %vm1535, %v2019, 0.0
        %v2081 = vadd.f32 %v2079, %v2080
        %v2082 = vsel %vm1535, %v2020, 0.0
        %v2083 = vadd.f32 %v2081, %v2082
        %v2084 = vsel %vm1535, %v2021, 0.0
        %v2085 = vadd.f32 %v2083, %v2084
        %v2086 = vsel %vm1535, %v2022, 0.0
        %v2087 = vadd.f32 %v2085, %v2086
        %v2088 = vsel %vm1535, %v2023, 0.0
        %v2089 = vadd.f32 %v2087, %v2088
        %v2090 = vsel %vm1535, %v2024, 0.0
        %v2091 = vadd.f32 %v2089, %v2090
        %v2092 = vrot.slane %v2091, 4
        %v2093 = vadd.f32 %v2091, %v2092
        %v2094 = vrot.slane %v2093, 2
        %v2095 = vadd.f32 %v2093, %v2094
        %v2096 = vrot.slane %v2095, 1
        %v2097 = vadd.f32 %v2095, %v2096
        %v2098 = vmul.f32 %v2097, 0.00390625
        %v2099 = vadd.f32 %v2098, 1e-05
        %v2100 = vrsqrt.pop %v2099
        %v2101 = vmul.f32 %v2100, %v2099
        %v2102 = vmul.f32 %v2101, %v2100
        %v2103 = vmul.f32 0.5, %v2102
        %v2104 = vsub.f32 1.5, %v2103
        %v2105 = vmul.f32 %v2100, %v2104
        %vm2106 = vweird.f32 %v2099
        %vm2107 = vweird.f32 %v2100
        %vm2108 = vmor %vm2106, %vm2107
        %v2109 = vsel %vm2108, %v2100, %v2105
        %v2110 = vmul.f32 %v1923, %v2109
        %v2111 = vmul.f32 %v1924, %v2109
        %v2112 = vmul.f32 %v1925, %v2109
        %v2113 = vmul.f32 %v1926, %v2109
        %v2114 = vmul.f32 %v1927, %v2109
        %v2115 = vmul.f32 %v1928, %v2109
        %v2116 = vmul.f32 %v1929, %v2109
        %v2117 = vmul.f32 %v1930, %v2109
        %v2118 = vmul.f32 %v1931, %v2109
        %v2119 = vmul.f32 %v1932, %v2109
        %v2120 = vmul.f32 %v1933, %v2109
        %v2121 = vmul.f32 %v1934, %v2109
        %v2122 = vmul.f32 %v1935, %v2109
        %v2123 = vmul.f32 %v1936, %v2109
        %v2124 = vmul.f32 %v1937, %v2109
        %v2125 = vmul.f32 %v1938, %v2109
        %v2126 = vmul.f32 %v1939, %v2109
        %v2127 = vmul.f32 %v1940, %v2109
        %v2128 = vmul.f32 %v1941, %v2109
        %v2129 = vmul.f32 %v1942, %v2109
        %v2130 = vmul.f32 %v1943, %v2109
        %v2131 = vmul.f32 %v1944, %v2109
        %v2132 = vmul.f32 %v1945, %v2109
        %v2133 = vmul.f32 %v1946, %v2109
        %v2134 = vmul.f32 %v1947, %v2109
        %v2135 = vmul.f32 %v1948, %v2109
        %v2136 = vmul.f32 %v1949, %v2109
        %v2137 = vmul.f32 %v1950, %v2109
        %v2138 = vmul.f32 %v1951, %v2109
        %v2139 = vmul.f32 %v1952, %v2109
        %v2140 = vmul.f32 %v1953, %v2109
        %v2141 = vmul.f32 %v1954, %v2109
        %v2142 = vmul.f32 %v1955, %v2109
        %v2143 = vmul.f32 %v1956, %v2109
        %vm2144 = vcmp.ge.f32.partialorder %v2110, 0.0
        %vm2145 = vcmp.ge.f32.partialorder %v2111, 0.0
        %vm2146 = vcmp.ge.f32.partialorder %v2112, 0.0
        %vm2147 = vcmp.ge.f32.partialorder %v2113, 0.0
        %vm2148 = vcmp.ge.f32.partialorder %v2114, 0.0
        %vm2149 = vcmp.ge.f32.partialorder %v2115, 0.0
        %vm2150 = vcmp.ge.f32.partialorder %v2116, 0.0
        %vm2151 = vcmp.ge.f32.partialorder %v2117, 0.0
        %vm2152 = vcmp.ge.f32.partialorder %v2118, 0.0
        %vm2153 = vcmp.ge.f32.partialorder %v2119, 0.0
        %vm2154 = vcmp.ge.f32.partialorder %v2120, 0.0
        %vm2155 = vcmp.ge.f32.partialorder %v2121, 0.0
        %vm2156 = vcmp.ge.f32.partialorder %v2122, 0.0
        %vm2157 = vcmp.ge.f32.partialorder %v2123, 0.0
        %vm2158 = vcmp.ge.f32.partialorder %v2124, 0.0
        %vm2159 = vcmp.ge.f32.partialorder %v2125, 0.0
        %vm2160 = vcmp.ge.f32.partialorder %v2126, 0.0
        %vm2161 = vcmp.ge.f32.partialorder %v2127, 0.0
        %vm2162 = vcmp.ge.f32.partialorder %v2128, 0.0
        %vm2163 = vcmp.ge.f32.partialorder %v2129, 0.0
        %vm2164 = vcmp.ge.f32.partialorder %v2130, 0.0
        %vm2165 = vcmp.ge.f32.partialorder %v2131, 0.0
        %vm2166 = vcmp.ge.f32.partialorder %v2132, 0.0
        %vm2167 = vcmp.ge.f32.partialorder %v2133, 0.0
        %vm2168 = vcmp.ge.f32.partialorder %v2134, 0.0
        %vm2169 = vcmp.ge.f32.partialorder %v2135, 0.0
        %vm2170 = vcmp.ge.f32.partialorder %v2136, 0.0
        %vm2171 = vcmp.ge.f32.partialorder %v2137, 0.0
        %vm2172 = vcmp.ge.f32.partialorder %v2138, 0.0
        %vm2173 = vcmp.ge.f32.partialorder %v2139, 0.0
        %vm2174 = vcmp.ge.f32.partialorder %v2140, 0.0
        %vm2175 = vcmp.ge.f32.partialorder %v2141, 0.0
        %vm2176 = vcmp.ge.f32.partialorder %v2142, 0.0
        %vm2177 = vcmp.ge.f32.partialorder %v2143, 0.0
        %v2178 = vmul.f32 %v2110, 0.2
        %v2179 = vmul.f32 %v2111, 0.2
        %v2180 = vmul.f32 %v2112, 0.2
        %v2181 = vmul.f32 %v2113, 0.2
        %v2182 = vmul.f32 %v2114, 0.2
        %v2183 = vmul.f32 %v2115, 0.2
        %v2184 = vmul.f32 %v2116, 0.2
        %v2185 = vmul.f32 %v2117, 0.2
        %v2186 = vmul.f32 %v2118, 0.2
        %v2187 = vmul.f32 %v2119, 0.2
        %v2188 = vmul.f32 %v2120, 0.2
        %v2189 = vmul.f32 %v2121, 0.2
        %v2190 = vmul.f32 %v2122, 0.2
        %v2191 = vmul.f32 %v2123, 0.2
        %v2192 = vmul.f32 %v2124, 0.2
        %v2193 = vmul.f32 %v2125, 0.2
        %v2194 = vmul.f32 %v2126, 0.2
        %v2195 = vmul.f32 %v2127, 0.2
        %v2196 = vmul.f32 %v2128, 0.2
        %v2197 = vmul.f32 %v2129, 0.2
        %v2198 = vmul.f32 %v2130, 0.2
        %v2199 = vmul.f32 %v2131, 0.2
        %v2200 = vmul.f32 %v2132, 0.2
        %v2201 = vmul.f32 %v2133, 0.2
        %v2202 = vmul.f32 %v2134, 0.2
        %v2203 = vmul.f32 %v2135, 0.2
        %v2204 = vmul.f32 %v2136, 0.2
        %v2205 = vmul.f32 %v2137, 0.2
        %v2206 = vmul.f32 %v2138, 0.2
        %v2207 = vmul.f32 %v2139, 0.2
        %v2208 = vmul.f32 %v2140, 0.2
        %v2209 = vmul.f32 %v2141, 0.2
        %v2210 = vmul.f32 %v2142, 0.2
        %v2211 = vmul.f32 %v2143, 0.2
        %v2212 = vsel %vm2144, %v2110, %v2178
        %v2213 = vsel %vm2145, %v2111, %v2179
        %v2214 = vsel %vm2146, %v2112, %v2180
        %v2215 = vsel %vm2147, %v2113, %v2181
        %v2216 = vsel %vm2148, %v2114, %v2182
        %v2217 = vsel %vm2149, %v2115, %v2183
        %v2218 = vsel %vm2150, %v2116, %v2184
        %v2219 = vsel %vm2151, %v2117, %v2185
        %v2220 = vsel %vm2152, %v2118, %v2186
        %v2221 = vsel %vm2153, %v2119, %v2187
        %v2222 = vsel %vm2154, %v2120, %v2188
        %v2223 = vsel %vm2155, %v2121, %v2189
        %v2224 = vsel %vm2156, %v2122, %v2190
        %v2225 = vsel %vm2157, %v2123, %v2191
        %v2226 = vsel %vm2158, %v2124, %v2192
        %v2227 = vsel %vm2159, %v2125, %v2193
        %v2228 = vsel %vm2160, %v2126, %v2194
        %v2229 = vsel %vm2161, %v2127, %v2195
        %v2230 = vsel %vm2162, %v2128, %v2196
        %v2231 = vsel %vm2163, %v2129, %v2197
        %v2232 = vsel %vm2164, %v2130, %v2198
        %v2233 = vsel %vm2165, %v2131, %v2199
        %v2234 = vsel %vm2166, %v2132, %v2200
        %v2235 = vsel %vm2167, %v2133, %v2201
        %v2236 = vsel %vm2168, %v2134, %v2202
        %v2237 = vsel %vm2169, %v2135, %v2203
        %v2238 = vsel %vm2170, %v2136, %v2204
        %v2239 = vsel %vm2171, %v2137, %v2205
        %v2240 = vsel %vm2172, %v2138, %v2206
        %v2241 = vsel %vm2173, %v2139, %v2207
        %v2242 = vsel %vm2174, %v2140, %v2208
        %v2243 = vsel %vm2175, %v2141, %v2209
        %v2244 = vsel %vm2176, %v2142, %v2210
        %v2245 = vsel %vm2177, %v2143, %v2211
        %v2246 = vpack.c.bf16 %v2212, %v2212
        %v2247 = vpack.c.bf16 %v2213, %v2213
        %v2248 = vpack.c.bf16 %v2214, %v2214
        %v2249 = vpack.c.bf16 %v2215, %v2215
        %v2250 = vpack.c.bf16 %v2216, %v2216
        %v2251 = vpack.c.bf16 %v2217, %v2217
        %v2252 = vpack.c.bf16 %v2218, %v2218
        %v2253 = vpack.c.bf16 %v2219, %v2219
        %v2254 = vpack.c.bf16 %v2220, %v2220
        %v2255 = vpack.c.bf16 %v2221, %v2221
        %v2256 = vpack.c.bf16 %v2222, %v2222
        %v2257 = vpack.c.bf16 %v2223, %v2223
        %v2258 = vpack.c.bf16 %v2224, %v2224
        %v2259 = vpack.c.bf16 %v2225, %v2225
        %v2260 = vpack.c.bf16 %v2226, %v2226
        %v2261 = vpack.c.bf16 %v2227, %v2227
        %v2262 = vpack.c.bf16 %v2228, %v2228
        %v2263 = vpack.c.bf16 %v2229, %v2229
        %v2264 = vpack.c.bf16 %v2230, %v2230
        %v2265 = vpack.c.bf16 %v2231, %v2231
        %v2266 = vpack.c.bf16 %v2232, %v2232
        %v2267 = vpack.c.bf16 %v2233, %v2233
        %v2268 = vpack.c.bf16 %v2234, %v2234
        %v2269 = vpack.c.bf16 %v2235, %v2235
        %v2270 = vpack.c.bf16 %v2236, %v2236
        %v2271 = vpack.c.bf16 %v2237, %v2237
        %v2272 = vpack.c.bf16 %v2238, %v2238
        %v2273 = vpack.c.bf16 %v2239, %v2239
        %v2274 = vpack.c.bf16 %v2240, %v2240
        %v2275 = vpack.c.bf16 %v2241, %v2241
        %v2276 = vpack.c.bf16 %v2242, %v2242
        %v2277 = vpack.c.bf16 %v2243, %v2243
        %v2278 = vpack.c.bf16 %v2244, %v2244
        %v2279 = vpack.c.bf16 %v2245, %v2245
        %vm2280 = vcmask 60416
        %2281 = vst.msk [vmem:[%s282] sm:$0xf] %vm2280, %v2246
        %2282 = vst.msk [vmem:[%s282 + $0x4] sm:$0xf] %vm2280, %v2247
        %2283 = vst.msk [vmem:[%s282 + $0x8] sm:$0xf] %vm2280, %v2248
        %2284 = vst.msk [vmem:[%s282 + $0xc] sm:$0xf] %vm2280, %v2249
        %2285 = vst.msk [vmem:[%s282 + $0x10] sm:$0xf] %vm2280, %v2250
        %2286 = vst.msk [vmem:[%s282 + $0x14] sm:$0xf] %vm2280, %v2251
        %2287 = vst.msk [vmem:[%s282 + $0x18] sm:$0xf] %vm2280, %v2252
        %2288 = vst.msk [vmem:[%s282 + $0x1c] sm:$0xf] %vm2280, %v2253
        %2289 = vst.msk [vmem:[%s282 + $0x20] sm:$0xf] %vm2280, %v2254
        %2290 = vst.msk [vmem:[%s282 + $0x24] sm:$0xf] %vm2280, %v2255
        %2291 = vst.msk [vmem:[%s282 + $0x28] sm:$0xf] %vm2280, %v2256
        %2292 = vst.msk [vmem:[%s282 + $0x2c] sm:$0xf] %vm2280, %v2257
        %2293 = vst.msk [vmem:[%s282 + $0x30] sm:$0xf] %vm2280, %v2258
        %2294 = vst.msk [vmem:[%s282 + $0x34] sm:$0xf] %vm2280, %v2259
        %2295 = vst.msk [vmem:[%s282 + $0x38] sm:$0xf] %vm2280, %v2260
        %2296 = vst.msk [vmem:[%s282 + $0x3c] sm:$0xf] %vm2280, %v2261
        %2297 = vst.msk [vmem:[%s282 + $0x40] sm:$0xf] %vm2280, %v2262
        %2298 = vst.msk [vmem:[%s282 + $0x44] sm:$0xf] %vm2280, %v2263
        %2299 = vst.msk [vmem:[%s282 + $0x48] sm:$0xf] %vm2280, %v2264
        %2300 = vst.msk [vmem:[%s282 + $0x4c] sm:$0xf] %vm2280, %v2265
        %2301 = vst.msk [vmem:[%s282 + $0x50] sm:$0xf] %vm2280, %v2266
        %2302 = vst.msk [vmem:[%s282 + $0x54] sm:$0xf] %vm2280, %v2267
        %2303 = vst.msk [vmem:[%s282 + $0x58] sm:$0xf] %vm2280, %v2268
        %2304 = vst.msk [vmem:[%s282 + $0x5c] sm:$0xf] %vm2280, %v2269
        %2305 = vst.msk [vmem:[%s282 + $0x60] sm:$0xf] %vm2280, %v2270
        %2306 = vst.msk [vmem:[%s282 + $0x64] sm:$0xf] %vm2280, %v2271
        %2307 = vst.msk [vmem:[%s282 + $0x68] sm:$0xf] %vm2280, %v2272
        %2308 = vst.msk [vmem:[%s282 + $0x6c] sm:$0xf] %vm2280, %v2273
        %2309 = vst.msk [vmem:[%s282 + $0x70] sm:$0xf] %vm2280, %v2274
        %2310 = vst.msk [vmem:[%s282 + $0x74] sm:$0xf] %vm2280, %v2275
        %2311 = vst.msk [vmem:[%s282 + $0x78] sm:$0xf] %vm2280, %v2276
        %2312 = vst.msk [vmem:[%s282 + $0x7c] sm:$0xf] %vm2280, %v2277
        %2313 = vst.msk [vmem:[%s282 + $0x80] sm:$0xf] %vm2280, %v2278
        %2314 = vst.msk [vmem:[%s282 + $0x84] sm:$0xf] %vm2280, %v2279
      $region44: #{discriminator_forward.4} parent=35 // pred_fallthru
        _
      %p2315 = scmp.lt.s32.totalorder %s21, 1
      %s2316 = scalar_select %p2315, %s21, 1
      %p2317 = scmp.lt.s32.totalorder %s20, 0
      %s2318 = scalar_select %p2317, %s20, 0
      %s2319 = smul.addr %s2316, 34
      %s2320 = sadd.s32 %s2318, %s2319
      %s2321 = smul.addr %s2320, 4
      %s2322 = scalar_lea.vmem %s4, %s2321
      // Predicated region
      $region45: #{discriminator_forward.4} parent=35 // pred_check
        %p2323 = pneg %p157
      $region46: #{discriminator_forward.4} parent=35 // pred_check_branch
        %2325 = sbr.rel (%p2323) target = $region48
      $region47: #{discriminator_forward.4} parent=35 // pred_region
        _
      $region48: #{discriminator_forward.4} parent=35 // pred_fallthru
        _
    $region36: #{discriminator_forward.4} parent=5 // pred_fallthru
      _
    %p2326 = scmp.le.s32.totalorder 2, %s10
    // Predicated region
    $region49: #{discriminator_forward.4} parent=5 // pred_check
      %p2327 = pneg %p2326
    $region50: #{discriminator_forward.4} parent=5 // pred_check_branch
      %2329 = sbr.rel (%p2327) target = $region52
    $region51: #{discriminator_forward.4} parent=5 // pred_region
      %s2330 = ssub.s32 %s10, 2
      // Predicated region
      $region53: #{discriminator_forward.4} parent=51 // pred_check
        %p2331 = pneg %p163
      $region54: #{discriminator_forward.4} parent=51 // pred_check_branch
        %2333 = sbr.rel (%p2331) target = $region56
      $region55: #{discriminator_forward.4} parent=51 // pred_region
        %p2334 = scmp.lt.s32.totalorder %s24, 1
        %s2335 = scalar_select %p2334, %s24, 1
        %p2336 = scmp.lt.s32.totalorder %s23, 0
        %s2337 = scalar_select %p2336, %s23, 0
        %s2338 = smul.addr %s2335, 34
        %s2339 = sadd.s32 %s2337, %s2338
        %s2340 = smul.addr %s2339, 4
        %s2341 = scalar_lea.vmem %s4, %s2340
      $region56: #{discriminator_forward.4} parent=51 // pred_fallthru
        _
    $region52: #{discriminator_forward.4} parent=5 // pred_fallthru
      _
  $region6: #{discriminator_forward.4} parent=0 // loop_footer
    %s14 = sadd.s32 1, %s10
  $region7: #{discriminator_forward.4} parent=0 // loop_footer_branch
    %9 = sbr.rel target = $region3
  $region8: #{discriminator_forward.4} parent=0 // loop_exit
    _

// kernel: discriminator_forward.5
$region0: #{discriminator_forward.5}
  #allocation0 [shape = 'u32[]', space=smem, size = 0x4, offset = 0x4, fixed_abs, tag = 'smem constant byte address 0x4 - core index']
  #allocation1 [shape = 'u32[72,128]{1,0:T(1,128)}', space=vmem, size = 0x9000, scoped, tag = 'internal scratch']
  #allocation2 [shape = 'f32[72,16]{1,0:T(8,128)}', space=vmem, size = 0x9000, scoped, tag = 'scratch operand']
  %s0 = inlined_call_operand.vmem [shape: f32[72,1], index: 0, kind: input, shape index: {}]
  %s1 = inlined_call_operand.vmem [shape: bf16[2,88,32], index: 1, kind: input, shape index: {}]
  %s2 = inlined_call_operand.vmem [shape: bf16[4,32,16], index: 2, kind: input, shape index: {}]
  %s3 = inlined_call_operand.vmem [shape: f32[1,16], index: 3, kind: input, shape index: {}]
  %s4 = inlined_call_operand.vmem [shape: bf16[2,72,16], index: 4, kind: output, shape index: {}]
  %s5 = sld [smem:[#allocation0]]
  $region57: #{discriminator_forward.5} parent=0
    _
  %s7 = ssub.s32 1, %s5
  %s8 = scalar_select 0, %s7, %s5
  loop: start=0, step=1, limit=4
  $region2: #{discriminator_forward.5} parent=0 // loop_pre_header
    _
  $region3: #{discriminator_forward.5} parent=0 // loop_header
    %s10 = sphi 0, %s14
    %p11 = scmp.ge.s32.totalorder %s10, 4
    %s17 = sphi 0, %s36
    %s18 = sphi 0, %s32
    %s19 = sphi 0, %s28
    %s20 = sphi 0, %s17
    %s21 = sphi 0, %s18
    %s22 = sphi 0, %s19
    %s23 = sphi 0, %s20
    %s24 = sphi 0, %s21
    %s25 = sphi 0, %s22
    %s37 = sphi 0, %s37
    %s39 = sphi 0, %s37
    %s40 = sphi 0, %s39
    %s54 = sphi 0, %s40
    %s62 = sphi 0, %s64
    %s65 = sphi 0, %s62
    %s66 = sphi 0, %s65
    %s82 = sphi 0, %s66
    %s90 = sphi 0, %s92
    %s93 = sphi 0, %s90
    %s94 = sphi 0, %s93
    %s110 = sphi 0, %s94
    %s116 = sphi 0, %s118
    %s119 = sphi 0, %s116
    %s120 = sphi 0, %s119
    %s136 = sphi 0, %s120
    %s144 = sphi 0, %s146
    %s147 = sphi 0, %s144
    %s148 = sphi 0, %s147
    %s164 = sphi 0, %s148
  $region4: #{discriminator_forward.5} parent=0 // loop_header_branch
    %13 = sbr.rel (%p11) target = $region8
  $region5: #{discriminator_forward.5} parent=0 // loop_body
    %s15 = ssub.s32 %s10, 1
    %s16 = ssub.s32 %s10, 2
    %s26 = sadd.s32 1, %s19
    %p27 = scmp.ge.s32.totalorder %s26, 1
    %s28 = scalar_select %p27, 0, %s26
    %s29 = sadd.s32 1, %s18
    %s30 = scalar_select %p27, %s29, %s18
    %p31 = scmp.ge.s32.totalorder %s30, 2
    %s32 = scalar_select %p31, 0, %s30
    %s33 = sadd.s32 1, %s17
    %s34 = scalar_select %p31, %s33, %s17
    %p35 = scmp.ge.s32.totalorder %s34, 1
    %s36 = scalar_select %p35, 0, %s34
    %s38 = sadd.s32 %s37, 1
    %p41 = scmp.eq.s32.totalorder %s10, 1
    %p42 = scmp.ne.s32.totalorder %s37, %s39
    %p43 = scmp.eq.s32.totalorder %s10, 0
    %p44 = por %p42, %p43
    %p45 = scmp.ne.s32.totalorder %s37, %s39
    %p46 = scmp.eq.s32.totalorder %s15, 1
    %p47 = por %p45, %p46
    %p48 = scmp.ne.s32.totalorder %s39, %s40
    %p49 = scmp.eq.s32.totalorder %s15, 0
    %p50 = por %p48, %p49
    %p51 = scmp.ne.s32.totalorder %s39, %s40
    %p52 = scmp.eq.s32.totalorder %s16, 1
    %p53 = por %p51, %p52
    %p55 = scmp.ne.s32.totalorder %s40, %s54
    %p56 = scmp.eq.s32.totalorder %s16, 0
    %p57 = por %p55, %p56
    %s58 = ssub.s32 %s18, %s32
    %s59 = ssub.s32 %s19, %s28
    %s60 = sor.u32 %s58, %s59
    %p61 = scmp.eq.s32.totalorder %s60, 0
    %s63 = sadd.s32 %s62, 1
    %s64 = scalar_select %p61, %s62, %s63
    %p67 = pneg %p61
    %p68 = scmp.eq.s32.totalorder %s10, 1
    %p69 = por %p67, %p68
    %p70 = scmp.ne.s32.totalorder %s62, %s65
    %p71 = scmp.eq.s32.totalorder %s10, 0
    %p72 = por %p70, %p71
    %p73 = scmp.ne.s32.totalorder %s62, %s65
    %p74 = scmp.eq.s32.totalorder %s15, 1
    %p75 = por %p73, %p74
    %p76 = scmp.ne.s32.totalorder %s65, %s66
    %p77 = scmp.eq.s32.totalorder %s15, 0
    %p78 = por %p76, %p77
    %p79 = scmp.ne.s32.totalorder %s65, %s66
    %p80 = scmp.eq.s32.totalorder %s16, 1
    %p81 = por %p79, %p80
    %p83 = scmp.ne.s32.totalorder %s66, %s82
    %p84 = scmp.eq.s32.totalorder %s16, 0
    %p85 = por %p83, %p84
    %s86 = ssub.s32 %s19, %s28
    %s87 = ssub.s32 %s17, %s36
    %s88 = sor.u32 %s86, %s87
    %p89 = scmp.eq.s32.totalorder %s88, 0
    %s91 = sadd.s32 %s90, 1
    %s92 = scalar_select %p89, %s90, %s91
    %p95 = pneg %p89
    %p96 = scmp.eq.s32.totalorder %s10, 1
    %p97 = por %p95, %p96
    %p98 = scmp.ne.s32.totalorder %s90, %s93
    %p99 = scmp.eq.s32.totalorder %s10, 0
    %p100 = por %p98, %p99
    %p101 = scmp.ne.s32.totalorder %s90, %s93
    %p102 = scmp.eq.s32.totalorder %s15, 1
    %p103 = por %p101, %p102
    %p104 = scmp.ne.s32.totalorder %s93, %s94
    %p105 = scmp.eq.s32.totalorder %s15, 0
    %p106 = por %p104, %p105
    %p107 = scmp.ne.s32.totalorder %s93, %s94
    %p108 = scmp.eq.s32.totalorder %s16, 1
    %p109 = por %p107, %p108
    %p111 = scmp.ne.s32.totalorder %s94, %s110
    %p112 = scmp.eq.s32.totalorder %s16, 0
    %p113 = por %p111, %p112
    %s114 = ssub.s32 %s17, %s36
    %p115 = scmp.eq.s32.totalorder %s114, 0
    %s117 = sadd.s32 %s116, 1
    %s118 = scalar_select %p115, %s116, %s117
    %p121 = pneg %p115
    %p122 = scmp.eq.s32.totalorder %s10, 1
    %p123 = por %p121, %p122
    %p124 = scmp.ne.s32.totalorder %s116, %s119
    %p125 = scmp.eq.s32.totalorder %s10, 0
    %p126 = por %p124, %p125
    %p127 = scmp.ne.s32.totalorder %s116, %s119
    %p128 = scmp.eq.s32.totalorder %s15, 1
    %p129 = por %p127, %p128
    %p130 = scmp.ne.s32.totalorder %s119, %s120
    %p131 = scmp.eq.s32.totalorder %s15, 0
    %p132 = por %p130, %p131
    %p133 = scmp.ne.s32.totalorder %s119, %s120
    %p134 = scmp.eq.s32.totalorder %s16, 1
    %p135 = por %p133, %p134
    %p137 = scmp.ne.s32.totalorder %s120, %s136
    %p138 = scmp.eq.s32.totalorder %s16, 0
    %p139 = por %p137, %p138
    %s140 = ssub.s32 %s18, %s32
    %s141 = ssub.s32 %s17, %s36
    %s142 = sor.u32 %s140, %s141
    %p143 = scmp.eq.s32.totalorder %s142, 0
    %s145 = sadd.s32 %s144, 1
    %s146 = scalar_select %p143, %s144, %s145
    %p149 = pneg %p143
    %p150 = scmp.eq.s32.totalorder %s10, 1
    %p151 = por %p149, %p150
    %p152 = scmp.ne.s32.totalorder %s144, %s147
    %p153 = scmp.eq.s32.totalorder %s10, 0
    %p154 = por %p152, %p153
    %p155 = scmp.ne.s32.totalorder %s144, %s147
    %p156 = scmp.eq.s32.totalorder %s15, 1
    %p157 = por %p155, %p156
    %p158 = scmp.ne.s32.totalorder %s147, %s148
    %p159 = scmp.eq.s32.totalorder %s15, 0
    %p160 = por %p158, %p159
    %p161 = scmp.ne.s32.totalorder %s147, %s148
    %p162 = scmp.eq.s32.totalorder %s16, 1
    %p163 = por %p161, %p162
    %p165 = scmp.ne.s32.totalorder %s148, %s164
    %p166 = scmp.eq.s32.totalorder %s16, 0
    %p167 = por %p165, %p166
    %p168 = scmp.le.s32.totalorder 1, %s10
    %p169 = scmp.lt.s32.totalorder %s10, 3
    %p170 = pnand %p168, %p169
    %p171 = pneg %p170
    // Predicated region
    $region9: #{discriminator_forward.5} parent=5 // pred_check
      _
    $region10: #{discriminator_forward.5} parent=5 // pred_check_branch
      %173 = sbr.rel (%p170) target = $region12
    $region11: #{discriminator_forward.5} parent=5 // pred_region
      %s174 = ssub.s32 %s10, 1
      // Predicated region
      $region13: #{discriminator_forward.5} parent=11 // pred_check
        %p175 = pneg %p50
      $region14: #{discriminator_forward.5} parent=11 // pred_check_branch
        %177 = sbr.rel (%p175) target = $region16
      $region15: #{discriminator_forward.5} parent=11 // pred_region
        _
      $region16: #{discriminator_forward.5} parent=11 // pred_fallthru
        _
      // Predicated region
      $region17: #{discriminator_forward.5} parent=11 // pred_check
        %p178 = pneg %p106
      $region18: #{discriminator_forward.5} parent=11 // pred_check_branch
        %180 = sbr.rel (%p178) target = $region20
      $region19: #{discriminator_forward.5} parent=11 // pred_region
        %s181 = smul.u32 4, %s22
        %p182 = scmp.lt.s32.totalorder %s181, 3
        %s183 = scalar_select %p182, %s181, 3
        %p184 = scmp.lt.s32.totalorder %s20, 0
        %s185 = scalar_select %p184, %s20, 0
        %s186 = sadd.s32 %s185, %s183
        %s187 = smul.addr %s186, 4
        %s188 = scalar_lea.vmem %s2, %s187
        %s189 = smul.u32 4, %s22
      $region20: #{discriminator_forward.5} parent=11 // pred_fallthru
        _
      // Predicated region
      $region21: #{discriminator_forward.5} parent=11 // pred_check
        %p190 = pneg %p132
      $region22: #{discriminator_forward.5} parent=11 // pred_check_branch
        %192 = sbr.rel (%p190) target = $region24
      $region23: #{discriminator_forward.5} parent=11 // pred_region
        %p193 = scmp.lt.s32.totalorder %s20, 0
        %s194 = scalar_select %p193, %s20, 0
        %s195 = scalar_lea.vmem %s3, %s194
      $region24: #{discriminator_forward.5} parent=11 // pred_fallthru
        _
    $region12: #{discriminator_forward.5} parent=5 // pred_fallthru
      _
    %p196 = scmp.lt.s32.totalorder %s10, 2
    // Predicated region
    $region25: #{discriminator_forward.5} parent=5 // pred_check
      %p197 = pneg %p196
    $region26: #{discriminator_forward.5} parent=5 // pred_check_branch
      %199 = sbr.rel (%p197) target = $region28
    $region27: #{discriminator_forward.5} parent=5 // pred_region
      // Predicated region
      $region29: #{discriminator_forward.5} parent=27 // pred_check
        %p200 = pneg %p72
      $region30: #{discriminator_forward.5} parent=27 // pred_check_branch
        %202 = sbr.rel (%p200) target = $region32
      $region31: #{discriminator_forward.5} parent=27 // pred_region
        %p203 = scmp.lt.s32.totalorder %s18, 1
        %s204 = scalar_select %p203, %s18, 1
        %p205 = scmp.lt.s32.totalorder %s19, 0
        %s206 = scalar_select %p205, %s19, 0
        %s207 = smul.addr %s204, 11
        %s208 = sadd.s32 %s206, %s207
        %s209 = smul.addr %s208, 4
        %s210 = scalar_lea.vmem %s1, %s209
      $region32: #{discriminator_forward.5} parent=27 // pred_fallthru
        _
    $region28: #{discriminator_forward.5} parent=5 // pred_fallthru
      _
    %p211 = scmp.le.s32.totalorder 1, %s10
    %p212 = scmp.lt.s32.totalorder %s10, 3
    %p213 = pnand %p211, %p212
    %p214 = pneg %p213
    // Predicated region
    $region33: #{discriminator_forward.5} parent=5 // pred_check
      _
    $region34: #{discriminator_forward.5} parent=5 // pred_check_branch
      %216 = sbr.rel (%p213) target = $region36
    $region35: #{discriminator_forward.5} parent=5 // pred_region
      %s217 = ssub.s32 %s10, 1
      %p218 = pneg %p50
      %p219 = pneg %p47
      %p220 = scmp.lt.s32.totalorder %s21, 1
      %s221 = scalar_select %p220, %s21, 1
      %p222 = scmp.lt.s32.totalorder %s22, 0
      %s223 = scalar_select %p222, %s22, 0
      %s224 = smul.addr %s221, 11
      %s225 = sadd.s32 %s223, %s224
      %s226 = smul.addr %s225, 4
      %s227 = scalar_lea.vmem %s1, %s226
      %p228 = pneg %p78
      %p229 = pneg %p75
      %s230 = smul.u32 4, %s22
      %p231 = scmp.lt.s32.totalorder %s230, 3
      %s232 = scalar_select %p231, %s230, 3
      %p233 = scmp.lt.s32.totalorder %s20, 0
      %s234 = scalar_select %p233, %s20, 0
      %s235 = sadd.s32 %s234, %s232
      %s236 = smul.addr %s235, 4
      %s237 = scalar_lea.vmem %s2, %s236
      %p238 = pneg %p106
      %p239 = pneg %p103
      %p240 = scmp.lt.s32.totalorder %s20, 0
      %s241 = scalar_select %p240, %s20, 0
      %s242 = scalar_lea.vmem %s3, %s241
      %p243 = pneg %p132
      %p244 = pneg %p129
      %p245 = pneg %p160
      %p246 = pneg %p157
      %p247 = scmp.lt.s32.totalorder %s21, 1
      %s248 = scalar_select %p247, %s21, 1
      %p249 = scmp.lt.s32.totalorder %s20, 0
      %s250 = scalar_select %p249, %s20, 0
      %s251 = smul.addr %s248, 9
      %s252 = sadd.s32 %s250, %s251
      %s253 = smul.addr %s252, 4
      %s254 = scalar_lea.vmem %s4, %s253
      %p255 = scmp.lt.s32.totalorder %s21, 1
      %s256 = scalar_select %p255, %s21, 1
      %p257 = scmp.lt.s32.totalorder %s22, 0
      %s258 = scalar_select %p257, %s22, 0
      %s259 = smul.addr %s256, 11
      %s260 = sadd.s32 %s258, %s259
      %s261 = smul.addr %s260, 4
      %s262 = scalar_lea.vmem %s1, %s261
      %s263 = smul.u32 4, %s22
      %p264 = scmp.lt.s32.totalorder %s263, 3
      %s265 = scalar_select %p264, %s263, 3
      %p266 = scmp.lt.s32.totalorder %s20, 0
      %s267 = scalar_select %p266, %s20, 0
      %s268 = sadd.s32 %s267, %s265
      %s269 = smul.addr %s268, 4
      %s270 = scalar_lea.vmem %s2, %s269
      %s271 = smul.u32 4, %s22
      %p272 = scmp.lt.s32.totalorder %s20, 0
      %s273 = scalar_select %p272, %s20, 0
      %s274 = scalar_lea.vmem %s3, %s273
      %p275 = scmp.lt.s32.totalorder %s21, 1
      %s276 = scalar_select %p275, %s21, 1
      %p277 = scmp.lt.s32.totalorder %s20, 0
      %s278 = scalar_select %p277, %s20, 0
      %s279 = smul.addr %s276, 9
      %s280 = sadd.s32 %s278, %s279
      %s281 = smul.addr %s280, 4
      %s282 = scalar_lea.vmem %s4, %s281
      %p284 = scmp.eq.s32.totalorder %s22, 0
      // Predicated region
      $region37: #{discriminator_forward.5} parent=35 // pred_check
        %p285 = pneg %p284
      $region38: #{discriminator_forward.5} parent=35 // pred_check_branch
        %287 = sbr.rel (%p285) target = $region40
      $region39: #{discriminator_forward.5} parent=35 // pred_region
        %vm288 = vcmask 130048
        %289 = vst.msk [vmem:[#allocation2] sm:$0xff] %vm288, 0.0
        %290 = vst.msk [vmem:[#allocation2 + $0x8] sm:$0xff] %vm288, 0.0
        %291 = vst.msk [vmem:[#allocation2 + $0x10] sm:$0xff] %vm288, 0.0
        %292 = vst.msk [vmem:[#allocation2 + $0x18] sm:$0xff] %vm288, 0.0
        %293 = vst.msk [vmem:[#allocation2 + $0x20] sm:$0xff] %vm288, 0.0
        %294 = vst.msk [vmem:[#allocation2 + $0x28] sm:$0xff] %vm288, 0.0
        %295 = vst.msk [vmem:[#allocation2 + $0x30] sm:$0xff] %vm288, 0.0
        %296 = vst.msk [vmem:[#allocation2 + $0x38] sm:$0xff] %vm288, 0.0
        %297 = vst.msk [vmem:[#allocation2 + $0x40] sm:$0xff] %vm288, 0.0
      $region40: #{discriminator_forward.5} parent=35 // pred_fallthru
        _
      %v298 = vld [vmem:[%s262] sm:$0xf]
      %v299 = vld [vmem:[%s262 + $0x4] sm:$0xf]
      %v300 = vld [vmem:[%s262 + $0x8] sm:$0xf]
      %v301 = vld [vmem:[%s262 + $0xc] sm:$0xf]
      %v302 = vld [vmem:[%s262 + $0x10] sm:$0xf]
      %v303 = vld [vmem:[%s262 + $0x14] sm:$0xf]
      %v304 = vld [vmem:[%s262 + $0x18] sm:$0xf]
      %v305 = vld [vmem:[%s262 + $0x1c] sm:$0xf]
      %v306 = vld [vmem:[%s262 + $0x20] sm:$0xf]
      %v307 = vld [vmem:[%s262 + $0x24] sm:$0xf]
      %v308 = vld [vmem:[%s262 + $0x28] sm:$0xf]
      %v309 = vld [vmem:[#allocation2] sm:$0xff]
      %v310 = vld [vmem:[#allocation2 + $0x8] sm:$0xff]
      %v311 = vld [vmem:[#allocation2 + $0x10] sm:$0xff]
      %v312 = vld [vmem:[#allocation2 + $0x18] sm:$0xff]
      %v313 = vld [vmem:[#allocation2 + $0x20] sm:$0xff]
      %v314 = vld [vmem:[#allocation2 + $0x28] sm:$0xff]
      %v315 = vld [vmem:[#allocation2 + $0x30] sm:$0xff]
      %v316 = vld [vmem:[#allocation2 + $0x38] sm:$0xff]
      %v317 = vld [vmem:[#allocation2 + $0x40] sm:$0xff]
      %v318 = vld [vmem:[%s270] sm:$0xf]
      %v319 = vld [vmem:[%s270 + $0x4] sm:$0xf]
      %v320 = vld [vmem:[%s270 + $0x8] sm:$0xf]
      %v321 = vld [vmem:[%s270 + $0xc] sm:$0xf]
      %v333 = vunpack.c.l.b16 %v298
      %v334 = vunpack.c.l.b16 %v299
      %v335 = vunpack.c.l.b16 %v300
      %v336 = vunpack.c.l.b16 %v301
      %v337 = vunpack.c.l.b16 %v302
      %v338 = vunpack.c.l.b16 %v303
      %v339 = vunpack.c.l.b16 %v304
      %v340 = vunpack.c.l.b16 %v305
      %v341 = vunpack.c.l.b16 %v306
      %v342 = vunpack.c.l.b16 %v307
      %v343 = vunpack.c.l.b16 %v308
      %v344 = vpack.c.b16 %v334, %v333
      %v345 = vpack.c.b16 %v336, %v335
      %v346 = vpack.c.b16 %v338, %v337
      %v347 = vpack.c.b16 %v340, %v339
      %v348 = vpack.c.b16 %v342, %v341
      %v349 = vpack.c.b16 %v343, %v343
      %v354 = vunpack.c.l.b16 %v318
      %v355 = vunpack.c.l.b16 %v319
      %v356 = vunpack.c.l.b16 %v320
      %v357 = vunpack.c.l.b16 %v321
      %v358 = vpack.c.b16 %v355, %v354
      %v359 = vpack.c.b16 %v357, %v356
      %vm362 = vcmask 261120
      %v364 = vsel %vm362, %v344, 0
      %v367 = vsel %vm362, %v345, 0
      %v370 = vsel %vm362, %v346, 0
      %v373 = vsel %vm362, %v347, 0
      %v376 = vsel %vm362, %v348, 0
      %v379 = vsel %vm362, %v349, 0
      %381 = vmatpush.bf16.msra.mxu0 0
      %382 = vmatpush.bf16.msra.mxu0 0
      %383 = vmatpush.bf16.msra.mxu0 0
      %384 = vmatpush.bf16.msra.mxu0 0
      %385 = vmatpush.bf16.msra.mxu0 0
      %386 = vmatpush.bf16.msra.mxu0 0
      %387 = vmatpush.bf16.msra.mxu0 %v359
      %388 = vmatpush.bf16.msra.mxu0 %v358
      %389 = vmatmul.bf16.gmra.mxu0 %v364
      %v390 = vpop.f32.mrf.mxu0
      %v391 = vadd.f32 0.0, %v390
      %v392 = vpop.f32.mrf.mxu0
      %v393 = vadd.f32 0.0, %v392
      %394 = vmatmul.bf16.gmra.mxu0 %v367
      %v395 = vpop.f32.mrf.mxu0
      %v396 = vadd.f32 0.0, %v395
      %v397 = vpop.f32.mrf.mxu0
      %v398 = vadd.f32 0.0, %v397
      %399 = vmatmul.bf16.gmra.mxu0 %v370
      %v400 = vpop.f32.mrf.mxu0
      %v401 = vadd.f32 0.0, %v400
      %v402 = vpop.f32.mrf.mxu0
      %v403 = vadd.f32 0.0, %v402
      %404 = vmatmul.bf16.gmra.mxu0 %v373
      %v405 = vpop.f32.mrf.mxu0
      %v406 = vadd.f32 0.0, %v405
      %v407 = vpop.f32.mrf.mxu0
      %v408 = vadd.f32 0.0, %v407
      %409 = vmatmul.bf16.gmra.mxu0 %v376
      %v410 = vpop.f32.mrf.mxu0
      %v411 = vadd.f32 0.0, %v410
      %v412 = vpop.f32.mrf.mxu0
      %413 = vmatmul.bf16.gmra.mxu0 %v379
      %v414 = vpop.f32.mrf.mxu0
      %v415 = vpop.f32.mrf.mxu0
      %416 = vdwg.mxu0
      %v417 = vadd.f32 %v309, %v391
      %v418 = vadd.f32 %v310, %v393
      %v419 = vadd.f32 %v311, %v396
      %v420 = vadd.f32 %v312, %v398
      %v421 = vadd.f32 %v313, %v401
      %v422 = vadd.f32 %v314, %v403
      %v423 = vadd.f32 %v315, %v406
      %v424 = vadd.f32 %v316, %v408
      %v425 = vadd.f32 %v317, %v411
      %s426 = scalar_lea.vmem %s270, 16
      %v427 = vld [vmem:[%s426] sm:$0xf]
      %v428 = vld [vmem:[%s426 + $0x4] sm:$0xf]
      %v429 = vld [vmem:[%s426 + $0x8] sm:$0xf]
      %v430 = vld [vmem:[%s426 + $0xc] sm:$0xf]
      %v435 = vunpack.c.l.b16 %v427
      %v436 = vunpack.c.l.b16 %v428
      %v437 = vunpack.c.l.b16 %v429
      %v438 = vunpack.c.l.b16 %v430
      %v439 = vpack.c.b16 %v436, %v435
      %v440 = vpack.c.b16 %v438, %v437
      %443 = vmatpush.bf16.msra.mxu0 0
      %444 = vmatpush.bf16.msra.mxu0 0
      %445 = vmatpush.bf16.msra.mxu0 0
      %446 = vmatpush.bf16.msra.mxu0 0
      %447 = vmatpush.bf16.msra.mxu0 0
      %448 = vmatpush.bf16.msra.mxu0 0
      %449 = vmatpush.bf16.msra.mxu0 %v440
      %450 = vmatpush.bf16.msra.mxu0 %v439
      %451 = vmatmul.bf16.gmra.mxu0 %v364
      %v452 = vpop.f32.mrf.mxu0
      %v453 = vadd.f32 0.0, %v452
      %v454 = vpop.f32.mrf.mxu0
      %v455 = vadd.f32 0.0, %v454
      %456 = vmatmul.bf16.gmra.mxu0 %v367
      %v457 = vpop.f32.mrf.mxu0
      %v458 = vadd.f32 0.0, %v457
      %v459 = vpop.f32.mrf.mxu0
      %v460 = vadd.f32 0.0, %v459
      %461 = vmatmul.bf16.gmra.mxu0 %v370
      %v462 = vpop.f32.mrf.mxu0
      %v463 = vadd.f32 0.0, %v462
      %v464 = vpop.f32.mrf.mxu0
      %v465 = vadd.f32 0.0, %v464
      %466 = vmatmul.bf16.gmra.mxu0 %v373
      %v467 = vpop.f32.mrf.mxu0
      %v468 = vadd.f32 0.0, %v467
      %v469 = vpop.f32.mrf.mxu0
      %v470 = vadd.f32 0.0, %v469
      %471 = vmatmul.bf16.gmra.mxu0 %v376
      %v472 = vpop.f32.mrf.mxu0
      %v473 = vadd.f32 0.0, %v472
      %v474 = vpop.f32.mrf.mxu0
      %v475 = vadd.f32 0.0, %v474
      %476 = vmatmul.bf16.gmra.mxu0 %v379
      %v477 = vpop.f32.mrf.mxu0
      %v478 = vpop.f32.mrf.mxu0
      %479 = vdwg.mxu0
      %vm490 = vcmask 1046528
      %v491 = vrot.slane %v453, 1
      %v492 = vrot.slane %v455, 1
      %v493 = vsel %vm490, %v491, %v492
      %v494 = vrot.slane %v458, 1
      %v495 = vsel %vm490, %v492, %v494
      %v496 = vrot.slane %v460, 1
      %v497 = vsel %vm490, %v494, %v496
      %v498 = vrot.slane %v463, 1
      %v499 = vsel %vm490, %v496, %v498
      %v500 = vrot.slane %v465, 1
      %v501 = vsel %vm490, %v498, %v500
      %v502 = vrot.slane %v468, 1
      %v503 = vsel %vm490, %v500, %v502
      %v504 = vrot.slane %v470, 1
      %v505 = vsel %vm490, %v502, %v504
      %v506 = vrot.slane %v473, 1
      %v507 = vsel %vm490, %v504, %v506
      %v508 = vrot.slane %v475, 1
      %v509 = vsel %vm490, %v506, %v508
      %v519 = vadd.f32 %v417, %v493
      %v520 = vadd.f32 %v418, %v495
      %v521 = vadd.f32 %v419, %v497
      %v522 = vadd.f32 %v420, %v499
      %v523 = vadd.f32 %v421, %v501
      %v524 = vadd.f32 %v422, %v503
      %v525 = vadd.f32 %v423, %v505
      %v526 = vadd.f32 %v424, %v507
      %v527 = vadd.f32 %v425, %v509
      %s528 = scalar_lea.vmem %s270, 32
      %v529 = vld [vmem:[%s528] sm:$0xf]
      %v530 = vld [vmem:[%s528 + $0x4] sm:$0xf]
      %v531 = vld [vmem:[%s528 + $0x8] sm:$0xf]
      %v532 = vld [vmem:[%s528 + $0xc] sm:$0xf]
      %v537 = vunpack.c.l.b16 %v529
      %v538 = vunpack.c.l.b16 %v530
      %v539 = vunpack.c.l.b16 %v531
      %v540 = vunpack.c.l.b16 %v532
      %v541 = vpack.c.b16 %v538, %v537
      %v542 = vpack.c.b16 %v540, %v539
      %545 = vmatpush.bf16.msra.mxu0 0
      %546 = vmatpush.bf16.msra.mxu0 0
      %547 = vmatpush.bf16.msra.mxu0 0
      %548 = vmatpush.bf16.msra.mxu0 0
      %549 = vmatpush.bf16.msra.mxu0 0
      %550 = vmatpush.bf16.msra.mxu0 0
      %551 = vmatpush.bf16.msra.mxu0 %v542
      %552 = vmatpush.bf16.msra.mxu0 %v541
      %553 = vmatmul.bf16.gmra.mxu0 %v364
      %v554 = vpop.f32.mrf.mxu0
      %v555 = vpop.f32.mrf.mxu0
      %v556 = vadd.f32 0.0, %v555
      %557 = vmatmul.bf16.gmra.mxu0 %v367
      %v558 = vpop.f32.mrf.mxu0
      %v559 = vadd.f32 0.0, %v558
      %v560 = vpop.f32.mrf.mxu0
      %v561 = vadd.f32 0.0, %v560
      %562 = vmatmul.bf16.gmra.mxu0 %v370
      %v563 = vpop.f32.mrf.mxu0
      %v564 = vadd.f32 0.0, %v563
      %v565 = vpop.f32.mrf.mxu0
      %v566 = vadd.f32 0.0, %v565
      %567 = vmatmul.bf16.gmra.mxu0 %v373
      %v568 = vpop.f32.mrf.mxu0
      %v569 = vadd.f32 0.0, %v568
      %v570 = vpop.f32.mrf.mxu0
      %v571 = vadd.f32 0.0, %v570
      %572 = vmatmul.bf16.gmra.mxu0 %v376
      %v573 = vpop.f32.mrf.mxu0
      %v574 = vadd.f32 0.0, %v573
      %v575 = vpop.f32.mrf.mxu0
      %v576 = vadd.f32 0.0, %v575
      %577 = vmatmul.bf16.gmra.mxu0 %v379
      %v578 = vpop.f32.mrf.mxu0
      %v579 = vadd.f32 0.0, %v578
      %v580 = vpop.f32.mrf.mxu0
      %581 = vdwg.mxu0
      %v592 = vrot.slane %v556, 1
      %v593 = vrot.slane %v559, 1
      %v594 = vsel %vm490, %v592, %v593
      %v595 = vrot.slane %v561, 1
      %v596 = vsel %vm490, %v593, %v595
      %v597 = vrot.slane %v564, 1
      %v598 = vsel %vm490, %v595, %v597
      %v599 = vrot.slane %v566, 1
      %v600 = vsel %vm490, %v597, %v599
      %v601 = vrot.slane %v569, 1
      %v602 = vsel %vm490, %v599, %v601
      %v603 = vrot.slane %v571, 1
      %v604 = vsel %vm490, %v601, %v603
      %v605 = vrot.slane %v574, 1
      %v606 = vsel %vm490, %v603, %v605
      %v607 = vrot.slane %v576, 1
      %v608 = vsel %vm490, %v605, %v607
      %v609 = vrot.slane %v579, 1
      %v610 = vsel %vm490, %v607, %v609
      %v620 = vadd.f32 %v519, %v594
      %v621 = vadd.f32 %v520, %v596
      %v622 = vadd.f32 %v521, %v598
      %v623 = vadd.f32 %v522, %v600
      %v624 = vadd.f32 %v523, %v602
      %v625 = vadd.f32 %v524, %v604
      %v626 = vadd.f32 %v525, %v606
      %v627 = vadd.f32 %v526, %v608
      %v628 = vadd.f32 %v527, %v610
      %s629 = scalar_lea.vmem %s270, 48
      %v630 = vld [vmem:[%s629] sm:$0xf]
      %v631 = vld [vmem:[%s629 + $0x4] sm:$0xf]
      %v632 = vld [vmem:[%s629 + $0x8] sm:$0xf]
      %v633 = vld [vmem:[%s629 + $0xc] sm:$0xf]
      %v638 = vunpack.c.l.b16 %v630
      %v639 = vunpack.c.l.b16 %v631
      %v640 = vunpack.c.l.b16 %v632
      %v641 = vunpack.c.l.b16 %v633
      %v642 = vpack.c.b16 %v639, %v638
      %v643 = vpack.c.b16 %v641, %v640
      %646 = vmatpush.bf16.msra.mxu0 0
      %647 = vmatpush.bf16.msra.mxu0 0
      %648 = vmatpush.bf16.msra.mxu0 0
      %649 = vmatpush.bf16.msra.mxu0 0
      %650 = vmatpush.bf16.msra.mxu0 0
      %651 = vmatpush.bf16.msra.mxu0 0
      %652 = vmatpush.bf16.msra.mxu0 %v643
      %653 = vmatpush.bf16.msra.mxu0 %v642
      %654 = vmatmul.bf16.gmra.mxu0 %v364
      %v655 = vpop.f32.mrf.mxu0
      %v656 = vpop.f32.mrf.mxu0
      %v657 = vadd.f32 0.0, %v656
      %658 = vmatmul.bf16.gmra.mxu0 %v367
      %v659 = vpop.f32.mrf.mxu0
      %v660 = vadd.f32 0.0, %v659
      %v661 = vpop.f32.mrf.mxu0
      %v662 = vadd.f32 0.0, %v661
      %663 = vmatmul.bf16.gmra.mxu0 %v370
      %v664 = vpop.f32.mrf.mxu0
      %v665 = vadd.f32 0.0, %v664
      %v666 = vpop.f32.mrf.mxu0
      %v667 = vadd.f32 0.0, %v666
      %668 = vmatmul.bf16.gmra.mxu0 %v373
      %v669 = vpop.f32.mrf.mxu0
      %v670 = vadd.f32 0.0, %v669
      %v671 = vpop.f32.mrf.mxu0
      %v672 = vadd.f32 0.0, %v671
      %673 = vmatmul.bf16.gmra.mxu0 %v376
      %v674 = vpop.f32.mrf.mxu0
      %v675 = vadd.f32 0.0, %v674
      %v676 = vpop.f32.mrf.mxu0
      %v677 = vadd.f32 0.0, %v676
      %678 = vmatmul.bf16.gmra.mxu0 %v379
      %v679 = vpop.f32.mrf.mxu0
      %v680 = vadd.f32 0.0, %v679
      %v681 = vpop.f32.mrf.mxu0
      %682 = vdwg.mxu0
      %vm693 = vcmask 1045504
      %v694 = vrot.slane %v657, 2
      %v695 = vrot.slane %v660, 2
      %v696 = vsel %vm693, %v694, %v695
      %v697 = vrot.slane %v662, 2
      %v698 = vsel %vm693, %v695, %v697
      %v699 = vrot.slane %v665, 2
      %v700 = vsel %vm693, %v697, %v699
      %v701 = vrot.slane %v667, 2
      %v702 = vsel %vm693, %v699, %v701
      %v703 = vrot.slane %v670, 2
      %v704 = vsel %vm693, %v701, %v703
      %v705 = vrot.slane %v672, 2
      %v706 = vsel %vm693, %v703, %v705
      %v707 = vrot.slane %v675, 2
      %v708 = vsel %vm693, %v705, %v707
      %v709 = vrot.slane %v677, 2
      %v710 = vsel %vm693, %v707, %v709
      %v711 = vrot.slane %v680, 2
      %v712 = vsel %vm693, %v709, %v711
      %v722 = vadd.f32 %v620, %v696
      %v723 = vadd.f32 %v621, %v698
      %v724 = vadd.f32 %v622, %v700
      %v725 = vadd.f32 %v623, %v702
      %v726 = vadd.f32 %v624, %v704
      %v727 = vadd.f32 %v625, %v706
      %v728 = vadd.f32 %v626, %v708
      %v729 = vadd.f32 %v627, %v710
      %v730 = vadd.f32 %v628, %v712
      %vm731 = vcmask 130048
      %732 = vst.msk [vmem:[#allocation2] sm:$0xff] %vm731, %v722
      %733 = vst.msk [vmem:[#allocation2 + $0x8] sm:$0xff] %vm731, %v723
      %734 = vst.msk [vmem:[#allocation2 + $0x10] sm:$0xff] %vm731, %v724
      %735 = vst.msk [vmem:[#allocation2 + $0x18] sm:$0xff] %vm731, %v725
      %736 = vst.msk [vmem:[#allocation2 + $0x20] sm:$0xff] %vm731, %v726
      %737 = vst.msk [vmem:[#allocation2 + $0x28] sm:$0xff] %vm731, %v727
      %738 = vst.msk [vmem:[#allocation2 + $0x30] sm:$0xff] %vm731, %v728
      %739 = vst.msk [vmem:[#allocation2 + $0x38] sm:$0xff] %vm731, %v729
      %740 = vst.msk [vmem:[#allocation2 + $0x40] sm:$0xff] %vm731, %v730
      // Predicated region
      $region41: #{discriminator_forward.5} parent=35 // pred_check
        %p741 = pneg %p284
      $region42: #{discriminator_forward.5} parent=35 // pred_check_branch
        %743 = sbr.rel (%p741) target = $region44
      $region43: #{discriminator_forward.5} parent=35 // pred_region
        %v744 = vld [vmem:[%s274] sm:$0x1]
        %v746 = vperm.slane %v744, 0
        %v748 = vadd.f32 %v722, %v746
        %v749 = vadd.f32 %v723, %v746
        %v750 = vadd.f32 %v724, %v746
        %v751 = vadd.f32 %v725, %v746
        %v752 = vadd.f32 %v726, %v746
        %v753 = vadd.f32 %v727, %v746
        %v754 = vadd.f32 %v728, %v746
        %v755 = vadd.f32 %v729, %v746
        %v756 = vadd.f32 %v730, %v746
        %v757 = vld [vmem:[%s0] sm:$0xff]
        %v758 = vld [vmem:[%s0 + $0x8] sm:$0xff]
        %v759 = vld [vmem:[%s0 + $0x10] sm:$0xff]
        %v760 = vld [vmem:[%s0 + $0x18] sm:$0xff]
        %v761 = vld [vmem:[%s0 + $0x20] sm:$0xff]
        %v762 = vld [vmem:[%s0 + $0x28] sm:$0xff]
        %v763 = vld [vmem:[%s0 + $0x30] sm:$0xff]
        %v764 = vld [vmem:[%s0 + $0x38] sm:$0xff]
        %v765 = vld [vmem:[%s0 + $0x40] sm:$0xff]
        %767 = vset.pattern.permute.xlu0 0
        %768 = vperm.xlu0 %767, %v757
        %v769 = vpop.permute.xlu0 %768
        %772 = vset.pattern.permute.xlu0 0
        %773 = vperm.xlu0 %772, %v758
        %v774 = vpop.permute.xlu0 %773
        %777 = vset.pattern.permute.xlu0 0
        %778 = vperm.xlu0 %777, %v759
        %v779 = vpop.permute.xlu0 %778
        %782 = vset.pattern.permute.xlu0 0
        %783 = vperm.xlu0 %782, %v760
        %v784 = vpop.permute.xlu0 %783
        %787 = vset.pattern.permute.xlu0 0
        %788 = vperm.xlu0 %787, %v761
        %v789 = vpop.permute.xlu0 %788
        %792 = vset.pattern.permute.xlu0 0
        %793 = vperm.xlu0 %792, %v762
        %v794 = vpop.permute.xlu0 %793
        %797 = vset.pattern.permute.xlu0 0
        %798 = vperm.xlu0 %797, %v763
        %v799 = vpop.permute.xlu0 %798
        %802 = vset.pattern.permute.xlu0 0
        %803 = vperm.xlu0 %802, %v764
        %v804 = vpop.permute.xlu0 %803
        %807 = vset.pattern.permute.xlu0 0
        %808 = vperm.xlu0 %807, %v765
        %v809 = vpop.permute.xlu0 %808
        %v811 = vmul.f32 %v748, %v769
        %v812 = vmul.f32 %v749, %v774
        %v813 = vmul.f32 %v750, %v779
        %v814 = vmul.f32 %v751, %v784
        %v815 = vmul.f32 %v752, %v789
        %v816 = vmul.f32 %v753, %v794
        %v817 = vmul.f32 %v754, %v799
        %v818 = vmul.f32 %v755, %v804
        %v819 = vmul.f32 %v756, %v809
        %v820 = vsel %vm731, %v811, 0.0
        %v821 = vsel %vm731, %v812, 0.0
        %v822 = vadd.f32 %v820, %v821
        %v823 = vsel %vm731, %v813, 0.0
        %v824 = vadd.f32 %v822, %v823
        %v825 = vsel %vm731, %v814, 0.0
        %v826 = vadd.f32 %v824, %v825
        %v827 = vsel %vm731, %v815, 0.0
        %v828 = vadd.f32 %v826, %v827
        %v829 = vsel %vm731, %v816, 0.0
        %v830 = vadd.f32 %v828, %v829
        %v831 = vsel %vm731, %v817, 0.0
        %v832 = vadd.f32 %v830, %v831
        %v833 = vsel %vm731, %v818, 0.0
        %v834 = vadd.f32 %v832, %v833
        %v835 = vsel %vm731, %v819, 0.0
        %v836 = vadd.f32 %v834, %v835
        %v837 = vrot.slane %v836, 4
        %v838 = vadd.f32 %v836, %v837
        %v839 = vrot.slane %v838, 2
        %v840 = vadd.f32 %v838, %v839
        %v841 = vrot.slane %v840, 1
        %v842 = vadd.f32 %v840, %v841
        %v843 = vmul.f32 %v842, 0.015625
        %v844 = vsub.f32 %v748, %v843
        %v845 = vsub.f32 %v749, %v843
        %v846 = vsub.f32 %v750, %v843
        %v847 = vsub.f32 %v751, %v843
        %v848 = vsub.f32 %v752, %v843
        %v849 = vsub.f32 %v753, %v843
        %v850 = vsub.f32 %v754, %v843
        %v851 = vsub.f32 %v755, %v843
        %v852 = vsub.f32 %v756, %v843
        %v853 = vmul.f32 %v844, %v844
        %v854 = vmul.f32 %v845, %v845
        %v855 = vmul.f32 %v846, %v846
        %v856 = vmul.f32 %v847, %v847
        %v857 = vmul.f32 %v848, %v848
        %v858 = vmul.f32 %v849, %v849
        %v859 = vmul.f32 %v850, %v850
        %v860 = vmul.f32 %v851, %v851
        %v861 = vmul.f32 %v852, %v852
        %v862 = vmul.f32 %v853, %v769
        %v863 = vmul.f32 %v854, %v774
        %v864 = vmul.f32 %v855, %v779
        %v865 = vmul.f32 %v856, %v784
        %v866 = vmul.f32 %v857, %v789
        %v867 = vmul.f32 %v858, %v794
        %v868 = vmul.f32 %v859, %v799
        %v869 = vmul.f32 %v860, %v804
        %v870 = vmul.f32 %v861, %v809
        %v871 = vsel %vm731, %v862, 0.0
        %v872 = vsel %vm731, %v863, 0.0
        %v873 = vadd.f32 %v871, %v872
        %v874 = vsel %vm731, %v864, 0.0
        %v875 = vadd.f32 %v873, %v874
        %v876 = vsel %vm731, %v865, 0.0
        %v877 = vadd.f32 %v875, %v876
        %v878 = vsel %vm731, %v866, 0.0
        %v879 = vadd.f32 %v877, %v878
        %v880 = vsel %vm731, %v867, 0.0
        %v881 = vadd.f32 %v879, %v880
        %v882 = vsel %vm731, %v868, 0.0
        %v883 = vadd.f32 %v881, %v882
        %v884 = vsel %vm731, %v869, 0.0
        %v885 = vadd.f32 %v883, %v884
        %v886 = vsel %vm731, %v870, 0.0
        %v887 = vadd.f32 %v885, %v886
        %v888 = vrot.slane %v887, 4
        %v889 = vadd.f32 %v887, %v888
        %v890 = vrot.slane %v889, 2
        %v891 = vadd.f32 %v889, %v890
        %v892 = vrot.slane %v891, 1
        %v893 = vadd.f32 %v891, %v892
        %v894 = vmul.f32 %v893, 0.015625
        %v895 = vadd.f32 %v894, 1e-05
        %v896 = vrsqrt.pop %v895
        %v897 = vmul.f32 %v896, %v895
        %v898 = vmul.f32 %v897, %v896
        %v899 = vmul.f32 0.5, %v898
        %v900 = vsub.f32 1.5, %v899
        %v901 = vmul.f32 %v896, %v900
        %vm902 = vweird.f32 %v895
        %vm903 = vweird.f32 %v896
        %vm904 = vmor %vm902, %vm903
        %v905 = vsel %vm904, %v896, %v901
        %v906 = vmul.f32 %v844, %v905
        %v907 = vmul.f32 %v845, %v905
        %v908 = vmul.f32 %v846, %v905
        %v909 = vmul.f32 %v847, %v905
        %v910 = vmul.f32 %v848, %v905
        %v911 = vmul.f32 %v849, %v905
        %v912 = vmul.f32 %v850, %v905
        %v913 = vmul.f32 %v851, %v905
        %v914 = vmul.f32 %v852, %v905
        %vm915 = vcmp.ge.f32.partialorder %v906, 0.0
        %vm916 = vcmp.ge.f32.partialorder %v907, 0.0
        %vm917 = vcmp.ge.f32.partialorder %v908, 0.0
        %vm918 = vcmp.ge.f32.partialorder %v909, 0.0
        %vm919 = vcmp.ge.f32.partialorder %v910, 0.0
        %vm920 = vcmp.ge.f32.partialorder %v911, 0.0
        %vm921 = vcmp.ge.f32.partialorder %v912, 0.0
        %vm922 = vcmp.ge.f32.partialorder %v913, 0.0
        %vm923 = vcmp.ge.f32.partialorder %v914, 0.0
        %v924 = vmul.f32 %v906, 0.2
        %v925 = vmul.f32 %v907, 0.2
        %v926 = vmul.f32 %v908, 0.2
        %v927 = vmul.f32 %v909, 0.2
        %v928 = vmul.f32 %v910, 0.2
        %v929 = vmul.f32 %v911, 0.2
        %v930 = vmul.f32 %v912, 0.2
        %v931 = vmul.f32 %v913, 0.2
        %v932 = vmul.f32 %v914, 0.2
        %v933 = vsel %vm915, %v906, %v924
        %v934 = vsel %vm916, %v907, %v925
        %v935 = vsel %vm917, %v908, %v926
        %v936 = vsel %vm918, %v909, %v927
        %v937 = vsel %vm919, %v910, %v928
        %v938 = vsel %vm920, %v911, %v929
        %v939 = vsel %vm921, %v912, %v930
        %v940 = vsel %vm922, %v913, %v931
        %v941 = vsel %vm923, %v914, %v932
        %v942 = vpack.c.bf16 %v933, %v933
        %v943 = vpack.c.bf16 %v934, %v934
        %v944 = vpack.c.bf16 %v935, %v935
        %v945 = vpack.c.bf16 %v936, %v936
        %v946 = vpack.c.bf16 %v937, %v937
        %v947 = vpack.c.bf16 %v938, %v938
        %v948 = vpack.c.bf16 %v939, %v939
        %v949 = vpack.c.bf16 %v940, %v940
        %v950 = vpack.c.bf16 %v941, %v941
        %vm951 = vcmask 125952
        %952 = vst.msk [vmem:[%s282] sm:$0xf] %vm951, %v942
        %953 = vst.msk [vmem:[%s282 + $0x4] sm:$0xf] %vm951, %v943
        %954 = vst.msk [vmem:[%s282 + $0x8] sm:$0xf] %vm951, %v944
        %955 = vst.msk [vmem:[%s282 + $0xc] sm:$0xf] %vm951, %v945
        %956 = vst.msk [vmem:[%s282 + $0x10] sm:$0xf] %vm951, %v946
        %957 = vst.msk [vmem:[%s282 + $0x14] sm:$0xf] %vm951, %v947
        %958 = vst.msk [vmem:[%s282 + $0x18] sm:$0xf] %vm951, %v948
        %959 = vst.msk [vmem:[%s282 + $0x1c] sm:$0xf] %vm951, %v949
        %960 = vst.msk [vmem:[%s282 + $0x20] sm:$0xf] %vm951, %v950
      $region44: #{discriminator_forward.5} parent=35 // pred_fallthru
        _
      %p961 = scmp.lt.s32.totalorder %s21, 1
      %s962 = scalar_select %p961, %s21, 1
      %p963 = scmp.lt.s32.totalorder %s20, 0
      %s964 = scalar_select %p963, %s20, 0
      %s965 = smul.addr %s962, 9
      %s966 = sadd.s32 %s964, %s965
      %s967 = smul.addr %s966, 4
      %s968 = scalar_lea.vmem %s4, %s967
      // Predicated region
      $region45: #{discriminator_forward.5} parent=35 // pred_check
        %p969 = pneg %p157
      $region46: #{discriminator_forward.5} parent=35 // pred_check_branch
        %971 = sbr.rel (%p969) target = $region48
      $region47: #{discriminator_forward.5} parent=35 // pred_region
        _
      $region48: #{discriminator_forward.5} parent=35 // pred_fallthru
        _
    $region36: #{discriminator_forward.5} parent=5 // pred_fallthru
      _
    %p972 = scmp.le.s32.totalorder 2, %s10
    // Predicated region
    $region49: #{discriminator_forward.5} parent=5 // pred_check
      %p973 = pneg %p972
    $region50: #{discriminator_forward.5} parent=5 // pred_check_branch
      %975 = sbr.rel (%p973) target = $region52
    $region51: #{discriminator_forward.5} parent=5 // pred_region
      %s976 = ssub.s32 %s10, 2
      // Predicated region
      $region53: #{discriminator_forward.5} parent=51 // pred_check
        %p977 = pneg %p163
      $region54: #{discriminator_forward.5} parent=51 // pred_check_branch
        %979 = sbr.rel (%p977) target = $region56
      $region55: #{discriminator_forward.5} parent=51 // pred_region
        %p980 = scmp.lt.s32.totalorder %s24, 1
        %s981 = scalar_select %p980, %s24, 1
        %p982 = scmp.lt.s32.totalorder %s23, 0
        %s983 = scalar_select %p982, %s23, 0
        %s984 = smul.addr %s981, 9
        %s985 = sadd.s32 %s983, %s984
        %s986 = smul.addr %s985, 4
        %s987 = scalar_lea.vmem %s4, %s986
      $region56: #{discriminator_forward.5} parent=51 // pred_fallthru
        _
    $region52: #{discriminator_forward.5} parent=5 // pred_fallthru
      _
  $region6: #{discriminator_forward.5} parent=0 // loop_footer
    %s14 = sadd.s32 1, %s10
  $region7: #{discriminator_forward.5} parent=0 // loop_footer_branch
    %9 = sbr.rel target = $region3
  $region8: #{discriminator_forward.5} parent=0 // loop_exit
    _

// kernel: discriminator_forward.6
$region0: #{discriminator_forward.6}
  #allocation0 [shape = 'u32[]', space=smem, size = 0x4, offset = 0x4, fixed_abs, tag = 'smem constant byte address 0x4 - core index']
  #allocation1 [shape = 'u32[72,128]{1,0:T(1,128)}', space=vmem, size = 0x9000, scoped, tag = 'internal scratch']
  #allocation2 [shape = 'f32[20,32]{1,0:T(8,128)}', space=vmem, size = 0x3000, scoped, tag = 'scratch operand']
  %s0 = inlined_call_operand.vmem [shape: f32[20,1], index: 0, kind: input, shape index: {}]
  %s1 = inlined_call_operand.vmem [shape: bf16[2,32,64], index: 1, kind: input, shape index: {}]
  %s2 = inlined_call_operand.vmem [shape: bf16[4,64,32], index: 2, kind: input, shape index: {}]
  %s3 = inlined_call_operand.vmem [shape: f32[1,32], index: 3, kind: input, shape index: {}]
  %s4 = inlined_call_operand.vmem [shape: bf16[2,20,32], index: 4, kind: output, shape index: {}]
  %s5 = sld [smem:[#allocation0]]
  $region57: #{discriminator_forward.6} parent=0
    _
  %s7 = ssub.s32 1, %s5
  %s8 = scalar_select 0, %s7, %s5
  loop: start=0, step=1, limit=4
  $region2: #{discriminator_forward.6} parent=0 // loop_pre_header
    _
  $region3: #{discriminator_forward.6} parent=0 // loop_header
    %s10 = sphi 0, %s14
    %p11 = scmp.ge.s32.totalorder %s10, 4
    %s17 = sphi 0, %s36
    %s18 = sphi 0, %s32
    %s19 = sphi 0, %s28
    %s20 = sphi 0, %s17
    %s21 = sphi 0, %s18
    %s22 = sphi 0, %s19
    %s23 = sphi 0, %s20
    %s24 = sphi 0, %s21
    %s25 = sphi 0, %s22
    %s37 = sphi 0, %s37
    %s39 = sphi 0, %s37
    %s40 = sphi 0, %s39
    %s54 = sphi 0, %s40
    %s62 = sphi 0, %s64
    %s65 = sphi 0, %s62
    %s66 = sphi 0, %s65
    %s82 = sphi 0, %s66
    %s90 = sphi 0, %s92
    %s93 = sphi 0, %s90
    %s94 = sphi 0, %s93
    %s110 = sphi 0, %s94
    %s116 = sphi 0, %s118
    %s119 = sphi 0, %s116
    %s120 = sphi 0, %s119
    %s136 = sphi 0, %s120
    %s144 = sphi 0, %s146
    %s147 = sphi 0, %s144
    %s148 = sphi 0, %s147
    %s164 = sphi 0, %s148
  $region4: #{discriminator_forward.6} parent=0 // loop_header_branch
    %13 = sbr.rel (%p11) target = $region8
  $region5: #{discriminator_forward.6} parent=0 // loop_body
    %s15 = ssub.s32 %s10, 1
    %s16 = ssub.s32 %s10, 2
    %s26 = sadd.s32 1, %s19
    %p27 = scmp.ge.s32.totalorder %s26, 1
    %s28 = scalar_select %p27, 0, %s26
    %s29 = sadd.s32 1, %s18
    %s30 = scalar_select %p27, %s29, %s18
    %p31 = scmp.ge.s32.totalorder %s30, 2
    %s32 = scalar_select %p31, 0, %s30
    %s33 = sadd.s32 1, %s17
    %s34 = scalar_select %p31, %s33, %s17
    %p35 = scmp.ge.s32.totalorder %s34, 1
    %s36 = scalar_select %p35, 0, %s34
    %s38 = sadd.s32 %s37, 1
    %p41 = scmp.eq.s32.totalorder %s10, 1
    %p42 = scmp.ne.s32.totalorder %s37, %s39
    %p43 = scmp.eq.s32.totalorder %s10, 0
    %p44 = por %p42, %p43
    %p45 = scmp.ne.s32.totalorder %s37, %s39
    %p46 = scmp.eq.s32.totalorder %s15, 1
    %p47 = por %p45, %p46
    %p48 = scmp.ne.s32.totalorder %s39, %s40
    %p49 = scmp.eq.s32.totalorder %s15, 0
    %p50 = por %p48, %p49
    %p51 = scmp.ne.s32.totalorder %s39, %s40
    %p52 = scmp.eq.s32.totalorder %s16, 1
    %p53 = por %p51, %p52
    %p55 = scmp.ne.s32.totalorder %s40, %s54
    %p56 = scmp.eq.s32.totalorder %s16, 0
    %p57 = por %p55, %p56
    %s58 = ssub.s32 %s18, %s32
    %s59 = ssub.s32 %s19, %s28
    %s60 = sor.u32 %s58, %s59
    %p61 = scmp.eq.s32.totalorder %s60, 0
    %s63 = sadd.s32 %s62, 1
    %s64 = scalar_select %p61, %s62, %s63
    %p67 = pneg %p61
    %p68 = scmp.eq.s32.totalorder %s10, 1
    %p69 = por %p67, %p68
    %p70 = scmp.ne.s32.totalorder %s62, %s65
    %p71 = scmp.eq.s32.totalorder %s10, 0
    %p72 = por %p70, %p71
    %p73 = scmp.ne.s32.totalorder %s62, %s65
    %p74 = scmp.eq.s32.totalorder %s15, 1
    %p75 = por %p73, %p74
    %p76 = scmp.ne.s32.totalorder %s65, %s66
    %p77 = scmp.eq.s32.totalorder %s15, 0
    %p78 = por %p76, %p77
    %p79 = scmp.ne.s32.totalorder %s65, %s66
    %p80 = scmp.eq.s32.totalorder %s16, 1
    %p81 = por %p79, %p80
    %p83 = scmp.ne.s32.totalorder %s66, %s82
    %p84 = scmp.eq.s32.totalorder %s16, 0
    %p85 = por %p83, %p84
    %s86 = ssub.s32 %s19, %s28
    %s87 = ssub.s32 %s17, %s36
    %s88 = sor.u32 %s86, %s87
    %p89 = scmp.eq.s32.totalorder %s88, 0
    %s91 = sadd.s32 %s90, 1
    %s92 = scalar_select %p89, %s90, %s91
    %p95 = pneg %p89
    %p96 = scmp.eq.s32.totalorder %s10, 1
    %p97 = por %p95, %p96
    %p98 = scmp.ne.s32.totalorder %s90, %s93
    %p99 = scmp.eq.s32.totalorder %s10, 0
    %p100 = por %p98, %p99
    %p101 = scmp.ne.s32.totalorder %s90, %s93
    %p102 = scmp.eq.s32.totalorder %s15, 1
    %p103 = por %p101, %p102
    %p104 = scmp.ne.s32.totalorder %s93, %s94
    %p105 = scmp.eq.s32.totalorder %s15, 0
    %p106 = por %p104, %p105
    %p107 = scmp.ne.s32.totalorder %s93, %s94
    %p108 = scmp.eq.s32.totalorder %s16, 1
    %p109 = por %p107, %p108
    %p111 = scmp.ne.s32.totalorder %s94, %s110
    %p112 = scmp.eq.s32.totalorder %s16, 0
    %p113 = por %p111, %p112
    %s114 = ssub.s32 %s17, %s36
    %p115 = scmp.eq.s32.totalorder %s114, 0
    %s117 = sadd.s32 %s116, 1
    %s118 = scalar_select %p115, %s116, %s117
    %p121 = pneg %p115
    %p122 = scmp.eq.s32.totalorder %s10, 1
    %p123 = por %p121, %p122
    %p124 = scmp.ne.s32.totalorder %s116, %s119
    %p125 = scmp.eq.s32.totalorder %s10, 0
    %p126 = por %p124, %p125
    %p127 = scmp.ne.s32.totalorder %s116, %s119
    %p128 = scmp.eq.s32.totalorder %s15, 1
    %p129 = por %p127, %p128
    %p130 = scmp.ne.s32.totalorder %s119, %s120
    %p131 = scmp.eq.s32.totalorder %s15, 0
    %p132 = por %p130, %p131
    %p133 = scmp.ne.s32.totalorder %s119, %s120
    %p134 = scmp.eq.s32.totalorder %s16, 1
    %p135 = por %p133, %p134
    %p137 = scmp.ne.s32.totalorder %s120, %s136
    %p138 = scmp.eq.s32.totalorder %s16, 0
    %p139 = por %p137, %p138
    %s140 = ssub.s32 %s18, %s32
    %s141 = ssub.s32 %s17, %s36
    %s142 = sor.u32 %s140, %s141
    %p143 = scmp.eq.s32.totalorder %s142, 0
    %s145 = sadd.s32 %s144, 1
    %s146 = scalar_select %p143, %s144, %s145
    %p149 = pneg %p143
    %p150 = scmp.eq.s32.totalorder %s10, 1
    %p151 = por %p149, %p150
    %p152 = scmp.ne.s32.totalorder %s144, %s147
    %p153 = scmp.eq.s32.totalorder %s10, 0
    %p154 = por %p152, %p153
    %p155 = scmp.ne.s32.totalorder %s144, %s147
    %p156 = scmp.eq.s32.totalorder %s15, 1
    %p157 = por %p155, %p156
    %p158 = scmp.ne.s32.totalorder %s147, %s148
    %p159 = scmp.eq.s32.totalorder %s15, 0
    %p160 = por %p158, %p159
    %p161 = scmp.ne.s32.totalorder %s147, %s148
    %p162 = scmp.eq.s32.totalorder %s16, 1
    %p163 = por %p161, %p162
    %p165 = scmp.ne.s32.totalorder %s148, %s164
    %p166 = scmp.eq.s32.totalorder %s16, 0
    %p167 = por %p165, %p166
    %p168 = scmp.le.s32.totalorder 1, %s10
    %p169 = scmp.lt.s32.totalorder %s10, 3
    %p170 = pnand %p168, %p169
    %p171 = pneg %p170
    // Predicated region
    $region9: #{discriminator_forward.6} parent=5 // pred_check
      _
    $region10: #{discriminator_forward.6} parent=5 // pred_check_branch
      %173 = sbr.rel (%p170) target = $region12
    $region11: #{discriminator_forward.6} parent=5 // pred_region
      %s174 = ssub.s32 %s10, 1
      // Predicated region
      $region13: #{discriminator_forward.6} parent=11 // pred_check
        %p175 = pneg %p50
      $region14: #{discriminator_forward.6} parent=11 // pred_check_branch
        %177 = sbr.rel (%p175) target = $region16
      $region15: #{discriminator_forward.6} parent=11 // pred_region
        _
      $region16: #{discriminator_forward.6} parent=11 // pred_fallthru
        _
      // Predicated region
      $region17: #{discriminator_forward.6} parent=11 // pred_check
        %p178 = pneg %p106
      $region18: #{discriminator_forward.6} parent=11 // pred_check_branch
        %180 = sbr.rel (%p178) target = $region20
      $region19: #{discriminator_forward.6} parent=11 // pred_region
        %s181 = smul.u32 8, %s22
        %p182 = scmp.lt.s32.totalorder %s181, 7
        %s183 = scalar_select %p182, %s181, 7
        %p184 = scmp.lt.s32.totalorder %s20, 0
        %s185 = scalar_select %p184, %s20, 0
        %s186 = sadd.s32 %s185, %s183
        %s187 = smul.addr %s186, 4
        %s188 = scalar_lea.vmem %s2, %s187
        %s189 = smul.u32 8, %s22
      $region20: #{discriminator_forward.6} parent=11 // pred_fallthru
        _
      // Predicated region
      $region21: #{discriminator_forward.6} parent=11 // pred_check
        %p190 = pneg %p132
      $region22: #{discriminator_forward.6} parent=11 // pred_check_branch
        %192 = sbr.rel (%p190) target = $region24
      $region23: #{discriminator_forward.6} parent=11 // pred_region
        %p193 = scmp.lt.s32.totalorder %s20, 0
        %s194 = scalar_select %p193, %s20, 0
        %s195 = scalar_lea.vmem %s3, %s194
      $region24: #{discriminator_forward.6} parent=11 // pred_fallthru
        _
    $region12: #{discriminator_forward.6} parent=5 // pred_fallthru
      _
    %p196 = scmp.lt.s32.totalorder %s10, 2
    // Predicated region
    $region25: #{discriminator_forward.6} parent=5 // pred_check
      %p197 = pneg %p196
    $region26: #{discriminator_forward.6} parent=5 // pred_check_branch
      %199 = sbr.rel (%p197) target = $region28
    $region27: #{discriminator_forward.6} parent=5 // pred_region
      // Predicated region
      $region29: #{discriminator_forward.6} parent=27 // pred_check
        %p200 = pneg %p72
      $region30: #{discriminator_forward.6} parent=27 // pred_check_branch
        %202 = sbr.rel (%p200) target = $region32
      $region31: #{discriminator_forward.6} parent=27 // pred_region
        %p203 = scmp.lt.s32.totalorder %s18, 1
        %s204 = scalar_select %p203, %s18, 1
        %p205 = scmp.lt.s32.totalorder %s19, 0
        %s206 = scalar_select %p205, %s19, 0
        %s207 = smul.addr %s204, 4
        %s208 = sadd.s32 %s206, %s207
        %s209 = smul.addr %s208, 4
        %s210 = scalar_lea.vmem %s1, %s209
      $region32: #{discriminator_forward.6} parent=27 // pred_fallthru
        _
    $region28: #{discriminator_forward.6} parent=5 // pred_fallthru
      _
    %p211 = scmp.le.s32.totalorder 1, %s10
    %p212 = scmp.lt.s32.totalorder %s10, 3
    %p213 = pnand %p211, %p212
    %p214 = pneg %p213
    // Predicated region
    $region33: #{discriminator_forward.6} parent=5 // pred_check
      _
    $region34: #{discriminator_forward.6} parent=5 // pred_check_branch
      %216 = sbr.rel (%p213) target = $region36
    $region35: #{discriminator_forward.6} parent=5 // pred_region
      %s217 = ssub.s32 %s10, 1
      %p218 = pneg %p50
      %p219 = pneg %p47
      %p220 = scmp.lt.s32.totalorder %s21, 1
      %s221 = scalar_select %p220, %s21, 1
      %p222 = scmp.lt.s32.totalorder %s22, 0
      %s223 = scalar_select %p222, %s22, 0
      %s224 = smul.addr %s221, 4
      %s225 = sadd.s32 %s223, %s224
      %s226 = smul.addr %s225, 4
      %s227 = scalar_lea.vmem %s1, %s226
      %p228 = pneg %p78
      %p229 = pneg %p75
      %s230 = smul.u32 8, %s22
      %p231 = scmp.lt.s32.totalorder %s230, 7
      %s232 = scalar_select %p231, %s230, 7
      %p233 = scmp.lt.s32.totalorder %s20, 0
      %s234 = scalar_select %p233, %s20, 0
      %s235 = sadd.s32 %s234, %s232
      %s236 = smul.addr %s235, 4
      %s237 = scalar_lea.vmem %s2, %s236
      %p238 = pneg %p106
      %p239 = pneg %p103
      %p240 = scmp.lt.s32.totalorder %s20, 0
      %s241 = scalar_select %p240, %s20, 0
      %s242 = scalar_lea.vmem %s3, %s241
      %p243 = pneg %p132
      %p244 = pneg %p129
      %p245 = pneg %p160
      %p246 = pneg %p157
      %p247 = scmp.lt.s32.totalorder %s21, 1
      %s248 = scalar_select %p247, %s21, 1
      %p249 = scmp.lt.s32.totalorder %s20, 0
      %s250 = scalar_select %p249, %s20, 0
      %s251 = smul.addr %s248, 3
      %s252 = sadd.s32 %s250, %s251
      %s253 = smul.addr %s252, 4
      %s254 = scalar_lea.vmem %s4, %s253
      %p255 = scmp.lt.s32.totalorder %s21, 1
      %s256 = scalar_select %p255, %s21, 1
      %p257 = scmp.lt.s32.totalorder %s22, 0
      %s258 = scalar_select %p257, %s22, 0
      %s259 = smul.addr %s256, 4
      %s260 = sadd.s32 %s258, %s259
      %s261 = smul.addr %s260, 4
      %s262 = scalar_lea.vmem %s1, %s261
      %s263 = smul.u32 8, %s22
      %p264 = scmp.lt.s32.totalorder %s263, 7
      %s265 = scalar_select %p264, %s263, 7
      %p266 = scmp.lt.s32.totalorder %s20, 0
      %s267 = scalar_select %p266, %s20, 0
      %s268 = sadd.s32 %s267, %s265
      %s269 = smul.addr %s268, 4
      %s270 = scalar_lea.vmem %s2, %s269
      %s271 = smul.u32 8, %s22
      %p272 = scmp.lt.s32.totalorder %s20, 0
      %s273 = scalar_select %p272, %s20, 0
      %s274 = scalar_lea.vmem %s3, %s273
      %p275 = scmp.lt.s32.totalorder %s21, 1
      %s276 = scalar_select %p275, %s21, 1
      %p277 = scmp.lt.s32.totalorder %s20, 0
      %s278 = scalar_select %p277, %s20, 0
      %s279 = smul.addr %s276, 3
      %s280 = sadd.s32 %s278, %s279
      %s281 = smul.addr %s280, 4
      %s282 = scalar_lea.vmem %s4, %s281
      %p284 = scmp.eq.s32.totalorder %s22, 0
      // Predicated region
      $region37: #{discriminator_forward.6} parent=35 // pred_check
        %p285 = pneg %p284
      $region38: #{discriminator_forward.6} parent=35 // pred_check_branch
        %287 = sbr.rel (%p285) target = $region40
      $region39: #{discriminator_forward.6} parent=35 // pred_region
        %vm288 = vcmask 261120
        %289 = vst.msk [vmem:[#allocation2] sm:$0xff] %vm288, 0.0
        %290 = vst.msk [vmem:[#allocation2 + $0x8] sm:$0xff] %vm288, 0.0
        %vm291 = vcmask 257024
        %292 = vst.msk [vmem:[#allocation2 + $0x10] sm:$0xf] %vm291, 0.0
      $region40: #{discriminator_forward.6} parent=35 // pred_fallthru
        _
      %v293 = vld [vmem:[%s262] sm:$0xf]
      %v294 = vld [vmem:[%s262 + $0x4] sm:$0xf]
      %v295 = vld [vmem:[%s262 + $0x8] sm:$0xf]
      %v296 = vld [vmem:[%s262 + $0xc] sm:$0xf]
      %v297 = vld [vmem:[#allocation2] sm:$0xff]
      %v298 = vld [vmem:[#allocation2 + $0x8] sm:$0xff]
      %v299 = vld [vmem:[#allocation2 + $0x10] sm:$0xf]
      %v300 = vld [vmem:[%s270] sm:$0xf]
      %v301 = vld [vmem:[%s270 + $0x4] sm:$0xf]
      %v302 = vld [vmem:[%s270 + $0x8] sm:$0xf]
      %v303 = vld [vmem:[%s270 + $0xc] sm:$0xf]
      %v304 = vld [vmem:[%s270 + $0x10] sm:$0xf]
      %v305 = vld [vmem:[%s270 + $0x14] sm:$0xf]
      %v306 = vld [vmem:[%s270 + $0x18] sm:$0xf]
      %v307 = vld [vmem:[%s270 + $0x1c] sm:$0xf]
      %v312 = vunpack.c.l.b16 %v293
      %v313 = vunpack.c.l.b16 %v294
      %v314 = vunpack.c.l.b16 %v295
      %v315 = vunpack.c.l.b16 %v296
      %v316 = vpack.c.b16 %v313, %v312
      %v317 = vpack.c.b16 %v315, %v314
      %v326 = vunpack.c.l.b16 %v300
      %v327 = vunpack.c.l.b16 %v301
      %v328 = vunpack.c.l.b16 %v302
      %v329 = vunpack.c.l.b16 %v303
      %v330 = vunpack.c.l.b16 %v304
      %v331 = vunpack.c.l.b16 %v305
      %v332 = vunpack.c.l.b16 %v306
      %v333 = vunpack.c.l.b16 %v307
      %v334 = vpack.c.b16 %v327, %v326
      %v335 = vpack.c.b16 %v329, %v328
      %v336 = vpack.c.b16 %v331, %v330
      %v337 = vpack.c.b16 %v333, %v332
      %vm342 = vcmask 523264
      %v344 = vsel %vm342, %v316, 0
      %v347 = vsel %vm342, %v317, 0
      %349 = vmatpush.bf16.msra.mxu0 0
      %350 = vmatpush.bf16.msra.mxu0 0
      %351 = vmatpush.bf16.msra.mxu0 0
      %352 = vmatpush.bf16.msra.mxu0 0
      %353 = vmatpush.bf16.msra.mxu0 %v337
      %354 = vmatpush.bf16.msra.mxu0 %v336
      %355 = vmatpush.bf16.msra.mxu0 %v335
      %356 = vmatpush.bf16.msra.mxu0 %v334
      %357 = vmatmul.bf16.gmra.mxu0 %v344
      %v358 = vpop.f32.mrf.mxu0
      %v359 = vadd.f32 0.0, %v358
      %v360 = vpop.f32.mrf.mxu0
      %v361 = vadd.f32 0.0, %v360
      %362 = vmatmul.bf16.gmra.mxu0 %v347
      %v363 = vpop.f32.mrf.mxu0
      %v364 = vadd.f32 0.0, %v363
      %v365 = vpop.f32.mrf.mxu0
      %366 = vdwg.mxu0
      %v367 = vadd.f32 %v297, %v359
      %v368 = vadd.f32 %v298, %v361
      %v369 = vadd.f32 %v299, %v364
      %s370 = scalar_lea.vmem %s270, 32
      %v371 = vld [vmem:[%s370] sm:$0xf]
      %v372 = vld [vmem:[%s370 + $0x4] sm:$0xf]
      %v373 = vld [vmem:[%s370 + $0x8] sm:$0xf]
      %v374 = vld [vmem:[%s370 + $0xc] sm:$0xf]
      %v375 = vld [vmem:[%s370 + $0x10] sm:$0xf]
      %v376 = vld [vmem:[%s370 + $0x14] sm:$0xf]
      %v377 = vld [vmem:[%s370 + $0x18] sm:$0xf]
      %v378 = vld [vmem:[%s370 + $0x1c] sm:$0xf]
      %v387 = vunpack.c.l.b16 %v371
      %v388 = vunpack.c.l.b16 %v372
      %v389 = vunpack.c.l.b16 %v373
      %v390 = vunpack.c.l.b16 %v374
      %v391 = vunpack.c.l.b16 %v375
      %v392 = vunpack.c.l.b16 %v376
      %v393 = vunpack.c.l.b16 %v377
      %v394 = vunpack.c.l.b16 %v378
      %v395 = vpack.c.b16 %v388, %v387
      %v396 = vpack.c.b16 %v390, %v389
      %v397 = vpack.c.b16 %v392, %v391
      %v398 = vpack.c.b16 %v394, %v393
      %403 = vmatpush.bf16.msra.mxu0 0
      %404 = vmatpush.bf16.msra.mxu0 0
      %405 = vmatpush.bf16.msra.mxu0 0
      %406 = vmatpush.bf16.msra.mxu0 0
      %407 = vmatpush.bf16.msra.mxu0 %v398
      %408 = vmatpush.bf16.msra.mxu0 %v397
      %409 = vmatpush.bf16.msra.mxu0 %v396
      %410 = vmatpush.bf16.msra.mxu0 %v395
      %411 = vmatmul.bf16.gmra.mxu0 %v344
      %v412 = vpop.f32.mrf.mxu0
      %v413 = vadd.f32 0.0, %v412
      %v414 = vpop.f32.mrf.mxu0
      %v415 = vadd.f32 0.0, %v414
      %416 = vmatmul.bf16.gmra.mxu0 %v347
      %v417 = vpop.f32.mrf.mxu0
      %v418 = vadd.f32 0.0, %v417
      %v419 = vpop.f32.mrf.mxu0
      %420 = vdwg.mxu0
      %vm424 = vcmask 1046528
      %v425 = vrot.slane %v413, 1
      %v426 = vrot.slane %v415, 1
      %v427 = vsel %vm424, %v425, %v426
      %v428 = vrot.slane %v418, 1
      %v429 = vsel %vm424, %v426, %v428
      %v433 = vadd.f32 %v367, %v427
      %v434 = vadd.f32 %v368, %v429
      %v435 = vadd.f32 %v369, %v428
      %s436 = scalar_lea.vmem %s270, 64
      %v437 = vld [vmem:[%s436] sm:$0xf]
      %v438 = vld [vmem:[%s436 + $0x4] sm:$0xf]
      %v439 = vld [vmem:[%s436 + $0x8] sm:$0xf]
      %v440 = vld [vmem:[%s436 + $0xc] sm:$0xf]
      %v441 = vld [vmem:[%s436 + $0x10] sm:$0xf]
      %v442 = vld [vmem:[%s436 + $0x14] sm:$0xf]
      %v443 = vld [vmem:[%s436 + $0x18] sm:$0xf]
      %v444 = vld [vmem:[%s436 + $0x1c] sm:$0xf]
      %v453 = vunpack.c.l.b16 %v437
      %v454 = vunpack.c.l.b16 %v438
      %v455 = vunpack.c.l.b16 %v439
      %v456 = vunpack.c.l.b16 %v440
      %v457 = vunpack.c.l.b16 %v441
      %v458 = vunpack.c.l.b16 %v442
      %v459 = vunpack.c.l.b16 %v443
      %v460 = vunpack.c.l.b16 %v444
      %v461 = vpack.c.b16 %v454, %v453
      %v462 = vpack.c.b16 %v456, %v455
      %v463 = vpack.c.b16 %v458, %v457
      %v464 = vpack.c.b16 %v460, %v459
      %469 = vmatpush.bf16.msra.mxu0 0
      %470 = vmatpush.bf16.msra.mxu0 0
      %471 = vmatpush.bf16.msra.mxu0 0
      %472 = vmatpush.bf16.msra.mxu0 0
      %473 = vmatpush.bf16.msra.mxu0 %v464
      %474 = vmatpush.bf16.msra.mxu0 %v463
      %475 = vmatpush.bf16.msra.mxu0 %v462
      %476 = vmatpush.bf16.msra.mxu0 %v461
      %477 = vmatmul.bf16.gmra.mxu0 %v344
      %v478 = vpop.f32.mrf.mxu0
      %v479 = vadd.f32 0.0, %v478
      %v480 = vpop.f32.mrf.mxu0
      %v481 = vadd.f32 0.0, %v480
      %482 = vmatmul.bf16.gmra.mxu0 %v347
      %v483 = vpop.f32.mrf.mxu0
      %v484 = vadd.f32 0.0, %v483
      %v485 = vpop.f32.mrf.mxu0
      %v486 = vadd.f32 0.0, %v485
      %487 = vdwg.mxu0
      %vm492 = vcmask 1042432
      %v493 = vrot.slane %v479, 5
      %v494 = vrot.slane %v481, 5
      %v495 = vsel %vm492, %v493, %v494
      %v496 = vrot.slane %v484, 5
      %v497 = vsel %vm492, %v494, %v496
      %v498 = vrot.slane %v486, 5
      %v499 = vsel %vm492, %v496, %v498
      %v503 = vadd.f32 %v433, %v495
      %v504 = vadd.f32 %v434, %v497
      %v505 = vadd.f32 %v435, %v499
      %s506 = scalar_lea.vmem %s270, 96
      %v507 = vld [vmem:[%s506] sm:$0xf]
      %v508 = vld [vmem:[%s506 + $0x4] sm:$0xf]
      %v509 = vld [vmem:[%s506 + $0x8] sm:$0xf]
      %v510 = vld [vmem:[%s506 + $0xc] sm:$0xf]
      %v511 = vld [vmem:[%s506 + $0x10] sm:$0xf]
      %v512 = vld [vmem:[%s506 + $0x14] sm:$0xf]
      %v513 = vld [vmem:[%s506 + $0x18] sm:$0xf]
      %v514 = vld [vmem:[%s506 + $0x1c] sm:$0xf]
      %v523 = vunpack.c.l.b16 %v507
      %v524 = vunpack.c.l.b16 %v508
      %v525 = vunpack.c.l.b16 %v509
      %v526 = vunpack.c.l.b16 %v510
      %v527 = vunpack.c.l.b16 %v511
      %v528 = vunpack.c.l.b16 %v512
      %v529 = vunpack.c.l.b16 %v513
      %v530 = vunpack.c.l.b16 %v514
      %v531 = vpack.c.b16 %v524, %v523
      %v532 = vpack.c.b16 %v526, %v525
      %v533 = vpack.c.b16 %v528, %v527
      %v534 = vpack.c.b16 %v530, %v529
      %539 = vmatpush.bf16.msra.mxu0 0
      %540 = vmatpush.bf16.msra.mxu0 0
      %541 = vmatpush.bf16.msra.mxu0 0
      %542 = vmatpush.bf16.msra.mxu0 0
      %543 = vmatpush.bf16.msra.mxu0 %v534
      %544 = vmatpush.bf16.msra.mxu0 %v533
      %545 = vmatpush.bf16.msra.mxu0 %v532
      %546 = vmatpush.bf16.msra.mxu0 %v531
      %547 = vmatmul.bf16.gmra.mxu0 %v344
      %v548 = vpop.f32.mrf.mxu0
      %v549 = vadd.f32 0.0, %v548
      %v550 = vpop.f32.mrf.mxu0
      %v551 = vadd.f32 0.0, %v550
      %552 = vmatmul.bf16.gmra.mxu0 %v347
      %v553 = vpop.f32.mrf.mxu0
      %v554 = vadd.f32 0.0, %v553
      %v555 = vpop.f32.mrf.mxu0
      %v556 = vadd.f32 0.0, %v555
      %557 = vdwg.mxu0
      %vm562 = vcmask 1041408
      %v563 = vrot.slane %v549, 6
      %v564 = vrot.slane %v551, 6
      %v565 = vsel %vm562, %v563, %v564
      %v566 = vrot.slane %v554, 6
      %v567 = vsel %vm562, %v564, %v566
      %v568 = vrot.slane %v556, 6
      %v569 = vsel %vm562, %v566, %v568
      %v573 = vadd.f32 %v503, %v565
      %v574 = vadd.f32 %v504, %v567
      %v575 = vadd.f32 %v505, %v569
      %vm576 = vcmask 261120
      %577 = vst.msk [vmem:[#allocation2] sm:$0xff] %vm576, %v573
      %578 = vst.msk [vmem:[#allocation2 + $0x8] sm:$0xff] %vm576, %v574
      %vm579 = vcmask 257024
      %580 = vst.msk [vmem:[#allocation2 + $0x10] sm:$0xf] %vm579, %v575
      // Predicated region
      $region41: #{discriminator_forward.6} parent=35 // pred_check
        %p581 = pneg %p284
      $region42: #{discriminator_forward.6} parent=35 // pred_check_branch
        %583 = sbr.rel (%p581) target = $region44
      $region43: #{discriminator_forward.6} parent=35 // pred_region
        %v584 = vld [vmem:[%s274] sm:$0x1]
        %v586 = vperm.slane %v584, 0
        %v588 = vadd.f32 %v573, %v586
        %v589 = vadd.f32 %v574, %v586
        %v590 = vadd.f32 %v575, %v586
        %v591 = vld [vmem:[%s0] sm:$0xff]
        %v592 = vld [vmem:[%s0 + $0x8] sm:$0xff]
        %v593 = vld [vmem:[%s0 + $0x10] sm:$0xf]
        %595 = vset.pattern.permute.xlu0 0
        %596 = vperm.xlu0 %595, %v591
        %v597 = vpop.permute.xlu0 %596
        %600 = vset.pattern.permute.xlu0 0
        %601 = vperm.xlu0 %600, %v592
        %v602 = vpop.permute.xlu0 %601
        %605 = vset.pattern.permute.xlu0 0
        %606 = vperm.xlu0 %605, %v593
        %v607 = vpop.permute.xlu0 %606
        %v609 = vmul.f32 %v588, %v597
        %v610 = vmul.f32 %v589, %v602
        %v611 = vmul.f32 %v590, %v607
        %v612 = vsel %vm576, %v609, 0.0
        %v613 = vsel %vm576, %v610, 0.0
        %v614 = vadd.f32 %v612, %v613
        %v615 = vsel %vm579, %v611, 0.0
        %v616 = vadd.f32 %v614, %v615
        %v617 = vrot.slane %v616, 4
        %v618 = vadd.f32 %v616, %v617
        %v619 = vrot.slane %v618, 2
        %v620 = vadd.f32 %v618, %v619
        %v621 = vrot.slane %v620, 1
        %v622 = vadd.f32 %v620, %v621
        %v623 = vmul.f32 %v622, 0.0625
        %v624 = vsub.f32 %v588, %v623
        %v625 = vsub.f32 %v589, %v623
        %v626 = vsub.f32 %v590, %v623
        %v627 = vmul.f32 %v624, %v624
        %v628 = vmul.f32 %v625, %v625
        %v629 = vmul.f32 %v626, %v626
        %v630 = vmul.f32 %v627, %v597
        %v631 = vmul.f32 %v628, %v602
        %v632 = vmul.f32 %v629, %v607
        %v633 = vsel %vm576, %v630, 0.0
        %v634 = vsel %vm576, %v631, 0.0
        %v635 = vadd.f32 %v633, %v634
        %v636 = vsel %vm579, %v632, 0.0
        %v637 = vadd.f32 %v635, %v636
        %v638 = vrot.slane %v637, 4
        %v639 = vadd.f32 %v637, %v638
        %v640 = vrot.slane %v639, 2
        %v641 = vadd.f32 %v639, %v640
        %v642 = vrot.slane %v641, 1
        %v643 = vadd.f32 %v641, %v642
        %v644 = vmul.f32 %v643, 0.0625
        %v645 = vadd.f32 %v644, 1e-05
        %v646 = vrsqrt.pop %v645
        %v647 = vmul.f32 %v646, %v645
        %v648 = vmul.f32 %v647, %v646
        %v649 = vmul.f32 0.5, %v648
        %v650 = vsub.f32 1.5, %v649
        %v651 = vmul.f32 %v646, %v650
        %vm652 = vweird.f32 %v645
        %vm653 = vweird.f32 %v646
        %vm654 = vmor %vm652, %vm653
        %v655 = vsel %vm654, %v646, %v651
        %v656 = vmul.f32 %v624, %v655
        %v657 = vmul.f32 %v625, %v655
        %v658 = vmul.f32 %v626, %v655
        %vm659 = vcmp.ge.f32.partialorder %v656, 0.0
        %vm660 = vcmp.ge.f32.partialorder %v657, 0.0
        %vm661 = vcmp.ge.f32.partialorder %v658, 0.0
        %v662 = vmul.f32 %v656, 0.2
        %v663 = vmul.f32 %v657, 0.2
        %v664 = vmul.f32 %v658, 0.2
        %v665 = vsel %vm659, %v656, %v662
        %v666 = vsel %vm660, %v657, %v663
        %v667 = vsel %vm661, %v658, %v664
        %v668 = vpack.c.bf16 %v665, %v665
        %v669 = vpack.c.bf16 %v666, %v666
        %v670 = vpack.c.bf16 %v667, %v667
        %671 = vst.msk [vmem:[%s282] sm:$0xf] %vm579, %v668
        %672 = vst.msk [vmem:[%s282 + $0x4] sm:$0xf] %vm579, %v669
        %vm673 = vcmask 254976
        %674 = vst.msk [vmem:[%s282 + $0x8] sm:$0x3] %vm673, %v670
      $region44: #{discriminator_forward.6} parent=35 // pred_fallthru
        _
      %p675 = scmp.lt.s32.totalorder %s21, 1
      %s676 = scalar_select %p675, %s21, 1
      %p677 = scmp.lt.s32.totalorder %s20, 0
      %s678 = scalar_select %p677, %s20, 0
      %s679 = smul.addr %s676, 3
      %s680 = sadd.s32 %s678, %s679
      %s681 = smul.addr %s680, 4
      %s682 = scalar_lea.vmem %s4, %s681
      // Predicated region
      $region45: #{discriminator_forward.6} parent=35 // pred_check
        %p683 = pneg %p157
      $region46: #{discriminator_forward.6} parent=35 // pred_check_branch
        %685 = sbr.rel (%p683) target = $region48
      $region47: #{discriminator_forward.6} parent=35 // pred_region
        _
      $region48: #{discriminator_forward.6} parent=35 // pred_fallthru
        _
    $region36: #{discriminator_forward.6} parent=5 // pred_fallthru
      _
    %p686 = scmp.le.s32.totalorder 2, %s10
    // Predicated region
    $region49: #{discriminator_forward.6} parent=5 // pred_check
      %p687 = pneg %p686
    $region50: #{discriminator_forward.6} parent=5 // pred_check_branch
      %689 = sbr.rel (%p687) target = $region52
    $region51: #{discriminator_forward.6} parent=5 // pred_region
      %s690 = ssub.s32 %s10, 2
      // Predicated region
      $region53: #{discriminator_forward.6} parent=51 // pred_check
        %p691 = pneg %p163
      $region54: #{discriminator_forward.6} parent=51 // pred_check_branch
        %693 = sbr.rel (%p691) target = $region56
      $region55: #{discriminator_forward.6} parent=51 // pred_region
        %p694 = scmp.lt.s32.totalorder %s24, 1
        %s695 = scalar_select %p694, %s24, 1
        %p696 = scmp.lt.s32.totalorder %s23, 0
        %s697 = scalar_select %p696, %s23, 0
        %s698 = smul.addr %s695, 3
        %s699 = sadd.s32 %s697, %s698
        %s700 = smul.addr %s699, 4
        %s701 = scalar_lea.vmem %s4, %s700
      $region56: #{discriminator_forward.6} parent=51 // pred_fallthru
        _
    $region52: #{discriminator_forward.6} parent=5 // pred_fallthru
      _
  $region6: #{discriminator_forward.6} parent=0 // loop_footer
    %s14 = sadd.s32 1, %s10
  $region7: #{discriminator_forward.6} parent=0 // loop_footer_branch
    %9 = sbr.rel target = $region3
  $region8: #{discriminator_forward.6} parent=0 // loop_exit
    _

// kernel: discriminator_forward.7
$region0: #{discriminator_forward.7}
  #allocation0 [shape = 'u32[]', space=smem, size = 0x4, offset = 0x4, fixed_abs, tag = 'smem constant byte address 0x4 - core index']
  #allocation1 [shape = 'u32[72,128]{1,0:T(1,128)}', space=vmem, size = 0x9000, scoped, tag = 'internal scratch']
  #allocation2 [shape = 'f32[1,1]{1,0:T(1,128)S(1)}', space=vmem, size = 0x200, scoped, tag = 'scoped memory for discriminator_forward.7']
  %s0 = inlined_call_operand.vmem [shape: bf16[512,2], index: 0, kind: input, shape index: {}]
  %s1 = inlined_call_operand.vmem [shape: bf16[1,512], index: 1, kind: input, shape index: {}]
  %s2 = inlined_call_operand.<no memory space> [shape: f32[1,1], index: 2, kind: input, shape index: {}]
  %s3 = inlined_call_operand.hbm [shape: f32[1,2], index: 3, kind: output, shape index: {}]
  %s4 = sld [smem:[#allocation0]]
  $region22: #{discriminator_forward.7} parent=0
    _
  %s6 = ssub.s32 1, %s4
  %s7 = scalar_select 0, %s6, %s4
  %v8 = vstv %s2
  %9 = vst [vmem:[#allocation2] sm:$0x1] %v8
  $region1: #{discriminator_forward.7} parent=0
    #allocation3 [shape = 'u8[512]{0}', space=vmem, size = 0x400, scoped, tag = 'output window, operand 0, single buffered']
    #allocation4 [shape = 's32[1]{0}', space=sflag, size = 0x4, scoped, tag = 'scoped memory for discriminator_forward.7']
    %10 = vsyncpa [#allocation4], 0
    // Predicated region
    $region2: #{discriminator_forward.7} parent=1 // pred_check
      _
    $region3: #{discriminator_forward.7} parent=1 // pred_check_branch
      %12 = sbr.rel (0) target = $region5
    $region4: #{discriminator_forward.7} parent=1 // pred_region
      _
    $region5: #{discriminator_forward.7} parent=1 // pred_fallthru
      _
    // Predicated region
    $region6: #{discriminator_forward.7} parent=1 // pred_check
      _
    $region7: #{discriminator_forward.7} parent=1 // pred_check_branch
      %14 = sbr.rel (0) target = $region9
    $region8: #{discriminator_forward.7} parent=1 // pred_region
      _
    $region9: #{discriminator_forward.7} parent=1 // pred_fallthru
      _
    // Predicated region
    $region10: #{discriminator_forward.7} parent=1 // pred_check
      _
    $region11: #{discriminator_forward.7} parent=1 // pred_check_branch
      %16 = sbr.rel (0) target = $region13
    $region12: #{discriminator_forward.7} parent=1 // pred_region
      _
    $region13: #{discriminator_forward.7} parent=1 // pred_fallthru
      _
    %v17 = vld [vmem:[%s1] sm:$0xf]
    %v18 = vld [vmem:[%s0] sm:$0xf]
    %v19 = vld [vmem:[%s0 + $0x4] sm:$0xf]
    %v20 = vld [vmem:[%s0 + $0x8] sm:$0xf]
    %v21 = vld [vmem:[%s0 + $0xc] sm:$0xf]
    %v22 = vld [vmem:[%s0 + $0x10] sm:$0xf]
    %v23 = vld [vmem:[%s0 + $0x14] sm:$0xf]
    %v24 = vld [vmem:[%s0 + $0x18] sm:$0xf]
    %v25 = vld [vmem:[%s0 + $0x1c] sm:$0xf]
    %v26 = vld [vmem:[%s0 + $0x20] sm:$0xf]
    %v27 = vld [vmem:[%s0 + $0x24] sm:$0xf]
    %v28 = vld [vmem:[%s0 + $0x28] sm:$0xf]
    %v29 = vld [vmem:[%s0 + $0x2c] sm:$0xf]
    %v30 = vld [vmem:[%s0 + $0x30] sm:$0xf]
    %v31 = vld [vmem:[%s0 + $0x34] sm:$0xf]
    %v32 = vld [vmem:[%s0 + $0x38] sm:$0xf]
    %v33 = vld [vmem:[%s0 + $0x3c] sm:$0xf]
    %v34 = vld [vmem:[%s0 + $0x40] sm:$0xf]
    %v35 = vld [vmem:[%s0 + $0x44] sm:$0xf]
    %v36 = vld [vmem:[%s0 + $0x48] sm:$0xf]
    %v37 = vld [vmem:[%s0 + $0x4c] sm:$0xf]
    %v38 = vld [vmem:[%s0 + $0x50] sm:$0xf]
    %v39 = vld [vmem:[%s0 + $0x54] sm:$0xf]
    %v40 = vld [vmem:[%s0 + $0x58] sm:$0xf]
    %v41 = vld [vmem:[%s0 + $0x5c] sm:$0xf]
    %v42 = vld [vmem:[%s0 + $0x60] sm:$0xf]
    %v43 = vld [vmem:[%s0 + $0x64] sm:$0xf]
    %v44 = vld [vmem:[%s0 + $0x68] sm:$0xf]
    %v45 = vld [vmem:[%s0 + $0x6c] sm:$0xf]
    %v46 = vld [vmem:[%s0 + $0x70] sm:$0xf]
    %v47 = vld [vmem:[%s0 + $0x74] sm:$0xf]
    %v48 = vld [vmem:[%s0 + $0x78] sm:$0xf]
    %v49 = vld [vmem:[%s0 + $0x7c] sm:$0xf]
    %v50 = vld [vmem:[%s0 + $0x80] sm:$0xf]
    %v51 = vld [vmem:[%s0 + $0x84] sm:$0xf]
    %v52 = vld [vmem:[%s0 + $0x88] sm:$0xf]
    %v53 = vld [vmem:[%s0 + $0x8c] sm:$0xf]
    %v54 = vld [vmem:[%s0 + $0x90] sm:$0xf]
    %v55 = vld [vmem:[%s0 + $0x94] sm:$0xf]
    %v56 = vld [vmem:[%s0 + $0x98] sm:$0xf]
    %v57 = vld [vmem:[%s0 + $0x9c] sm:$0xf]
    %v58 = vld [vmem:[%s0 + $0xa0] sm:$0xf]
    %v59 = vld [vmem:[%s0 + $0xa4] sm:$0xf]
    %v60 = vld [vmem:[%s0 + $0xa8] sm:$0xf]
    %v61 = vld [vmem:[%s0 + $0xac] sm:$0xf]
    %v62 = vld [vmem:[%s0 + $0xb0] sm:$0xf]
    %v63 = vld [vmem:[%s0 + $0xb4] sm:$0xf]
    %v64 = vld [vmem:[%s0 + $0xb8] sm:$0xf]
    %v65 = vld [vmem:[%s0 + $0xbc] sm:$0xf]
    %v66 = vld [vmem:[%s0 + $0xc0] sm:$0xf]
    %v67 = vld [vmem:[%s0 + $0xc4] sm:$0xf]
    %v68 = vld [vmem:[%s0 + $0xc8] sm:$0xf]
    %v69 = vld [vmem:[%s0 + $0xcc] sm:$0xf]
    %v70 = vld [vmem:[%s0 + $0xd0] sm:$0xf]
    %v71 = vld [vmem:[%s0 + $0xd4] sm:$0xf]
    %v72 = vld [vmem:[%s0 + $0xd8] sm:$0xf]
    %v73 = vld [vmem:[%s0 + $0xdc] sm:$0xf]
    %v74 = vld [vmem:[%s0 + $0xe0] sm:$0xf]
    %v75 = vld [vmem:[%s0 + $0xe4] sm:$0xf]
    %v76 = vld [vmem:[%s0 + $0xe8] sm:$0xf]
    %v77 = vld [vmem:[%s0 + $0xec] sm:$0xf]
    %v78 = vld [vmem:[%s0 + $0xf0] sm:$0xf]
    %v79 = vld [vmem:[%s0 + $0xf4] sm:$0xf]
    %v80 = vld [vmem:[%s0 + $0xf8] sm:$0xf]
    %v81 = vld [vmem:[%s0 + $0xfc] sm:$0xf]
    %v82 = vld [vmem:[#allocation2] sm:$0x1]
    %84 = vset.pattern.permute.xlu0 0
    %85 = vperm.xlu0 %84, %v82
    %v86 = vpop.permute.xlu0 %85
    %v88 = vperm.slane %v86, 0
    %90 = vst [vmem:[#allocation1] ss:$9 sm:$0xff] %v17
    %v91 = vld [vmem:[#allocation1] sm:$0xff]
    %v92 = vld [vmem:[#allocation1 + $0x9] sm:$0xff]
    %v93 = vld [vmem:[#allocation1 + $0x12] sm:$0xff]
    %v94 = vld [vmem:[#allocation1 + $0x1b] sm:$0xff]
    %v163 = vunpack.c.l.b16 %v18
    %v164 = vunpack.c.l.b16 %v19
    %v165 = vunpack.c.l.b16 %v20
    %v166 = vunpack.c.l.b16 %v21
    %v167 = vunpack.c.l.b16 %v22
    %v168 = vunpack.c.l.b16 %v23
    %v169 = vunpack.c.l.b16 %v24
    %v170 = vunpack.c.l.b16 %v25
    %v171 = vunpack.c.l.b16 %v26
    %v172 = vunpack.c.l.b16 %v27
    %v173 = vunpack.c.l.b16 %v28
    %v174 = vunpack.c.l.b16 %v29
    %v175 = vunpack.c.l.b16 %v30
    %v176 = vunpack.c.l.b16 %v31
    %v177 = vunpack.c.l.b16 %v32
    %v178 = vunpack.c.l.b16 %v33
    %v179 = vunpack.c.l.b16 %v34
    %v180 = vunpack.c.l.b16 %v35
    %v181 = vunpack.c.l.b16 %v36
    %v182 = vunpack.c.l.b16 %v37
    %v183 = vunpack.c.l.b16 %v38
    %v184 = vunpack.c.l.b16 %v39
    %v185 = vunpack.c.l.b16 %v40
    %v186 = vunpack.c.l.b16 %v41
    %v187 = vunpack.c.l.b16 %v42
    %v188 = vunpack.c.l.b16 %v43
    %v189 = vunpack.c.l.b16 %v44
    %v190 = vunpack.c.l.b16 %v45
    %v191 = vunpack.c.l.b16 %v46
    %v192 = vunpack.c.l.b16 %v47
    %v193 = vunpack.c.l.b16 %v48
    %v194 = vunpack.c.l.b16 %v49
    %v195 = vunpack.c.l.b16 %v50
    %v196 = vunpack.c.l.b16 %v51
    %v197 = vunpack.c.l.b16 %v52
    %v198 = vunpack.c.l.b16 %v53
    %v199 = vunpack.c.l.b16 %v54
    %v200 = vunpack.c.l.b16 %v55
    %v201 = vunpack.c.l.b16 %v56
    %v202 = vunpack.c.l.b16 %v57
    %v203 = vunpack.c.l.b16 %v58
    %v204 = vunpack.c.l.b16 %v59
    %v205 = vunpack.c.l.b16 %v60
    %v206 = vunpack.c.l.b16 %v61
    %v207 = vunpack.c.l.b16 %v62
    %v208 = vunpack.c.l.b16 %v63
    %v209 = vunpack.c.l.b16 %v64
    %v210 = vunpack.c.l.b16 %v65
    %v211 = vunpack.c.l.b16 %v66
    %v212 = vunpack.c.l.b16 %v67
    %v213 = vunpack.c.l.b16 %v68
    %v214 = vunpack.c.l.b16 %v69
    %v215 = vunpack.c.l.b16 %v70
    %v216 = vunpack.c.l.b16 %v71
    %v217 = vunpack.c.l.b16 %v72
    %v218 = vunpack.c.l.b16 %v73
    %v219 = vunpack.c.l.b16 %v74
    %v220 = vunpack.c.l.b16 %v75
    %v221 = vunpack.c.l.b16 %v76
    %v222 = vunpack.c.l.b16 %v77
    %v223 = vunpack.c.l.b16 %v78
    %v224 = vunpack.c.l.b16 %v79
    %v225 = vunpack.c.l.b16 %v80
    %v226 = vunpack.c.l.b16 %v81
    %v227 = vpack.c.b16 %v164, %v163
    %v228 = vpack.c.b16 %v166, %v165
    %v229 = vpack.c.b16 %v168, %v167
    %v230 = vpack.c.b16 %v170, %v169
    %v231 = vpack.c.b16 %v172, %v171
    %v232 = vpack.c.b16 %v174, %v173
    %v233 = vpack.c.b16 %v176, %v175
    %v234 = vpack.c.b16 %v178, %v177
    %v235 = vpack.c.b16 %v180, %v179
    %v236 = vpack.c.b16 %v182, %v181
    %v237 = vpack.c.b16 %v184, %v183
    %v238 = vpack.c.b16 %v186, %v185
    %v239 = vpack.c.b16 %v188, %v187
    %v240 = vpack.c.b16 %v190, %v189
    %v241 = vpack.c.b16 %v192, %v191
    %v242 = vpack.c.b16 %v194, %v193
    %v243 = vpack.c.b16 %v196, %v195
    %v244 = vpack.c.b16 %v198, %v197
    %v245 = vpack.c.b16 %v200, %v199
    %v246 = vpack.c.b16 %v202, %v201
    %v247 = vpack.c.b16 %v204, %v203
    %v248 = vpack.c.b16 %v206, %v205
    %v249 = vpack.c.b16 %v208, %v207
    %v250 = vpack.c.b16 %v210, %v209
    %v251 = vpack.c.b16 %v212, %v211
    %v252 = vpack.c.b16 %v214, %v213
    %v253 = vpack.c.b16 %v216, %v215
    %v254 = vpack.c.b16 %v218, %v217
    %v255 = vpack.c.b16 %v220, %v219
    %v256 = vpack.c.b16 %v222, %v221
    %v257 = vpack.c.b16 %v224, %v223
    %v258 = vpack.c.b16 %v226, %v225
    %291 = vmatpush.bf16.msra.mxu0 %v234
    %292 = vmatpush.bf16.msra.mxu0 %v233
    %293 = vmatpush.bf16.msra.mxu0 %v232
    %294 = vmatpush.bf16.msra.mxu0 %v231
    %295 = vmatpush.bf16.msra.mxu0 %v230
    %296 = vmatpush.bf16.msra.mxu0 %v229
    %297 = vmatpush.bf16.msra.mxu0 %v228
    %298 = vmatpush.bf16.msra.mxu0 %v227
    %299 = vmatmul.bf16.gmra.mxu0 %v91
    %v300 = vpop.f32.mrf.mxu0
    %v301 = vadd.f32 %v88, %v300
    %v302 = vpop.f32.mrf.mxu0
    %303 = vdwg.mxu0
    %304 = vmatpush.bf16.msra.mxu0 %v242
    %305 = vmatpush.bf16.msra.mxu0 %v241
    %306 = vmatpush.bf16.msra.mxu0 %v240
    %307 = vmatpush.bf16.msra.mxu0 %v239
    %308 = vmatpush.bf16.msra.mxu0 %v238
    %309 = vmatpush.bf16.msra.mxu0 %v237
    %310 = vmatpush.bf16.msra.mxu0 %v236
    %311 = vmatpush.bf16.msra.mxu0 %v235
    %312 = vmatmul.bf16.gmra.mxu0 %v92
    %v313 = vpop.f32.mrf.mxu0
    %v314 = vadd.f32 %v301, %v313
    %v315 = vpop.f32.mrf.mxu0
    %316 = vdwg.mxu0
    %317 = vmatpush.bf16.msra.mxu0 %v250
    %318 = vmatpush.bf16.msra.mxu0 %v249
    %319 = vmatpush.bf16.msra.mxu0 %v248
    %320 = vmatpush.bf16.msra.mxu0 %v247
    %321 = vmatpush.bf16.msra.mxu0 %v246
    %322 = vmatpush.bf16.msra.mxu0 %v245
    %323 = vmatpush.bf16.msra.mxu0 %v244
    %324 = vmatpush.bf16.msra.mxu0 %v243
    %325 = vmatmul.bf16.gmra.mxu0 %v93
    %v326 = vpop.f32.mrf.mxu0
    %v327 = vadd.f32 %v314, %v326
    %v328 = vpop.f32.mrf.mxu0
    %329 = vdwg.mxu0
    %330 = vmatpush.bf16.msra.mxu0 %v258
    %331 = vmatpush.bf16.msra.mxu0 %v257
    %332 = vmatpush.bf16.msra.mxu0 %v256
    %333 = vmatpush.bf16.msra.mxu0 %v255
    %334 = vmatpush.bf16.msra.mxu0 %v254
    %335 = vmatpush.bf16.msra.mxu0 %v253
    %336 = vmatpush.bf16.msra.mxu0 %v252
    %337 = vmatpush.bf16.msra.mxu0 %v251
    %338 = vmatmul.bf16.gmra.mxu0 %v94
    %v339 = vpop.f32.mrf.mxu0
    %v340 = vadd.f32 %v327, %v339
    %v341 = vpop.f32.mrf.mxu0
    %342 = vdwg.mxu0
    %vm343 = vcmask 8192
    %344 = vst.msk [vmem:[#allocation3] sm:$0x1] %vm343, %v340
    // Predicated region
    $region14: #{discriminator_forward.7} parent=1 // pred_check
      _
    $region15: #{discriminator_forward.7} parent=1 // pred_check_branch
      %346 = sbr.rel (0) target = $region17
    $region16: #{discriminator_forward.7} parent=1 // pred_region
      %348 = vsyncadd [#allocation4], 0
      %s350 = sshll.u32 [#allocation3], 4
      %s351 = int_to_ptr.vmem [resolvable:$true] %s350
      %s352 = sshll.u32 %s3, 4
      %s353 = int_to_ptr.hbm [resolvable:$true] %s352
      %355 = dma.vmem_to_hbm [thread:$0]  %s351, 16, %s353, [#allocation4]
    $region17: #{discriminator_forward.7} parent=1 // pred_fallthru
      _
    // Predicated region
    $region18: #{discriminator_forward.7} parent=1 // pred_check
      _
    $region19: #{discriminator_forward.7} parent=1 // pred_check_branch
      %357 = sbr.rel (0) target = $region21
    $region20: #{discriminator_forward.7} parent=1 // pred_region
      %359 = dma.done [#allocation4], 16
    $region21: #{discriminator_forward.7} parent=1 // pred_fallthru
      _
    %360 = vsyncpa [#allocation4], 1

</llo_original>
